<compile_context>
chip_gen: v7x
topology: tpu7x:2x2x1
jax: 0.10.0
libtpu: 0.0.40
codegen_flags: <defaults>
</compile_context>

<pallas_src>
import functools

import jax
import jax.numpy as jnp
from jax.experimental import pallas as pl
from jax.experimental.pallas import tpu as pltpu

# ----------------------------- model hyper-params -----------------------------
VOC_SIZE = 64
D_MODEL = 32
NHEAD = 4
NUM_LAYERS = 2
MAX_LEN = 16
LORA_R = 4
DFF = 2048           # nn.TransformerDecoderLayer default dim_feedforward
LN_EPS = 1e-5
NEG_INF = -1e30


# ----------------------------- fused Pallas kernel ----------------------------
def _gpt_fused_kernel(tok_ref, emb_ref, pe_ref, lm_w_ref, lm_b_ref,
                      colmask_ref, wmask_ref,
                      w_sa_ref, w_ffn_ref, b1_ref, small_ref,
                      out_ref, *, bs, seq, num_layers):
    d = D_MODEL
    M = bs * seq

    # ---- embedding (one-hot matmul) + positional encoding ----
    tok = tok_ref[...]                                                 # (M, 1) int32
    onehot = (jax.lax.broadcasted_iota(jnp.int32, (M, VOC_SIZE), 1) == tok
              ).astype(jnp.float32)
    x = jnp.dot(onehot, emb_ref[...], preferred_element_type=jnp.float32)
    x = x + jnp.tile(pe_ref[0:seq, :], (bs, 1))                        # (M, d)

    colmask = colmask_ref[...]                                         # (h*M, d)
    wmask = wmask_ref[...]                                             # (M, h*M)

    def layer_norm(y, g, b):
        mu = jnp.mean(y, axis=-1, keepdims=True)
        var = jnp.mean((y - mu) ** 2, axis=-1, keepdims=True)
        return (y - mu) * jax.lax.rsqrt(var + LN_EPS) * g + b

    for l in range(num_layers):                                        # unrolled (L=2)
        sp = small_ref[l]                                              # (12, d)
        bq, bk, bv, bo, cross = sp[0:1], sp[1:2], sp[2:3], sp[3:4], sp[4:5]
        ln1g, ln1b, ln2g, ln2b = sp[5:6], sp[6:7], sp[7:8], sp[8:9]
        ln3g, ln3b, b2 = sp[9:10], sp[10:11], sp[11:12]

        # ---- self-attention: heads flattened onto K/V rows (no lane slicing) ----
        # q carries the 1/sqrt(dh) scale folded into its weight/bias.
        q = jnp.dot(x, w_sa_ref[l, 0], preferred_element_type=jnp.float32) + bq
        x_rep = jnp.tile(x, (NHEAD, 1))                                # (h*M, d) sublane tile
        k_blk = (jnp.dot(x_rep, w_sa_ref[l, 1],
                         preferred_element_type=jnp.float32) + bk) * colmask
        v_blk = (jnp.dot(x_rep, w_sa_ref[l, 2],
                         preferred_element_type=jnp.float32) + bv) * colmask
        # scores: column r = (head h = r//M, key m_k = r%M); per-head contraction
        # happens because k_blk rows are zero outside their head's channel block.
        s = jax.lax.dot_general(q, k_blk, (((1,), (1,)), ((), ())),
                                preferred_element_type=jnp.float32) + wmask
        e = jnp.exp(s - jnp.max(s, axis=-1, keepdims=True))            # (M, h*M)
        denom = jnp.dot(e, colmask, preferred_element_type=jnp.float32)  # per-head sums,
        o = jnp.dot(e, v_blk, preferred_element_type=jnp.float32)        # bcast to (M, d)
        attn = o / denom
        a = jnp.dot(attn, w_sa_ref[l, 3], preferred_element_type=jnp.float32) + bo
        x = layer_norm(x + a, ln1g, ln1b)

        # ---- cross-attention over zero length-1 memory == constant row ----
        x = layer_norm(x + cross, ln2g, ln2b)

        # ---- feed-forward (bf16 weights, f32 accumulation, relu) ----
        h1 = jnp.dot(x.astype(jnp.bfloat16), w_ffn_ref[l, 0],
                     preferred_element_type=jnp.float32) + b1_ref[l]
        h1 = jnp.maximum(h1, 0.0)
        # w2 stored lane-dense (d, DFF); contract over the last dim of both (trans_b).
        f = jax.lax.dot_general(h1.astype(jnp.bfloat16), w_ffn_ref[l, 1],
                                (((1,), (1,)), ((), ())),
                                preferred_element_type=jnp.float32) + b2
        x = layer_norm(x + f, ln3g, ln3b)

    # ---- LM head ----
    out_ref[...] = (jnp.dot(x, lm_w_ref[...], preferred_element_type=jnp.float32)
                    + lm_b_ref[...])


# ----------------------------- parameter init ---------------------------------
def make_positional_encoding(max_len, d_model):
    pos = jnp.arange(max_len, dtype=jnp.float32)[:, None]
    two_i = jnp.arange(0, d_model, 2, dtype=jnp.float32)
    div = jnp.power(10000.0, two_i / d_model)
    pe = jnp.zeros((max_len, d_model), jnp.float32)
    pe = pe.at[:, 0::2].set(jnp.sin(pos / div))
    pe = pe.at[:, 1::2].set(jnp.cos(pos / div))
    return pe


def init_params(key):
    ks = iter(jax.random.split(key, 256))

    def nrm(shape, scale):
        return (scale * jax.random.normal(next(ks), shape)).astype(jnp.float32)

    params = {
        "embedding": nrm((VOC_SIZE, D_MODEL), 0.02),
        "posenc": make_positional_encoding(MAX_LEN, D_MODEL),
        "lm_w": nrm((VOC_SIZE, D_MODEL), 0.02),
        "lm_b": jnp.zeros((VOC_SIZE,), jnp.float32),
        "layers": [],
    }
    for _ in range(NUM_LAYERS):
        lp = {
            "sa_in_w": nrm((3 * D_MODEL, D_MODEL), 0.05),
            "sa_in_b": nrm((3 * D_MODEL,), 0.01),
            "sa_out_w": nrm((D_MODEL, D_MODEL), 0.05),
            "sa_out_b": nrm((D_MODEL,), 0.01),
            "ca_in_w": nrm((3 * D_MODEL, D_MODEL), 0.05),
            "ca_in_b": nrm((3 * D_MODEL,), 0.01),
            "ca_out_w": nrm((D_MODEL, D_MODEL), 0.05),
            "ca_out_b": nrm((D_MODEL,), 0.01),
            "lin1_w": nrm((DFF, D_MODEL), 0.02),
            "lin1_b": jnp.zeros((DFF,), jnp.float32),
            "lin2_w": nrm((D_MODEL, DFF), 0.02),
            "lin2_b": jnp.zeros((D_MODEL,), jnp.float32),
            "ln1_g": jnp.ones((D_MODEL,), jnp.float32),
            "ln1_b": jnp.zeros((D_MODEL,), jnp.float32),
            "ln2_g": jnp.ones((D_MODEL,), jnp.float32),
            "ln2_b": jnp.zeros((D_MODEL,), jnp.float32),
            "ln3_g": jnp.ones((D_MODEL,), jnp.float32),
            "ln3_b": jnp.zeros((D_MODEL,), jnp.float32),
        }
        for mod in ("q", "k", "v", "o"):   # target_modules = query/key/value/output
            lp[f"lora_{mod}_A"] = nrm((D_MODEL, LORA_R), 0.01)
            lp[f"lora_{mod}_B"] = nrm((LORA_R, D_MODEL), 0.01)
        params["layers"].append(lp)
    return params


# ----------------------------- one-time weight prep ----------------------------
def prepare_params(params):
    """Pre-transpose, fold LoRA + doubled in/out projections, the attention scale
    and the constant cross-attention output; pack everything into a few stacked
    arrays. Done once, outside the jitted forward."""
    d = D_MODEL
    dh = d // NHEAD
    scale = 1.0 / (dh ** 0.5)
    eye = jnp.eye(d, dtype=jnp.float32)

    w_sa, w_ffn, b1, small = [], [], [], []
    for lp in params["layers"]:
        Wq, bq = lp["sa_in_w"][0:d].T, lp["sa_in_b"][0:d]
        Wk, bk = lp["sa_in_w"][d:2 * d].T, lp["sa_in_b"][d:2 * d]
        Wv, bv = lp["sa_in_w"][2 * d:].T, lp["sa_in_b"][2 * d:]
        # q0 = x@(Wt+AB)+b ; self_attn re-applies in_proj: q1 = q0@Wt + b
        wq_eff = ((Wq + lp["lora_q_A"] @ lp["lora_q_B"]) @ Wq) * scale
        bq_eff = (bq @ Wq + bq) * scale
        wk_eff = (Wk + lp["lora_k_A"] @ lp["lora_k_B"]) @ Wk
        bk_eff = bk @ Wk + bk
        wv_eff = (Wv + lp["lora_v_A"] @ lp["lora_v_B"]) @ Wv
        bv_eff = bv @ Wv + bv
        # doubled out_proj, then output-LoRA (I + A_o B_o)
        Wo, bo = lp["sa_out_w"].T, lp["sa_out_b"]
        Mo = eye + lp["lora_o_A"] @ lp["lora_o_B"]
        wo_eff = Wo @ Wo @ Mo
        bo_eff = (bo @ Wo + bo) @ Mo
        # cross-attn vs zero length-1 memory: output == b_v @ W_out.T + b_out
        cross = lp["ca_in_b"][2 * d:] @ lp["ca_out_w"].T + lp["ca_out_b"]

        w_sa.append(jnp.stack([wq_eff, wk_eff, wv_eff, wo_eff]))       # (4, d, d)
        w_ffn.append(jnp.stack([lp["lin1_w"].T.astype(jnp.bfloat16),   # (d, DFF)
                                lp["lin2_w"].astype(jnp.bfloat16)]))   # (d, DFF) lane-dense
        b1.append(lp["lin1_b"][None, :])                               # (1, DFF)
        small.append(jnp.stack([bq_eff, bk_eff, bv_eff, bo_eff, cross,
                                lp["ln1_g"], lp["ln1_b"],
                                lp["ln2_g"], lp["ln2_b"],
                                lp["ln3_g"], lp["ln3_b"],
                                lp["lin2_b"]]))                        # (12, d)

    return {
        "emb": params["embedding"],                                    # (voc, d)
        "pe": params["posenc"],                                        # (max_len, d)
        "lm_w": params["lm_w"].T,                                      # (d, voc)
        "lm_b": params["lm_b"][None, :],                               # (1, voc)
        "w_sa": jnp.stack(w_sa),                                       # (L, 4, d, d)
        "w_ffn": jnp.stack(w_ffn),                                     # (L, 2, d, DFF) bf16
        "b1": jnp.stack(b1),                                           # (L, 1, DFF)
        "small": jnp.stack(small),                                     # (L, 12, d)
    }


# ----------------------------- forward pass ------------------------------------
def gpt_forward(prep, tokens):
    bs, seq = tokens.shape
    M = bs * seq
    MH = NHEAD * M
    dh = D_MODEL // NHEAD
    L = prep["w_sa"].shape[0]

    tok = tokens.reshape(M, 1).astype(jnp.int32)

    # Head/channel selection mask: row r=(h, m_k) keeps channels of head h.
    colmask = ((jnp.arange(MH)[:, None] // M) ==
               (jnp.arange(D_MODEL)[None, :] // dh)).astype(jnp.float32)   # (MH, d)
    # Additive causal + same-batch mask over the head-flattened key axis.
    m_idx = jnp.arange(M)
    b_of, s_of = m_idx // seq, m_idx % seq
    valid = (b_of[:, None] == b_of[None, :]) & (s_of[None, :] <= s_of[:, None])
    wmask = jnp.where(jnp.tile(valid, (1, NHEAD)), 0.0, NEG_INF
                      ).astype(jnp.float32)                                # (M, MH)

    vmem = pl.BlockSpec(memory_space=pltpu.MemorySpace.VMEM)
    out = pl.pallas_call(
        functools.partial(_gpt_fused_kernel, bs=bs, seq=seq, num_layers=L),
        out_shape=jax.ShapeDtypeStruct((M, VOC_SIZE), jnp.float32),
        in_specs=[vmem] * 11,
        out_specs=vmem,
    )(tok, prep["emb"], prep["pe"], prep["lm_w"], prep["lm_b"],
      colmask, wmask, prep["w_sa"], prep["w_ffn"], prep["b1"], prep["small"])
    return out.reshape(bs, seq, VOC_SIZE)


# ----------------------------- main -------------------------------------------
if __name__ == "__main__":
    key = jax.random.PRNGKey(0)
    k_params, k_tok = jax.random.split(key)
    params = init_params(k_params)
    prep = prepare_params(params)      # one-time: transpose / fuse / fold weights

    batch, seq_len = 2, 8
    tokens = jax.random.randint(k_tok, (batch, seq_len), 0, VOC_SIZE, dtype=jnp.int32)

    fwd = jax.jit(gpt_forward)
    logits = fwd(prep, tokens)
    jax.block_until_ready(logits)

    assert logits.shape == (batch, seq_len, VOC_SIZE)
    assert bool(jnp.all(jnp.isfinite(logits)))
    print("KERNEL_OK")
</pallas_src>

<mosaic_0001>
module attributes {stable_mosaic.version = 11 : i64} {
  func.func @_gpt_fused_kernel(%arg0: memref<16x1xi32, #tpu.memory_space<vmem>>, %arg1: memref<64x32xf32, #tpu.memory_space<vmem>>, %arg2: memref<16x32xf32, #tpu.memory_space<vmem>>, %arg3: memref<32x64xf32, #tpu.memory_space<vmem>>, %arg4: memref<1x64xf32, #tpu.memory_space<vmem>>, %arg5: memref<64x32xf32, #tpu.memory_space<vmem>>, %arg6: memref<16x64xf32, #tpu.memory_space<vmem>>, %arg7: memref<2x4x32x32xf32, #tpu.memory_space<vmem>>, %arg8: memref<2x2x32x2048xbf16, #tpu.memory_space<vmem>>, %arg9: memref<2x1x2048xf32, #tpu.memory_space<vmem>>, %arg10: memref<2x12x32xf32, #tpu.memory_space<vmem>>, %arg11: memref<16x64xf32, #tpu.memory_space<vmem>>) attributes {dimension_semantics = [], scalar_prefetch = 0 : i64, scratch_operands = 0 : i64, tpu.core_type = #tpu.core_type<tc>} {
    %c0 = arith.constant 0 : index
    %c0_0 = arith.constant 0 : index
    %0 = vector.load %arg0[%c0, %c0_0] : memref<16x1xi32, #tpu.memory_space<vmem>>, vector<16x1xi32>
    %1 = tpu.iota {dimensions = array<i32: 1>} : vector<16x64xi32>
    %2 = vector.broadcast %0 : vector<16x1xi32> to vector<16x64xi32>
    %3 = arith.cmpi eq, %1, %2 : vector<16x64xi32>
    %4 = arith.extui %3 : vector<16x64xi1> to vector<16x64xi32>
    %5 = arith.sitofp %4 : vector<16x64xi32> to vector<16x64xf32>
    %c0_1 = arith.constant 0 : index
    %c0_2 = arith.constant 0 : index
    %6 = vector.load %arg1[%c0_1, %c0_2] : memref<64x32xf32, #tpu.memory_space<vmem>>, vector<64x32xf32>
    %cst = arith.constant dense<0.000000e+00> : vector<16x32xf32>
    %7 = tpu.matmul %5, %6, %cst {dimension_numbers = #tpu.dot_dimension_numbers<[1], [0], [0], [1], [0, 0, 1, 1], [], []>} : vector<16x64xf32>, vector<64x32xf32>, vector<16x32xf32> -> vector<16x32xf32>
    %c0_3 = arith.constant 0 : index
    %c0_4 = arith.constant 0 : index
    %8 = vector.load %arg2[%c0_3, %c0_4] : memref<16x32xf32, #tpu.memory_space<vmem>>, vector<8x32xf32>
    %9 = tpu.concatenate %8, %8 in 0 : vector<8x32xf32>, vector<8x32xf32> -> vector<16x32xf32>
    %10 = arith.addf %7, %9 : vector<16x32xf32>
    %c0_5 = arith.constant 0 : index
    %c0_6 = arith.constant 0 : index
    %11 = vector.load %arg5[%c0_5, %c0_6] : memref<64x32xf32, #tpu.memory_space<vmem>>, vector<64x32xf32>
    %c0_7 = arith.constant 0 : index
    %c0_8 = arith.constant 0 : index
    %12 = vector.load %arg6[%c0_7, %c0_8] : memref<16x64xf32, #tpu.memory_space<vmem>>, vector<16x64xf32>
    %c0_9 = arith.constant 0 : index
    %c0_10 = arith.constant 0 : index
    %c0_11 = arith.constant 0 : index
    %13 = vector.load %arg10[%c0_9, %c0_10, %c0_11] : memref<2x12x32xf32, #tpu.memory_space<vmem>>, vector<1x12x32xf32>
    %14 = vector.shape_cast %13 : vector<1x12x32xf32> to vector<12x32xf32>
    %15 = vector.extract_strided_slice %14 {offsets = [0, 0], sizes = [1, 32], strides = [1, 1]} : vector<12x32xf32> to vector<1x32xf32>
    %16 = vector.extract_strided_slice %14 {offsets = [1, 0], sizes = [1, 32], strides = [1, 1]} : vector<12x32xf32> to vector<1x32xf32>
    %17 = vector.extract_strided_slice %14 {offsets = [2, 0], sizes = [1, 32], strides = [1, 1]} : vector<12x32xf32> to vector<1x32xf32>
    %18 = vector.extract_strided_slice %14 {offsets = [3, 0], sizes = [1, 32], strides = [1, 1]} : vector<12x32xf32> to vector<1x32xf32>
    %19 = vector.extract_strided_slice %14 {offsets = [4, 0], sizes = [1, 32], strides = [1, 1]} : vector<12x32xf32> to vector<1x32xf32>
    %20 = vector.extract_strided_slice %14 {offsets = [5, 0], sizes = [1, 32], strides = [1, 1]} : vector<12x32xf32> to vector<1x32xf32>
    %21 = vector.extract_strided_slice %14 {offsets = [6, 0], sizes = [1, 32], strides = [1, 1]} : vector<12x32xf32> to vector<1x32xf32>
    %22 = vector.extract_strided_slice %14 {offsets = [7, 0], sizes = [1, 32], strides = [1, 1]} : vector<12x32xf32> to vector<1x32xf32>
    %23 = vector.extract_strided_slice %14 {offsets = [8, 0], sizes = [1, 32], strides = [1, 1]} : vector<12x32xf32> to vector<1x32xf32>
    %24 = vector.extract_strided_slice %14 {offsets = [9, 0], sizes = [1, 32], strides = [1, 1]} : vector<12x32xf32> to vector<1x32xf32>
    %25 = vector.extract_strided_slice %14 {offsets = [10, 0], sizes = [1, 32], strides = [1, 1]} : vector<12x32xf32> to vector<1x32xf32>
    %26 = vector.extract_strided_slice %14 {offsets = [11, 0], sizes = [1, 32], strides = [1, 1]} : vector<12x32xf32> to vector<1x32xf32>
    %c0_12 = arith.constant 0 : index
    %c0_13 = arith.constant 0 : index
    %c0_14 = arith.constant 0 : index
    %c0_15 = arith.constant 0 : index
    %27 = vector.load %arg7[%c0_12, %c0_13, %c0_14, %c0_15] : memref<2x4x32x32xf32, #tpu.memory_space<vmem>>, vector<1x1x32x32xf32>
    %28 = vector.shape_cast %27 : vector<1x1x32x32xf32> to vector<32x32xf32>
    %cst_16 = arith.constant dense<0.000000e+00> : vector<16x32xf32>
    %29 = tpu.matmul %10, %28, %cst_16 {dimension_numbers = #tpu.dot_dimension_numbers<[1], [0], [0], [1], [0, 0, 1, 1], [], []>} : vector<16x32xf32>, vector<32x32xf32>, vector<16x32xf32> -> vector<16x32xf32>
    %30 = vector.broadcast %15 : vector<1x32xf32> to vector<16x32xf32>
    %31 = arith.addf %29, %30 : vector<16x32xf32>
    %32 = tpu.concatenate %10, %10, %10, %10 in 0 : vector<16x32xf32>, vector<16x32xf32>, vector<16x32xf32>, vector<16x32xf32> -> vector<64x32xf32>
    %c0_17 = arith.constant 0 : index
    %c1 = arith.constant 1 : index
    %c0_18 = arith.constant 0 : index
    %c0_19 = arith.constant 0 : index
    %33 = vector.load %arg7[%c0_17, %c1, %c0_18, %c0_19] : memref<2x4x32x32xf32, #tpu.memory_space<vmem>>, vector<1x1x32x32xf32>
    %34 = vector.shape_cast %33 : vector<1x1x32x32xf32> to vector<32x32xf32>
    %cst_20 = arith.constant dense<0.000000e+00> : vector<64x32xf32>
    %35 = tpu.matmul %32, %34, %cst_20 {dimension_numbers = #tpu.dot_dimension_numbers<[1], [0], [0], [1], [0, 0, 1, 1], [], []>} : vector<64x32xf32>, vector<32x32xf32>, vector<64x32xf32> -> vector<64x32xf32>
    %36 = vector.broadcast %16 : vector<1x32xf32> to vector<64x32xf32>
    %37 = arith.addf %35, %36 : vector<64x32xf32>
    %38 = arith.mulf %37, %11 : vector<64x32xf32>
    %c0_21 = arith.constant 0 : index
    %c2 = arith.constant 2 : index
    %c0_22 = arith.constant 0 : index
    %c0_23 = arith.constant 0 : index
    %39 = vector.load %arg7[%c0_21, %c2, %c0_22, %c0_23] : memref<2x4x32x32xf32, #tpu.memory_space<vmem>>, vector<1x1x32x32xf32>
    %40 = vector.shape_cast %39 : vector<1x1x32x32xf32> to vector<32x32xf32>
    %cst_24 = arith.constant dense<0.000000e+00> : vector<64x32xf32>
    %41 = tpu.matmul %32, %40, %cst_24 {dimension_numbers = #tpu.dot_dimension_numbers<[1], [0], [0], [1], [0, 0, 1, 1], [], []>} : vector<64x32xf32>, vector<32x32xf32>, vector<64x32xf32> -> vector<64x32xf32>
    %42 = vector.broadcast %17 : vector<1x32xf32> to vector<64x32xf32>
    %43 = arith.addf %41, %42 : vector<64x32xf32>
    %44 = arith.mulf %43, %11 : vector<64x32xf32>
    %cst_25 = arith.constant dense<0.000000e+00> : vector<16x64xf32>
    %45 = tpu.matmul %31, %38, %cst_25 {dimension_numbers = #tpu.dot_dimension_numbers<[1], [1], [0], [0], [0, 0, 1, 0], [], []>} : vector<16x32xf32>, vector<64x32xf32>, vector<16x64xf32> -> vector<16x64xf32>
    %46 = arith.addf %45, %12 : vector<16x64xf32>
    %cst_26 = arith.constant dense<0xFF800000> : vector<16xf32>
    %47 = vector.multi_reduction <maximumf>, %46, %cst_26 [1] : vector<16x64xf32> to vector<16xf32>
    %48 = vector.shape_cast %47 : vector<16xf32> to vector<16x1xf32>
    %49 = vector.broadcast %48 : vector<16x1xf32> to vector<16x64xf32>
    %50 = arith.subf %46, %49 : vector<16x64xf32>
    %51 = math.exp %50 : vector<16x64xf32>
    %cst_27 = arith.constant dense<0.000000e+00> : vector<16x32xf32>
    %52 = tpu.matmul %51, %11, %cst_27 {dimension_numbers = #tpu.dot_dimension_numbers<[1], [0], [0], [1], [0, 0, 1, 1], [], []>} : vector<16x64xf32>, vector<64x32xf32>, vector<16x32xf32> -> vector<16x32xf32>
    %cst_28 = arith.constant dense<0.000000e+00> : vector<16x32xf32>
    %53 = tpu.matmul %51, %44, %cst_28 {dimension_numbers = #tpu.dot_dimension_numbers<[1], [0], [0], [1], [0, 0, 1, 1], [], []>} : vector<16x64xf32>, vector<64x32xf32>, vector<16x32xf32> -> vector<16x32xf32>
    %54 = arith.divf %53, %52 : vector<16x32xf32>
    %c0_29 = arith.constant 0 : index
    %c3 = arith.constant 3 : index
    %c0_30 = arith.constant 0 : index
    %c0_31 = arith.constant 0 : index
    %55 = vector.load %arg7[%c0_29, %c3, %c0_30, %c0_31] : memref<2x4x32x32xf32, #tpu.memory_space<vmem>>, vector<1x1x32x32xf32>
    %56 = vector.shape_cast %55 : vector<1x1x32x32xf32> to vector<32x32xf32>
    %cst_32 = arith.constant dense<0.000000e+00> : vector<16x32xf32>
    %57 = tpu.matmul %54, %56, %cst_32 {dimension_numbers = #tpu.dot_dimension_numbers<[1], [0], [0], [1], [0, 0, 1, 1], [], []>} : vector<16x32xf32>, vector<32x32xf32>, vector<16x32xf32> -> vector<16x32xf32>
    %58 = vector.broadcast %18 : vector<1x32xf32> to vector<16x32xf32>
    %59 = arith.addf %57, %58 : vector<16x32xf32>
    %60 = arith.addf %10, %59 : vector<16x32xf32>
    %cst_33 = arith.constant dense<0.000000e+00> : vector<16xf32>
    %61 = vector.multi_reduction <add>, %60, %cst_33 [1] : vector<16x32xf32> to vector<16xf32>
    %62 = vector.shape_cast %61 : vector<16xf32> to vector<16x1xf32>
    %cst_34 = arith.constant 3.200000e+01 : f32
    %63 = vector.broadcast %cst_34 : f32 to vector<16x1xf32>
    %64 = arith.divf %62, %63 : vector<16x1xf32>
    %65 = vector.broadcast %64 : vector<16x1xf32> to vector<16x32xf32>
    %66 = arith.subf %60, %65 : vector<16x32xf32>
    %67 = arith.mulf %66, %66 : vector<16x32xf32>
    %cst_35 = arith.constant dense<0.000000e+00> : vector<16xf32>
    %68 = vector.multi_reduction <add>, %67, %cst_35 [1] : vector<16x32xf32> to vector<16xf32>
    %69 = vector.shape_cast %68 : vector<16xf32> to vector<16x1xf32>
    %cst_36 = arith.constant 3.200000e+01 : f32
    %70 = vector.broadcast %cst_36 : f32 to vector<16x1xf32>
    %71 = arith.divf %69, %70 : vector<16x1xf32>
    %72 = vector.broadcast %64 : vector<16x1xf32> to vector<16x32xf32>
    %73 = arith.subf %60, %72 : vector<16x32xf32>
    %cst_37 = arith.constant 9.99999974E-6 : f32
    %74 = vector.broadcast %cst_37 : f32 to vector<16x1xf32>
    %75 = arith.addf %71, %74 : vector<16x1xf32>
    %76 = math.rsqrt %75 : vector<16x1xf32>
    %77 = vector.broadcast %76 : vector<16x1xf32> to vector<16x32xf32>
    %78 = arith.mulf %73, %77 : vector<16x32xf32>
    %79 = vector.broadcast %20 : vector<1x32xf32> to vector<16x32xf32>
    %80 = arith.mulf %78, %79 : vector<16x32xf32>
    %81 = vector.broadcast %21 : vector<1x32xf32> to vector<16x32xf32>
    %82 = arith.addf %80, %81 : vector<16x32xf32>
    %83 = vector.broadcast %19 : vector<1x32xf32> to vector<16x32xf32>
    %84 = arith.addf %82, %83 : vector<16x32xf32>
    %cst_38 = arith.constant dense<0.000000e+00> : vector<16xf32>
    %85 = vector.multi_reduction <add>, %84, %cst_38 [1] : vector<16x32xf32> to vector<16xf32>
    %86 = vector.shape_cast %85 : vector<16xf32> to vector<16x1xf32>
    %cst_39 = arith.constant 3.200000e+01 : f32
    %87 = vector.broadcast %cst_39 : f32 to vector<16x1xf32>
    %88 = arith.divf %86, %87 : vector<16x1xf32>
    %89 = vector.broadcast %88 : vector<16x1xf32> to vector<16x32xf32>
    %90 = arith.subf %84, %89 : vector<16x32xf32>
    %91 = arith.mulf %90, %90 : vector<16x32xf32>
    %cst_40 = arith.constant dense<0.000000e+00> : vector<16xf32>
    %92 = vector.multi_reduction <add>, %91, %cst_40 [1] : vector<16x32xf32> to vector<16xf32>
    %93 = vector.shape_cast %92 : vector<16xf32> to vector<16x1xf32>
    %cst_41 = arith.constant 3.200000e+01 : f32
    %94 = vector.broadcast %cst_41 : f32 to vector<16x1xf32>
    %95 = arith.divf %93, %94 : vector<16x1xf32>
    %96 = vector.broadcast %88 : vector<16x1xf32> to vector<16x32xf32>
    %97 = arith.subf %84, %96 : vector<16x32xf32>
    %cst_42 = arith.constant 9.99999974E-6 : f32
    %98 = vector.broadcast %cst_42 : f32 to vector<16x1xf32>
    %99 = arith.addf %95, %98 : vector<16x1xf32>
    %100 = math.rsqrt %99 : vector<16x1xf32>
    %101 = vector.broadcast %100 : vector<16x1xf32> to vector<16x32xf32>
    %102 = arith.mulf %97, %101 : vector<16x32xf32>
    %103 = vector.broadcast %22 : vector<1x32xf32> to vector<16x32xf32>
    %104 = arith.mulf %102, %103 : vector<16x32xf32>
    %105 = vector.broadcast %23 : vector<1x32xf32> to vector<16x32xf32>
    %106 = arith.addf %104, %105 : vector<16x32xf32>
    %107 = arith.truncf %106 : vector<16x32xf32> to vector<16x32xbf16>
    %c0_43 = arith.constant 0 : index
    %c0_44 = arith.constant 0 : index
    %c0_45 = arith.constant 0 : index
    %c0_46 = arith.constant 0 : index
    %108 = vector.load %arg8[%c0_43, %c0_44, %c0_45, %c0_46] : memref<2x2x32x2048xbf16, #tpu.memory_space<vmem>>, vector<1x1x32x2048xbf16>
    %109 = vector.shape_cast %108 : vector<1x1x32x2048xbf16> to vector<32x2048xbf16>
    %cst_47 = arith.constant dense<0.000000e+00> : vector<16x2048xf32>
    %110 = tpu.matmul %107, %109, %cst_47 {dimension_numbers = #tpu.dot_dimension_numbers<[1], [0], [0], [1], [0, 0, 1, 1], [], []>} : vector<16x32xbf16>, vector<32x2048xbf16>, vector<16x2048xf32> -> vector<16x2048xf32>
    %c0_48 = arith.constant 0 : index
    %c0_49 = arith.constant 0 : index
    %c0_50 = arith.constant 0 : index
    %111 = vector.load %arg9[%c0_48, %c0_49, %c0_50] : memref<2x1x2048xf32, #tpu.memory_space<vmem>>, vector<1x1x2048xf32>
    %112 = vector.shape_cast %111 : vector<1x1x2048xf32> to vector<1x2048xf32>
    %113 = vector.broadcast %112 : vector<1x2048xf32> to vector<16x2048xf32>
    %114 = arith.addf %110, %113 : vector<16x2048xf32>
    %cst_51 = arith.constant 0.000000e+00 : f32
    %115 = vector.broadcast %cst_51 : f32 to vector<16x2048xf32>
    %116 = arith.maximumf %114, %115 : vector<16x2048xf32>
    %117 = arith.truncf %116 : vector<16x2048xf32> to vector<16x2048xbf16>
    %c0_52 = arith.constant 0 : index
    %c1_53 = arith.constant 1 : index
    %c0_54 = arith.constant 0 : index
    %c0_55 = arith.constant 0 : index
    %118 = vector.load %arg8[%c0_52, %c1_53, %c0_54, %c0_55] : memref<2x2x32x2048xbf16, #tpu.memory_space<vmem>>, vector<1x1x32x2048xbf16>
    %119 = vector.shape_cast %118 : vector<1x1x32x2048xbf16> to vector<32x2048xbf16>
    %cst_56 = arith.constant dense<0.000000e+00> : vector<16x32xf32>
    %120 = tpu.matmul %117, %119, %cst_56 {dimension_numbers = #tpu.dot_dimension_numbers<[1], [1], [0], [0], [0, 0, 1, 0], [], []>} : vector<16x2048xbf16>, vector<32x2048xbf16>, vector<16x32xf32> -> vector<16x32xf32>
    %121 = vector.broadcast %26 : vector<1x32xf32> to vector<16x32xf32>
    %122 = arith.addf %120, %121 : vector<16x32xf32>
    %123 = arith.addf %106, %122 : vector<16x32xf32>
    %cst_57 = arith.constant dense<0.000000e+00> : vector<16xf32>
    %124 = vector.multi_reduction <add>, %123, %cst_57 [1] : vector<16x32xf32> to vector<16xf32>
    %125 = vector.shape_cast %124 : vector<16xf32> to vector<16x1xf32>
    %cst_58 = arith.constant 3.200000e+01 : f32
    %126 = vector.broadcast %cst_58 : f32 to vector<16x1xf32>
    %127 = arith.divf %125, %126 : vector<16x1xf32>
    %128 = vector.broadcast %127 : vector<16x1xf32> to vector<16x32xf32>
    %129 = arith.subf %123, %128 : vector<16x32xf32>
    %130 = arith.mulf %129, %129 : vector<16x32xf32>
    %cst_59 = arith.constant dense<0.000000e+00> : vector<16xf32>
    %131 = vector.multi_reduction <add>, %130, %cst_59 [1] : vector<16x32xf32> to vector<16xf32>
    %132 = vector.shape_cast %131 : vector<16xf32> to vector<16x1xf32>
    %cst_60 = arith.constant 3.200000e+01 : f32
    %133 = vector.broadcast %cst_60 : f32 to vector<16x1xf32>
    %134 = arith.divf %132, %133 : vector<16x1xf32>
    %135 = vector.broadcast %127 : vector<16x1xf32> to vector<16x32xf32>
    %136 = arith.subf %123, %135 : vector<16x32xf32>
    %cst_61 = arith.constant 9.99999974E-6 : f32
    %137 = vector.broadcast %cst_61 : f32 to vector<16x1xf32>
    %138 = arith.addf %134, %137 : vector<16x1xf32>
    %139 = math.rsqrt %138 : vector<16x1xf32>
    %140 = vector.broadcast %139 : vector<16x1xf32> to vector<16x32xf32>
    %141 = arith.mulf %136, %140 : vector<16x32xf32>
    %142 = vector.broadcast %24 : vector<1x32xf32> to vector<16x32xf32>
    %143 = arith.mulf %141, %142 : vector<16x32xf32>
    %144 = vector.broadcast %25 : vector<1x32xf32> to vector<16x32xf32>
    %145 = arith.addf %143, %144 : vector<16x32xf32>
    %c1_62 = arith.constant 1 : index
    %c0_63 = arith.constant 0 : index
    %c0_64 = arith.constant 0 : index
    %146 = vector.load %arg10[%c1_62, %c0_63, %c0_64] : memref<2x12x32xf32, #tpu.memory_space<vmem>>, vector<1x12x32xf32>
    %147 = vector.shape_cast %146 : vector<1x12x32xf32> to vector<12x32xf32>
    %148 = vector.extract_strided_slice %147 {offsets = [0, 0], sizes = [1, 32], strides = [1, 1]} : vector<12x32xf32> to vector<1x32xf32>
    %149 = vector.extract_strided_slice %147 {offsets = [1, 0], sizes = [1, 32], strides = [1, 1]} : vector<12x32xf32> to vector<1x32xf32>
    %150 = vector.extract_strided_slice %147 {offsets = [2, 0], sizes = [1, 32], strides = [1, 1]} : vector<12x32xf32> to vector<1x32xf32>
    %151 = vector.extract_strided_slice %147 {offsets = [3, 0], sizes = [1, 32], strides = [1, 1]} : vector<12x32xf32> to vector<1x32xf32>
    %152 = vector.extract_strided_slice %147 {offsets = [4, 0], sizes = [1, 32], strides = [1, 1]} : vector<12x32xf32> to vector<1x32xf32>
    %153 = vector.extract_strided_slice %147 {offsets = [5, 0], sizes = [1, 32], strides = [1, 1]} : vector<12x32xf32> to vector<1x32xf32>
    %154 = vector.extract_strided_slice %147 {offsets = [6, 0], sizes = [1, 32], strides = [1, 1]} : vector<12x32xf32> to vector<1x32xf32>
    %155 = vector.extract_strided_slice %147 {offsets = [7, 0], sizes = [1, 32], strides = [1, 1]} : vector<12x32xf32> to vector<1x32xf32>
    %156 = vector.extract_strided_slice %147 {offsets = [8, 0], sizes = [1, 32], strides = [1, 1]} : vector<12x32xf32> to vector<1x32xf32>
    %157 = vector.extract_strided_slice %147 {offsets = [9, 0], sizes = [1, 32], strides = [1, 1]} : vector<12x32xf32> to vector<1x32xf32>
    %158 = vector.extract_strided_slice %147 {offsets = [10, 0], sizes = [1, 32], strides = [1, 1]} : vector<12x32xf32> to vector<1x32xf32>
    %159 = vector.extract_strided_slice %147 {offsets = [11, 0], sizes = [1, 32], strides = [1, 1]} : vector<12x32xf32> to vector<1x32xf32>
    %c1_65 = arith.constant 1 : index
    %c0_66 = arith.constant 0 : index
    %c0_67 = arith.constant 0 : index
    %c0_68 = arith.constant 0 : index
    %160 = vector.load %arg7[%c1_65, %c0_66, %c0_67, %c0_68] : memref<2x4x32x32xf32, #tpu.memory_space<vmem>>, vector<1x1x32x32xf32>
    %161 = vector.shape_cast %160 : vector<1x1x32x32xf32> to vector<32x32xf32>
    %cst_69 = arith.constant dense<0.000000e+00> : vector<16x32xf32>
    %162 = tpu.matmul %145, %161, %cst_69 {dimension_numbers = #tpu.dot_dimension_numbers<[1], [0], [0], [1], [0, 0, 1, 1], [], []>} : vector<16x32xf32>, vector<32x32xf32>, vector<16x32xf32> -> vector<16x32xf32>
    %163 = vector.broadcast %148 : vector<1x32xf32> to vector<16x32xf32>
    %164 = arith.addf %162, %163 : vector<16x32xf32>
    %165 = tpu.concatenate %145, %145, %145, %145 in 0 : vector<16x32xf32>, vector<16x32xf32>, vector<16x32xf32>, vector<16x32xf32> -> vector<64x32xf32>
    %c1_70 = arith.constant 1 : index
    %c1_71 = arith.constant 1 : index
    %c0_72 = arith.constant 0 : index
    %c0_73 = arith.constant 0 : index
    %166 = vector.load %arg7[%c1_70, %c1_71, %c0_72, %c0_73] : memref<2x4x32x32xf32, #tpu.memory_space<vmem>>, vector<1x1x32x32xf32>
    %167 = vector.shape_cast %166 : vector<1x1x32x32xf32> to vector<32x32xf32>
    %cst_74 = arith.constant dense<0.000000e+00> : vector<64x32xf32>
    %168 = tpu.matmul %165, %167, %cst_74 {dimension_numbers = #tpu.dot_dimension_numbers<[1], [0], [0], [1], [0, 0, 1, 1], [], []>} : vector<64x32xf32>, vector<32x32xf32>, vector<64x32xf32> -> vector<64x32xf32>
    %169 = vector.broadcast %149 : vector<1x32xf32> to vector<64x32xf32>
    %170 = arith.addf %168, %169 : vector<64x32xf32>
    %171 = arith.mulf %170, %11 : vector<64x32xf32>
    %c1_75 = arith.constant 1 : index
    %c2_76 = arith.constant 2 : index
    %c0_77 = arith.constant 0 : index
    %c0_78 = arith.constant 0 : index
    %172 = vector.load %arg7[%c1_75, %c2_76, %c0_77, %c0_78] : memref<2x4x32x32xf32, #tpu.memory_space<vmem>>, vector<1x1x32x32xf32>
    %173 = vector.shape_cast %172 : vector<1x1x32x32xf32> to vector<32x32xf32>
    %cst_79 = arith.constant dense<0.000000e+00> : vector<64x32xf32>
    %174 = tpu.matmul %165, %173, %cst_79 {dimension_numbers = #tpu.dot_dimension_numbers<[1], [0], [0], [1], [0, 0, 1, 1], [], []>} : vector<64x32xf32>, vector<32x32xf32>, vector<64x32xf32> -> vector<64x32xf32>
    %175 = vector.broadcast %150 : vector<1x32xf32> to vector<64x32xf32>
    %176 = arith.addf %174, %175 : vector<64x32xf32>
    %177 = arith.mulf %176, %11 : vector<64x32xf32>
    %cst_80 = arith.constant dense<0.000000e+00> : vector<16x64xf32>
    %178 = tpu.matmul %164, %171, %cst_80 {dimension_numbers = #tpu.dot_dimension_numbers<[1], [1], [0], [0], [0, 0, 1, 0], [], []>} : vector<16x32xf32>, vector<64x32xf32>, vector<16x64xf32> -> vector<16x64xf32>
    %179 = arith.addf %178, %12 : vector<16x64xf32>
    %cst_81 = arith.constant dense<0xFF800000> : vector<16xf32>
    %180 = vector.multi_reduction <maximumf>, %179, %cst_81 [1] : vector<16x64xf32> to vector<16xf32>
    %181 = vector.shape_cast %180 : vector<16xf32> to vector<16x1xf32>
    %182 = vector.broadcast %181 : vector<16x1xf32> to vector<16x64xf32>
    %183 = arith.subf %179, %182 : vector<16x64xf32>
    %184 = math.exp %183 : vector<16x64xf32>
    %cst_82 = arith.constant dense<0.000000e+00> : vector<16x32xf32>
    %185 = tpu.matmul %184, %11, %cst_82 {dimension_numbers = #tpu.dot_dimension_numbers<[1], [0], [0], [1], [0, 0, 1, 1], [], []>} : vector<16x64xf32>, vector<64x32xf32>, vector<16x32xf32> -> vector<16x32xf32>
    %cst_83 = arith.constant dense<0.000000e+00> : vector<16x32xf32>
    %186 = tpu.matmul %184, %177, %cst_83 {dimension_numbers = #tpu.dot_dimension_numbers<[1], [0], [0], [1], [0, 0, 1, 1], [], []>} : vector<16x64xf32>, vector<64x32xf32>, vector<16x32xf32> -> vector<16x32xf32>
    %187 = arith.divf %186, %185 : vector<16x32xf32>
    %c1_84 = arith.constant 1 : index
    %c3_85 = arith.constant 3 : index
    %c0_86 = arith.constant 0 : index
    %c0_87 = arith.constant 0 : index
    %188 = vector.load %arg7[%c1_84, %c3_85, %c0_86, %c0_87] : memref<2x4x32x32xf32, #tpu.memory_space<vmem>>, vector<1x1x32x32xf32>
    %189 = vector.shape_cast %188 : vector<1x1x32x32xf32> to vector<32x32xf32>
    %cst_88 = arith.constant dense<0.000000e+00> : vector<16x32xf32>
    %190 = tpu.matmul %187, %189, %cst_88 {dimension_numbers = #tpu.dot_dimension_numbers<[1], [0], [0], [1], [0, 0, 1, 1], [], []>} : vector<16x32xf32>, vector<32x32xf32>, vector<16x32xf32> -> vector<16x32xf32>
    %191 = vector.broadcast %151 : vector<1x32xf32> to vector<16x32xf32>
    %192 = arith.addf %190, %191 : vector<16x32xf32>
    %193 = arith.addf %145, %192 : vector<16x32xf32>
    %cst_89 = arith.constant dense<0.000000e+00> : vector<16xf32>
    %194 = vector.multi_reduction <add>, %193, %cst_89 [1] : vector<16x32xf32> to vector<16xf32>
    %195 = vector.shape_cast %194 : vector<16xf32> to vector<16x1xf32>
    %cst_90 = arith.constant 3.200000e+01 : f32
    %196 = vector.broadcast %cst_90 : f32 to vector<16x1xf32>
    %197 = arith.divf %195, %196 : vector<16x1xf32>
    %198 = vector.broadcast %197 : vector<16x1xf32> to vector<16x32xf32>
    %199 = arith.subf %193, %198 : vector<16x32xf32>
    %200 = arith.mulf %199, %199 : vector<16x32xf32>
    %cst_91 = arith.constant dense<0.000000e+00> : vector<16xf32>
    %201 = vector.multi_reduction <add>, %200, %cst_91 [1] : vector<16x32xf32> to vector<16xf32>
    %202 = vector.shape_cast %201 : vector<16xf32> to vector<16x1xf32>
    %cst_92 = arith.constant 3.200000e+01 : f32
    %203 = vector.broadcast %cst_92 : f32 to vector<16x1xf32>
    %204 = arith.divf %202, %203 : vector<16x1xf32>
    %205 = vector.broadcast %197 : vector<16x1xf32> to vector<16x32xf32>
    %206 = arith.subf %193, %205 : vector<16x32xf32>
    %cst_93 = arith.constant 9.99999974E-6 : f32
    %207 = vector.broadcast %cst_93 : f32 to vector<16x1xf32>
    %208 = arith.addf %204, %207 : vector<16x1xf32>
    %209 = math.rsqrt %208 : vector<16x1xf32>
    %210 = vector.broadcast %209 : vector<16x1xf32> to vector<16x32xf32>
    %211 = arith.mulf %206, %210 : vector<16x32xf32>
    %212 = vector.broadcast %153 : vector<1x32xf32> to vector<16x32xf32>
    %213 = arith.mulf %211, %212 : vector<16x32xf32>
    %214 = vector.broadcast %154 : vector<1x32xf32> to vector<16x32xf32>
    %215 = arith.addf %213, %214 : vector<16x32xf32>
    %216 = vector.broadcast %152 : vector<1x32xf32> to vector<16x32xf32>
    %217 = arith.addf %215, %216 : vector<16x32xf32>
    %cst_94 = arith.constant dense<0.000000e+00> : vector<16xf32>
    %218 = vector.multi_reduction <add>, %217, %cst_94 [1] : vector<16x32xf32> to vector<16xf32>
    %219 = vector.shape_cast %218 : vector<16xf32> to vector<16x1xf32>
    %cst_95 = arith.constant 3.200000e+01 : f32
    %220 = vector.broadcast %cst_95 : f32 to vector<16x1xf32>
    %221 = arith.divf %219, %220 : vector<16x1xf32>
    %222 = vector.broadcast %221 : vector<16x1xf32> to vector<16x32xf32>
    %223 = arith.subf %217, %222 : vector<16x32xf32>
    %224 = arith.mulf %223, %223 : vector<16x32xf32>
    %cst_96 = arith.constant dense<0.000000e+00> : vector<16xf32>
    %225 = vector.multi_reduction <add>, %224, %cst_96 [1] : vector<16x32xf32> to vector<16xf32>
    %226 = vector.shape_cast %225 : vector<16xf32> to vector<16x1xf32>
    %cst_97 = arith.constant 3.200000e+01 : f32
    %227 = vector.broadcast %cst_97 : f32 to vector<16x1xf32>
    %228 = arith.divf %226, %227 : vector<16x1xf32>
    %229 = vector.broadcast %221 : vector<16x1xf32> to vector<16x32xf32>
    %230 = arith.subf %217, %229 : vector<16x32xf32>
    %cst_98 = arith.constant 9.99999974E-6 : f32
    %231 = vector.broadcast %cst_98 : f32 to vector<16x1xf32>
    %232 = arith.addf %228, %231 : vector<16x1xf32>
    %233 = math.rsqrt %232 : vector<16x1xf32>
    %234 = vector.broadcast %233 : vector<16x1xf32> to vector<16x32xf32>
    %235 = arith.mulf %230, %234 : vector<16x32xf32>
    %236 = vector.broadcast %155 : vector<1x32xf32> to vector<16x32xf32>
    %237 = arith.mulf %235, %236 : vector<16x32xf32>
    %238 = vector.broadcast %156 : vector<1x32xf32> to vector<16x32xf32>
    %239 = arith.addf %237, %238 : vector<16x32xf32>
    %240 = arith.truncf %239 : vector<16x32xf32> to vector<16x32xbf16>
    %c1_99 = arith.constant 1 : index
    %c0_100 = arith.constant 0 : index
    %c0_101 = arith.constant 0 : index
    %c0_102 = arith.constant 0 : index
    %241 = vector.load %arg8[%c1_99, %c0_100, %c0_101, %c0_102] : memref<2x2x32x2048xbf16, #tpu.memory_space<vmem>>, vector<1x1x32x2048xbf16>
    %242 = vector.shape_cast %241 : vector<1x1x32x2048xbf16> to vector<32x2048xbf16>
    %cst_103 = arith.constant dense<0.000000e+00> : vector<16x2048xf32>
    %243 = tpu.matmul %240, %242, %cst_103 {dimension_numbers = #tpu.dot_dimension_numbers<[1], [0], [0], [1], [0, 0, 1, 1], [], []>} : vector<16x32xbf16>, vector<32x2048xbf16>, vector<16x2048xf32> -> vector<16x2048xf32>
    %c1_104 = arith.constant 1 : index
    %c0_105 = arith.constant 0 : index
    %c0_106 = arith.constant 0 : index
    %244 = vector.load %arg9[%c1_104, %c0_105, %c0_106] : memref<2x1x2048xf32, #tpu.memory_space<vmem>>, vector<1x1x2048xf32>
    %245 = vector.shape_cast %244 : vector<1x1x2048xf32> to vector<1x2048xf32>
    %246 = vector.broadcast %245 : vector<1x2048xf32> to vector<16x2048xf32>
    %247 = arith.addf %243, %246 : vector<16x2048xf32>
    %cst_107 = arith.constant 0.000000e+00 : f32
    %248 = vector.broadcast %cst_107 : f32 to vector<16x2048xf32>
    %249 = arith.maximumf %247, %248 : vector<16x2048xf32>
    %250 = arith.truncf %249 : vector<16x2048xf32> to vector<16x2048xbf16>
    %c1_108 = arith.constant 1 : index
    %c1_109 = arith.constant 1 : index
    %c0_110 = arith.constant 0 : index
    %c0_111 = arith.constant 0 : index
    %251 = vector.load %arg8[%c1_108, %c1_109, %c0_110, %c0_111] : memref<2x2x32x2048xbf16, #tpu.memory_space<vmem>>, vector<1x1x32x2048xbf16>
    %252 = vector.shape_cast %251 : vector<1x1x32x2048xbf16> to vector<32x2048xbf16>
    %cst_112 = arith.constant dense<0.000000e+00> : vector<16x32xf32>
    %253 = tpu.matmul %250, %252, %cst_112 {dimension_numbers = #tpu.dot_dimension_numbers<[1], [1], [0], [0], [0, 0, 1, 0], [], []>} : vector<16x2048xbf16>, vector<32x2048xbf16>, vector<16x32xf32> -> vector<16x32xf32>
    %254 = vector.broadcast %159 : vector<1x32xf32> to vector<16x32xf32>
    %255 = arith.addf %253, %254 : vector<16x32xf32>
    %256 = arith.addf %239, %255 : vector<16x32xf32>
    %cst_113 = arith.constant dense<0.000000e+00> : vector<16xf32>
    %257 = vector.multi_reduction <add>, %256, %cst_113 [1] : vector<16x32xf32> to vector<16xf32>
    %258 = vector.shape_cast %257 : vector<16xf32> to vector<16x1xf32>
    %cst_114 = arith.constant 3.200000e+01 : f32
    %259 = vector.broadcast %cst_114 : f32 to vector<16x1xf32>
    %260 = arith.divf %258, %259 : vector<16x1xf32>
    %261 = vector.broadcast %260 : vector<16x1xf32> to vector<16x32xf32>
    %262 = arith.subf %256, %261 : vector<16x32xf32>
    %263 = arith.mulf %262, %262 : vector<16x32xf32>
    %cst_115 = arith.constant dense<0.000000e+00> : vector<16xf32>
    %264 = vector.multi_reduction <add>, %263, %cst_115 [1] : vector<16x32xf32> to vector<16xf32>
    %265 = vector.shape_cast %264 : vector<16xf32> to vector<16x1xf32>
    %cst_116 = arith.constant 3.200000e+01 : f32
    %266 = vector.broadcast %cst_116 : f32 to vector<16x1xf32>
    %267 = arith.divf %265, %266 : vector<16x1xf32>
    %268 = vector.broadcast %260 : vector<16x1xf32> to vector<16x32xf32>
    %269 = arith.subf %256, %268 : vector<16x32xf32>
    %cst_117 = arith.constant 9.99999974E-6 : f32
    %270 = vector.broadcast %cst_117 : f32 to vector<16x1xf32>
    %271 = arith.addf %267, %270 : vector<16x1xf32>
    %272 = math.rsqrt %271 : vector<16x1xf32>
    %273 = vector.broadcast %272 : vector<16x1xf32> to vector<16x32xf32>
    %274 = arith.mulf %269, %273 : vector<16x32xf32>
    %275 = vector.broadcast %157 : vector<1x32xf32> to vector<16x32xf32>
    %276 = arith.mulf %274, %275 : vector<16x32xf32>
    %277 = vector.broadcast %158 : vector<1x32xf32> to vector<16x32xf32>
    %278 = arith.addf %276, %277 : vector<16x32xf32>
    %c0_118 = arith.constant 0 : index
    %c0_119 = arith.constant 0 : index
    %279 = vector.load %arg3[%c0_118, %c0_119] : memref<32x64xf32, #tpu.memory_space<vmem>>, vector<32x64xf32>
    %cst_120 = arith.constant dense<0.000000e+00> : vector<16x64xf32>
    %280 = tpu.matmul %278, %279, %cst_120 {dimension_numbers = #tpu.dot_dimension_numbers<[1], [0], [0], [1], [0, 0, 1, 1], [], []>} : vector<16x32xf32>, vector<32x64xf32>, vector<16x64xf32> -> vector<16x64xf32>
    %c0_121 = arith.constant 0 : index
    %c0_122 = arith.constant 0 : index
    %281 = vector.load %arg4[%c0_121, %c0_122] : memref<1x64xf32, #tpu.memory_space<vmem>>, vector<1x64xf32>
    %282 = vector.broadcast %281 : vector<1x64xf32> to vector<16x64xf32>
    %283 = arith.addf %280, %282 : vector<16x64xf32>
    %c0_123 = arith.constant 0 : index
    %c0_124 = arith.constant 0 : index
    %284 = vector.load %arg11[%c0_123, %c0_124] : memref<16x64xf32, #tpu.memory_space<vmem>>, vector<16x64xf32>
    tpu.vector_store %arg11[%c0_123, %c0_124], %283 {strides = array<i32>} : memref<16x64xf32, #tpu.memory_space<vmem>>, vector<16x64xf32>,
    return
  }
}

</mosaic_0001>

<llo_original>
// kernel: gpt_forward.1
$region0: #{gpt_forward.1}
  #allocation0 [shape = 'u32[]', space=smem, size = 0x4, offset = 0x4, fixed_abs, tag = 'smem constant byte address 0x4 - core index']
  #allocation1 [shape = 'u32[144,128]{1,0:T(1,128)}', space=vmem, size = 0x12000, scoped, tag = 'internal scratch']
  %s0 = inlined_call_operand.vmem [shape: s32[16,1], index: 0, kind: input, shape index: {}]
  %s1 = inlined_call_operand.vmem [shape: f32[64,32], index: 1, kind: input, shape index: {}]
  %s2 = inlined_call_operand.vmem [shape: f32[16,32], index: 2, kind: input, shape index: {}]
  %s3 = inlined_call_operand.vmem [shape: f32[32,64], index: 3, kind: input, shape index: {}]
  %s4 = inlined_call_operand.vmem [shape: f32[1,64], index: 4, kind: input, shape index: {}]
  %s5 = inlined_call_operand.vmem [shape: f32[64,32], index: 5, kind: input, shape index: {}]
  %s6 = inlined_call_operand.vmem [shape: f32[16,64], index: 6, kind: input, shape index: {}]
  %s7 = inlined_call_operand.vmem [shape: f32[2,4,32,32], index: 7, kind: input, shape index: {}]
  %s8 = inlined_call_operand.hbm [shape: bf16[2,2,32,2048], index: 8, kind: input, shape index: {}]
  %s9 = inlined_call_operand.vmem [shape: f32[2,1,2048], index: 9, kind: input, shape index: {}]
  %s10 = inlined_call_operand.vmem [shape: f32[2,12,32], index: 10, kind: input, shape index: {}]
  %s11 = inlined_call_operand.hbm [shape: f32[16,64], index: 11, kind: output, shape index: {}]
  %s12 = sld [smem:[#allocation0]]
  $region58: #{gpt_forward.1} parent=0
    _
  %s14 = ssub.s32 1, %s12
  %s15 = scalar_select 0, %s14, %s12
  $region1: #{gpt_forward.1} parent=0
    #allocation2 [shape = 'u8[524288]{0}', space=vmem, size = 0x80000, scoped, tag = 'input window, operand 8, single buffered']
    #allocation3 [shape = 's32[1]{0}', space=sflag, size = 0x4, scoped, tag = 'scoped memory for gpt_forward.1']
    #allocation4 [shape = 's32[1]{0}', space=sflag, size = 0x4, scoped, tag = 'scoped memory for gpt_forward.1']
    #allocation5 [shape = 'u8[8192]{0}', space=vmem, size = 0x2000, scoped, tag = 'output window, operand 0, single buffered']
    %16 = vsyncpa [#allocation3], 0
    %17 = vsyncpa [#allocation4], 0
    // Predicated region
    $region2: #{gpt_forward.1} parent=1 // pred_check
      _
    $region3: #{gpt_forward.1} parent=1 // pred_check_branch
      %19 = sbr.rel (0) target = $region5
    $region4: #{gpt_forward.1} parent=1 // pred_region
      _
    $region5: #{gpt_forward.1} parent=1 // pred_fallthru
      _
    // Predicated region
    $region6: #{gpt_forward.1} parent=1 // pred_check
      _
    $region7: #{gpt_forward.1} parent=1 // pred_check_branch
      %21 = sbr.rel (0) target = $region9
    $region8: #{gpt_forward.1} parent=1 // pred_region
      _
    $region9: #{gpt_forward.1} parent=1 // pred_fallthru
      _
    // Predicated region
    $region10: #{gpt_forward.1} parent=1 // pred_check
      _
    $region11: #{gpt_forward.1} parent=1 // pred_check_branch
      %23 = sbr.rel (0) target = $region13
    $region12: #{gpt_forward.1} parent=1 // pred_region
      _
    $region13: #{gpt_forward.1} parent=1 // pred_fallthru
      _
    // Predicated region
    $region14: #{gpt_forward.1} parent=1 // pred_check
      _
    $region15: #{gpt_forward.1} parent=1 // pred_check_branch
      %25 = sbr.rel (0) target = $region17
    $region16: #{gpt_forward.1} parent=1 // pred_region
      _
    $region17: #{gpt_forward.1} parent=1 // pred_fallthru
      _
    // Predicated region
    $region18: #{gpt_forward.1} parent=1 // pred_check
      _
    $region19: #{gpt_forward.1} parent=1 // pred_check_branch
      %27 = sbr.rel (0) target = $region21
    $region20: #{gpt_forward.1} parent=1 // pred_region
      _
    $region21: #{gpt_forward.1} parent=1 // pred_fallthru
      _
    // Predicated region
    $region22: #{gpt_forward.1} parent=1 // pred_check
      _
    $region23: #{gpt_forward.1} parent=1 // pred_check_branch
      %29 = sbr.rel (0) target = $region25
    $region24: #{gpt_forward.1} parent=1 // pred_region
      _
    $region25: #{gpt_forward.1} parent=1 // pred_fallthru
      _
    // Predicated region
    $region26: #{gpt_forward.1} parent=1 // pred_check
      _
    $region27: #{gpt_forward.1} parent=1 // pred_check_branch
      %31 = sbr.rel (0) target = $region29
    $region28: #{gpt_forward.1} parent=1 // pred_region
      _
    $region29: #{gpt_forward.1} parent=1 // pred_fallthru
      _
    // Predicated region
    $region30: #{gpt_forward.1} parent=1 // pred_check
      _
    $region31: #{gpt_forward.1} parent=1 // pred_check_branch
      %33 = sbr.rel (0) target = $region33
    $region32: #{gpt_forward.1} parent=1 // pred_region
      _
    $region33: #{gpt_forward.1} parent=1 // pred_fallthru
      _
    // Predicated region
    $region34: #{gpt_forward.1} parent=1 // pred_check
      _
    $region35: #{gpt_forward.1} parent=1 // pred_check_branch
      %35 = sbr.rel (0) target = $region37
    $region36: #{gpt_forward.1} parent=1 // pred_region
      %s37 = ssub.s32 16384, 16384
      %38 = vsyncadd [#allocation3], %s37
      %s39 = sshll.u32 [#allocation2], 4
      %s40 = int_to_ptr.vmem [resolvable:$true] %s39
      %45 = dma.hbm_to_vmem [thread:$0]  %s8, 16384, %s40, [#allocation3], 1024, 1024, 64
    $region37: #{gpt_forward.1} parent=1 // pred_fallthru
      _
    // Predicated region
    $region38: #{gpt_forward.1} parent=1 // pred_check
      _
    $region39: #{gpt_forward.1} parent=1 // pred_check_branch
      %47 = sbr.rel (0) target = $region41
    $region40: #{gpt_forward.1} parent=1 // pred_region
      _
    $region41: #{gpt_forward.1} parent=1 // pred_fallthru
      _
    // Predicated region
    $region42: #{gpt_forward.1} parent=1 // pred_check
      _
    $region43: #{gpt_forward.1} parent=1 // pred_check_branch
      %49 = sbr.rel (0) target = $region45
    $region44: #{gpt_forward.1} parent=1 // pred_region
      _
    $region45: #{gpt_forward.1} parent=1 // pred_fallthru
      _
    // Predicated region
    $region46: #{gpt_forward.1} parent=1 // pred_check
      _
    $region47: #{gpt_forward.1} parent=1 // pred_check_branch
      %51 = sbr.rel (0) target = $region49
    $region48: #{gpt_forward.1} parent=1 // pred_region
      %52 = dma.done [#allocation3], 16384
    $region49: #{gpt_forward.1} parent=1 // pred_fallthru
      _
    %v54 = vld [vmem:[%s0] sm:$0xff]
    %v55 = vld [vmem:[%s0 + $0x8] sm:$0xff]
    %v56 = vlaneseq
    %v57 = vand.u32 %v56, 127
    %58 = vset.pattern.permute.xlu0 0
    %59 = vperm.xlu0 %58, %v54
    %v60 = vpop.permute.xlu0 %59
    %61 = vset.pattern.permute.xlu0 0
    %62 = vperm.xlu0 %61, %v55
    %v63 = vpop.permute.xlu0 %62
    %vm64 = vcmp.eq.s32.totalorder %v57, %v60
    %vm65 = vcmp.eq.s32.totalorder %v57, %v63
    %v66 = vsel %vm64, 1, 0
    %v67 = vsel %vm65, 1, 0
    %v68 = vcvt.s32.f32 %v66
    %v69 = vcvt.s32.f32 %v67
    %v70 = vld [vmem:[%s1] sm:$0xff]
    %v71 = vld [vmem:[%s1 + $0x8] sm:$0xff]
    %v72 = vld [vmem:[%s1 + $0x10] sm:$0xff]
    %v73 = vld [vmem:[%s1 + $0x18] sm:$0xff]
    %v74 = vld [vmem:[%s1 + $0x20] sm:$0xff]
    %v75 = vld [vmem:[%s1 + $0x28] sm:$0xff]
    %v76 = vld [vmem:[%s1 + $0x30] sm:$0xff]
    %v77 = vld [vmem:[%s1 + $0x38] sm:$0xff]
    %v78 = vld [vmem:[%s2] sm:$0xff]
    %vm79 = vcmask 523264
    %v81 = vsel %vm79, %v68, 0
    %v84 = vsel %vm79, %v69, 0
    %86 = vmatprep.subr.mxu0 0.0
    %87 = vmatpush1.msra.mxu0 %v70
    %88 = vmatprep.subr.mxu0 0.0
    %89 = vmatpush1.msra.mxu0 %v71
    %90 = vmatprep.subr.mxu0 0.0
    %91 = vmatpush1.msra.mxu0 %v72
    %92 = vmatprep.subr.mxu0 0.0
    %93 = vmatpush1.msra.mxu0 %v73
    %94 = vmatprep.subr.mxu0 0.0
    %95 = vmatpush1.msra.mxu0 %v74
    %96 = vmatprep.subr.mxu0 0.0
    %97 = vmatpush1.msra.mxu0 %v75
    %98 = vmatprep.subr.mxu0 0.0
    %99 = vmatpush1.msra.mxu0 %v76
    %100 = vmatprep.subr.mxu0 0.0
    %101 = vmatpush1.msra.mxu0 %v77
    %102 = vmatprep.subr.mxu0 0.0
    %103 = vmatpush1.msra.mxu0 0.0
    %104 = vmatprep.subr.mxu0 0.0
    %105 = vmatpush1.msra.mxu0 0.0
    %106 = vmatprep.subr.mxu0 0.0
    %107 = vmatpush1.msra.mxu0 0.0
    %108 = vmatprep.subr.mxu0 0.0
    %109 = vmatpush1.msra.mxu0 0.0
    %110 = vmatprep.subr.mxu0 0.0
    %111 = vmatpush1.msra.mxu0 0.0
    %112 = vmatprep.subr.mxu0 0.0
    %113 = vmatpush1.msra.mxu0 0.0
    %114 = vmatprep.subr.mxu0 0.0
    %115 = vmatpush1.msra.mxu0 0.0
    %116 = vmatprep.subr.mxu0 0.0
    %117 = vmatpush1.msra.mxu0 0.0
    %118 = vmatprep.subr.mxu0 0.0
    %119 = vmatpush1.msra.mxu0 0.0
    %120 = vmatprep.subr.mxu0 0.0
    %121 = vmatpush1.msra.mxu0 0.0
    %122 = vmatprep.subr.mxu0 0.0
    %123 = vmatpush1.msra.mxu0 0.0
    %124 = vmatprep.subr.mxu0 0.0
    %125 = vmatpush1.msra.mxu0 0.0
    %126 = vmatprep.subr.mxu0 0.0
    %127 = vmatpush1.msra.mxu0 0.0
    %128 = vmatprep.subr.mxu0 0.0
    %129 = vmatpush1.msra.mxu0 0.0
    %130 = vmatprep.subr.mxu0 0.0
    %131 = vmatpush1.msra.mxu0 0.0
    %132 = vmatprep.subr.mxu0 0.0
    %133 = vmatpush1.msra.mxu0 0.0
    %134 = vmatprep.subr.mxu0 0.0
    %135 = vmatpush1.msra.mxu0 0.0
    %136 = vmatprep.subr.mxu0 0.0
    %137 = vmatpush1.msra.mxu0 0.0
    %138 = vmatprep.subr.mxu0 0.0
    %139 = vmatpush1.msra.mxu0 0.0
    %140 = vmatprep.subr.mxu0 0.0
    %141 = vmatpush1.msra.mxu0 0.0
    %142 = vmatprep.subr.mxu0 0.0
    %143 = vmatpush1.msra.mxu0 0.0
    %144 = vmatprep.subr.mxu0 0.0
    %145 = vmatpush1.msra.mxu0 0.0
    %146 = vmatprep.subr.mxu0 0.0
    %147 = vmatpush1.msra.mxu0 0.0
    %148 = vmatprep.subr.mxu0 0.0
    %149 = vmatpush1.msra.mxu0 0.0
    %150 = vmatprep.mubr.f32.mxu0 0.0
    %151 = vmatmul.mubr.f32.gmra.mrb[0].mxu0 %v81
    %v152 = vpop.f32.mrb[0].mxu0
    %v153 = vadd.f32 %v78, %v152
    %v154 = vpop.f32.mrb[0].mxu0
    %155 = vmatprep.mubr.f32.mxu0 0.0
    %156 = vmatmul.mubr.f32.gmra.mrb[0].mxu0 %v84
    %v157 = vpop.f32.mrb[0].mxu0
    %v158 = vadd.f32 %v78, %v157
    %v159 = vpop.f32.mrb[0].mxu0
    %160 = vdwg.mxu0
    %v161 = vld [vmem:[%s5] sm:$0xff]
    %v162 = vld [vmem:[%s5 + $0x8] sm:$0xff]
    %v163 = vld [vmem:[%s5 + $0x10] sm:$0xff]
    %v164 = vld [vmem:[%s5 + $0x18] sm:$0xff]
    %v165 = vld [vmem:[%s5 + $0x20] sm:$0xff]
    %v166 = vld [vmem:[%s5 + $0x28] sm:$0xff]
    %v167 = vld [vmem:[%s5 + $0x30] sm:$0xff]
    %v168 = vld [vmem:[%s5 + $0x38] sm:$0xff]
    %v169 = vld [vmem:[%s6] sm:$0xff]
    %v170 = vld [vmem:[%s6 + $0x8] sm:$0xff]
    %v171 = vld [vmem:[%s10] sm:$0xff]
    %v172 = vld [vmem:[%s10 + $0x8] sm:$0xf]
    %v173 = vld [vmem:[%s7] sm:$0xff]
    %v174 = vld [vmem:[%s7 + $0x8] sm:$0xff]
    %v175 = vld [vmem:[%s7 + $0x10] sm:$0xff]
    %v176 = vld [vmem:[%s7 + $0x18] sm:$0xff]
    %v177 = vlaneseq
    %v178 = vshrl.u32 %v177, 7
    %v179 = vsub.s32 0, %v178
    %v180 = vrot.slane %v171, %v179
    %vm181 = vcmask 261120
    %v183 = vsel %vm181, %v153, 0
    %v186 = vsel %vm181, %v158, 0
    %188 = vmatprep.subr.mxu0 0.0
    %189 = vmatpush1.msra.mxu0 %v173
    %190 = vmatprep.subr.mxu0 0.0
    %191 = vmatpush1.msra.mxu0 %v174
    %192 = vmatprep.subr.mxu0 0.0
    %193 = vmatpush1.msra.mxu0 %v175
    %194 = vmatprep.subr.mxu0 0.0
    %195 = vmatpush1.msra.mxu0 %v176
    %196 = vmatprep.subr.mxu0 0.0
    %197 = vmatpush1.msra.mxu0 0.0
    %198 = vmatprep.subr.mxu0 0.0
    %199 = vmatpush1.msra.mxu0 0.0
    %200 = vmatprep.subr.mxu0 0.0
    %201 = vmatpush1.msra.mxu0 0.0
    %202 = vmatprep.subr.mxu0 0.0
    %203 = vmatpush1.msra.mxu0 0.0
    %204 = vmatprep.subr.mxu0 0.0
    %205 = vmatpush1.msra.mxu0 0.0
    %206 = vmatprep.subr.mxu0 0.0
    %207 = vmatpush1.msra.mxu0 0.0
    %208 = vmatprep.subr.mxu0 0.0
    %209 = vmatpush1.msra.mxu0 0.0
    %210 = vmatprep.subr.mxu0 0.0
    %211 = vmatpush1.msra.mxu0 0.0
    %212 = vmatprep.subr.mxu0 0.0
    %213 = vmatpush1.msra.mxu0 0.0
    %214 = vmatprep.subr.mxu0 0.0
    %215 = vmatpush1.msra.mxu0 0.0
    %216 = vmatprep.subr.mxu0 0.0
    %217 = vmatpush1.msra.mxu0 0.0
    %218 = vmatprep.subr.mxu0 0.0
    %219 = vmatpush1.msra.mxu0 0.0
    %220 = vmatprep.subr.mxu0 0.0
    %221 = vmatpush1.msra.mxu0 0.0
    %222 = vmatprep.subr.mxu0 0.0
    %223 = vmatpush1.msra.mxu0 0.0
    %224 = vmatprep.subr.mxu0 0.0
    %225 = vmatpush1.msra.mxu0 0.0
    %226 = vmatprep.subr.mxu0 0.0
    %227 = vmatpush1.msra.mxu0 0.0
    %228 = vmatprep.subr.mxu0 0.0
    %229 = vmatpush1.msra.mxu0 0.0
    %230 = vmatprep.subr.mxu0 0.0
    %231 = vmatpush1.msra.mxu0 0.0
    %232 = vmatprep.subr.mxu0 0.0
    %233 = vmatpush1.msra.mxu0 0.0
    %234 = vmatprep.subr.mxu0 0.0
    %235 = vmatpush1.msra.mxu0 0.0
    %236 = vmatprep.subr.mxu0 0.0
    %237 = vmatpush1.msra.mxu0 0.0
    %238 = vmatprep.subr.mxu0 0.0
    %239 = vmatpush1.msra.mxu0 0.0
    %240 = vmatprep.subr.mxu0 0.0
    %241 = vmatpush1.msra.mxu0 0.0
    %242 = vmatprep.subr.mxu0 0.0
    %243 = vmatpush1.msra.mxu0 0.0
    %244 = vmatprep.subr.mxu0 0.0
    %245 = vmatpush1.msra.mxu0 0.0
    %246 = vmatprep.subr.mxu0 0.0
    %247 = vmatpush1.msra.mxu0 0.0
    %248 = vmatprep.subr.mxu0 0.0
    %249 = vmatpush1.msra.mxu0 0.0
    %250 = vmatprep.subr.mxu0 0.0
    %251 = vmatpush1.msra.mxu0 0.0
    %252 = vmatprep.mubr.f32.mxu0 0.0
    %253 = vmatmul.mubr.f32.gmra.mrb[0].mxu0 %v183
    %v254 = vpop.f32.mrb[0].mxu0
    %v255 = vadd.f32 %v180, %v254
    %v256 = vpop.f32.mrb[0].mxu0
    %257 = vmatprep.mubr.f32.mxu0 0.0
    %258 = vmatmul.mubr.f32.gmra.mrb[0].mxu0 %v186
    %v259 = vpop.f32.mrb[0].mxu0
    %v260 = vadd.f32 %v180, %v259
    %v261 = vpop.f32.mrb[0].mxu0
    %262 = vdwg.mxu0
    %s263 = scalar_lea.vmem %s7, 32
    %v264 = vld [vmem:[%s263] sm:$0xff]
    %v265 = vld [vmem:[%s263 + $0x8] sm:$0xff]
    %v266 = vld [vmem:[%s263 + $0x10] sm:$0xff]
    %v267 = vld [vmem:[%s263 + $0x18] sm:$0xff]
    %v268 = vlaneseq
    %v269 = vshrl.u32 %v268, 7
    %v270 = vsub.s32 1, %v269
    %v271 = vrot.slane %v171, %v270
    %272 = vmatprep.subr.mxu0 0.0
    %273 = vmatpush1.msra.mxu0 %v264
    %274 = vmatprep.subr.mxu0 0.0
    %275 = vmatpush1.msra.mxu0 %v265
    %276 = vmatprep.subr.mxu0 0.0
    %277 = vmatpush1.msra.mxu0 %v266
    %278 = vmatprep.subr.mxu0 0.0
    %279 = vmatpush1.msra.mxu0 %v267
    %280 = vmatprep.subr.mxu0 0.0
    %281 = vmatpush1.msra.mxu0 0.0
    %282 = vmatprep.subr.mxu0 0.0
    %283 = vmatpush1.msra.mxu0 0.0
    %284 = vmatprep.subr.mxu0 0.0
    %285 = vmatpush1.msra.mxu0 0.0
    %286 = vmatprep.subr.mxu0 0.0
    %287 = vmatpush1.msra.mxu0 0.0
    %288 = vmatprep.subr.mxu0 0.0
    %289 = vmatpush1.msra.mxu0 0.0
    %290 = vmatprep.subr.mxu0 0.0
    %291 = vmatpush1.msra.mxu0 0.0
    %292 = vmatprep.subr.mxu0 0.0
    %293 = vmatpush1.msra.mxu0 0.0
    %294 = vmatprep.subr.mxu0 0.0
    %295 = vmatpush1.msra.mxu0 0.0
    %296 = vmatprep.subr.mxu0 0.0
    %297 = vmatpush1.msra.mxu0 0.0
    %298 = vmatprep.subr.mxu0 0.0
    %299 = vmatpush1.msra.mxu0 0.0
    %300 = vmatprep.subr.mxu0 0.0
    %301 = vmatpush1.msra.mxu0 0.0
    %302 = vmatprep.subr.mxu0 0.0
    %303 = vmatpush1.msra.mxu0 0.0
    %304 = vmatprep.subr.mxu0 0.0
    %305 = vmatpush1.msra.mxu0 0.0
    %306 = vmatprep.subr.mxu0 0.0
    %307 = vmatpush1.msra.mxu0 0.0
    %308 = vmatprep.subr.mxu0 0.0
    %309 = vmatpush1.msra.mxu0 0.0
    %310 = vmatprep.subr.mxu0 0.0
    %311 = vmatpush1.msra.mxu0 0.0
    %312 = vmatprep.subr.mxu0 0.0
    %313 = vmatpush1.msra.mxu0 0.0
    %314 = vmatprep.subr.mxu0 0.0
    %315 = vmatpush1.msra.mxu0 0.0
    %316 = vmatprep.subr.mxu0 0.0
    %317 = vmatpush1.msra.mxu0 0.0
    %318 = vmatprep.subr.mxu0 0.0
    %319 = vmatpush1.msra.mxu0 0.0
    %320 = vmatprep.subr.mxu0 0.0
    %321 = vmatpush1.msra.mxu0 0.0
    %322 = vmatprep.subr.mxu0 0.0
    %323 = vmatpush1.msra.mxu0 0.0
    %324 = vmatprep.subr.mxu0 0.0
    %325 = vmatpush1.msra.mxu0 0.0
    %326 = vmatprep.subr.mxu0 0.0
    %327 = vmatpush1.msra.mxu0 0.0
    %328 = vmatprep.subr.mxu0 0.0
    %329 = vmatpush1.msra.mxu0 0.0
    %330 = vmatprep.subr.mxu0 0.0
    %331 = vmatpush1.msra.mxu0 0.0
    %332 = vmatprep.subr.mxu0 0.0
    %333 = vmatpush1.msra.mxu0 0.0
    %334 = vmatprep.subr.mxu0 0.0
    %335 = vmatpush1.msra.mxu0 0.0
    %336 = vmatprep.mubr.f32.mxu0 0.0
    %337 = vmatmul.mubr.f32.gmra.mrb[0].mxu0 %v183
    %v338 = vpop.f32.mrb[0].mxu0
    %v339 = vadd.f32 %v271, %v338
    %v340 = vpop.f32.mrb[0].mxu0
    %341 = vmatprep.mubr.f32.mxu0 0.0
    %342 = vmatmul.mubr.f32.gmra.mrb[0].mxu0 %v186
    %v343 = vpop.f32.mrb[0].mxu0
    %v344 = vadd.f32 %v271, %v343
    %v345 = vpop.f32.mrb[0].mxu0
    %346 = vmatprep.mubr.f32.mxu0 0.0
    %347 = vmatmul.mubr.f32.gmra.mrb[0].mxu0 %v183
    %v348 = vpop.f32.mrb[0].mxu0
    %v349 = vadd.f32 %v271, %v348
    %v350 = vpop.f32.mrb[0].mxu0
    %351 = vmatprep.mubr.f32.mxu0 0.0
    %352 = vmatmul.mubr.f32.gmra.mrb[0].mxu0 %v186
    %v353 = vpop.f32.mrb[0].mxu0
    %v354 = vadd.f32 %v271, %v353
    %v355 = vpop.f32.mrb[0].mxu0
    %356 = vmatprep.mubr.f32.mxu0 0.0
    %357 = vmatmul.mubr.f32.gmra.mrb[0].mxu0 %v183
    %v358 = vpop.f32.mrb[0].mxu0
    %v359 = vadd.f32 %v271, %v358
    %v360 = vpop.f32.mrb[0].mxu0
    %361 = vmatprep.mubr.f32.mxu0 0.0
    %362 = vmatmul.mubr.f32.gmra.mrb[0].mxu0 %v186
    %v363 = vpop.f32.mrb[0].mxu0
    %v364 = vadd.f32 %v271, %v363
    %v365 = vpop.f32.mrb[0].mxu0
    %366 = vmatprep.mubr.f32.mxu0 0.0
    %367 = vmatmul.mubr.f32.gmra.mrb[0].mxu0 %v183
    %v368 = vpop.f32.mrb[0].mxu0
    %v369 = vadd.f32 %v271, %v368
    %v370 = vpop.f32.mrb[0].mxu0
    %371 = vmatprep.mubr.f32.mxu0 0.0
    %372 = vmatmul.mubr.f32.gmra.mrb[0].mxu0 %v186
    %v373 = vpop.f32.mrb[0].mxu0
    %v374 = vadd.f32 %v271, %v373
    %v375 = vpop.f32.mrb[0].mxu0
    %376 = vdwg.mxu0
    %v377 = vmul.f32 %v339, %v161
    %v378 = vmul.f32 %v344, %v162
    %v379 = vmul.f32 %v349, %v163
    %v380 = vmul.f32 %v354, %v164
    %v381 = vmul.f32 %v359, %v165
    %v382 = vmul.f32 %v364, %v166
    %v383 = vmul.f32 %v369, %v167
    %v384 = vmul.f32 %v374, %v168
    %s385 = scalar_lea.vmem %s7, 64
    %v386 = vld [vmem:[%s385] sm:$0xff]
    %v387 = vld [vmem:[%s385 + $0x8] sm:$0xff]
    %v388 = vld [vmem:[%s385 + $0x10] sm:$0xff]
    %v389 = vld [vmem:[%s385 + $0x18] sm:$0xff]
    %v390 = vlaneseq
    %v391 = vshrl.u32 %v390, 7
    %v392 = vsub.s32 2, %v391
    %v393 = vrot.slane %v171, %v392
    %394 = vmatprep.subr.mxu0 0.0
    %395 = vmatpush1.msra.mxu0 %v386
    %396 = vmatprep.subr.mxu0 0.0
    %397 = vmatpush1.msra.mxu0 %v387
    %398 = vmatprep.subr.mxu0 0.0
    %399 = vmatpush1.msra.mxu0 %v388
    %400 = vmatprep.subr.mxu0 0.0
    %401 = vmatpush1.msra.mxu0 %v389
    %402 = vmatprep.subr.mxu0 0.0
    %403 = vmatpush1.msra.mxu0 0.0
    %404 = vmatprep.subr.mxu0 0.0
    %405 = vmatpush1.msra.mxu0 0.0
    %406 = vmatprep.subr.mxu0 0.0
    %407 = vmatpush1.msra.mxu0 0.0
    %408 = vmatprep.subr.mxu0 0.0
    %409 = vmatpush1.msra.mxu0 0.0
    %410 = vmatprep.subr.mxu0 0.0
    %411 = vmatpush1.msra.mxu0 0.0
    %412 = vmatprep.subr.mxu0 0.0
    %413 = vmatpush1.msra.mxu0 0.0
    %414 = vmatprep.subr.mxu0 0.0
    %415 = vmatpush1.msra.mxu0 0.0
    %416 = vmatprep.subr.mxu0 0.0
    %417 = vmatpush1.msra.mxu0 0.0
    %418 = vmatprep.subr.mxu0 0.0
    %419 = vmatpush1.msra.mxu0 0.0
    %420 = vmatprep.subr.mxu0 0.0
    %421 = vmatpush1.msra.mxu0 0.0
    %422 = vmatprep.subr.mxu0 0.0
    %423 = vmatpush1.msra.mxu0 0.0
    %424 = vmatprep.subr.mxu0 0.0
    %425 = vmatpush1.msra.mxu0 0.0
    %426 = vmatprep.subr.mxu0 0.0
    %427 = vmatpush1.msra.mxu0 0.0
    %428 = vmatprep.subr.mxu0 0.0
    %429 = vmatpush1.msra.mxu0 0.0
    %430 = vmatprep.subr.mxu0 0.0
    %431 = vmatpush1.msra.mxu0 0.0
    %432 = vmatprep.subr.mxu0 0.0
    %433 = vmatpush1.msra.mxu0 0.0
    %434 = vmatprep.subr.mxu0 0.0
    %435 = vmatpush1.msra.mxu0 0.0
    %436 = vmatprep.subr.mxu0 0.0
    %437 = vmatpush1.msra.mxu0 0.0
    %438 = vmatprep.subr.mxu0 0.0
    %439 = vmatpush1.msra.mxu0 0.0
    %440 = vmatprep.subr.mxu0 0.0
    %441 = vmatpush1.msra.mxu0 0.0
    %442 = vmatprep.subr.mxu0 0.0
    %443 = vmatpush1.msra.mxu0 0.0
    %444 = vmatprep.subr.mxu0 0.0
    %445 = vmatpush1.msra.mxu0 0.0
    %446 = vmatprep.subr.mxu0 0.0
    %447 = vmatpush1.msra.mxu0 0.0
    %448 = vmatprep.subr.mxu0 0.0
    %449 = vmatpush1.msra.mxu0 0.0
    %450 = vmatprep.subr.mxu0 0.0
    %451 = vmatpush1.msra.mxu0 0.0
    %452 = vmatprep.subr.mxu0 0.0
    %453 = vmatpush1.msra.mxu0 0.0
    %454 = vmatprep.subr.mxu0 0.0
    %455 = vmatpush1.msra.mxu0 0.0
    %456 = vmatprep.subr.mxu0 0.0
    %457 = vmatpush1.msra.mxu0 0.0
    %458 = vmatprep.mubr.f32.mxu0 0.0
    %459 = vmatmul.mubr.f32.gmra.mrb[0].mxu0 %v183
    %v460 = vpop.f32.mrb[0].mxu0
    %v461 = vadd.f32 %v393, %v460
    %v462 = vpop.f32.mrb[0].mxu0
    %463 = vmatprep.mubr.f32.mxu0 0.0
    %464 = vmatmul.mubr.f32.gmra.mrb[0].mxu0 %v186
    %v465 = vpop.f32.mrb[0].mxu0
    %v466 = vadd.f32 %v393, %v465
    %v467 = vpop.f32.mrb[0].mxu0
    %468 = vmatprep.mubr.f32.mxu0 0.0
    %469 = vmatmul.mubr.f32.gmra.mrb[0].mxu0 %v183
    %v470 = vpop.f32.mrb[0].mxu0
    %v471 = vadd.f32 %v393, %v470
    %v472 = vpop.f32.mrb[0].mxu0
    %473 = vmatprep.mubr.f32.mxu0 0.0
    %474 = vmatmul.mubr.f32.gmra.mrb[0].mxu0 %v186
    %v475 = vpop.f32.mrb[0].mxu0
    %v476 = vadd.f32 %v393, %v475
    %v477 = vpop.f32.mrb[0].mxu0
    %478 = vmatprep.mubr.f32.mxu0 0.0
    %479 = vmatmul.mubr.f32.gmra.mrb[0].mxu0 %v183
    %v480 = vpop.f32.mrb[0].mxu0
    %v481 = vadd.f32 %v393, %v480
    %v482 = vpop.f32.mrb[0].mxu0
    %483 = vmatprep.mubr.f32.mxu0 0.0
    %484 = vmatmul.mubr.f32.gmra.mrb[0].mxu0 %v186
    %v485 = vpop.f32.mrb[0].mxu0
    %v486 = vadd.f32 %v393, %v485
    %v487 = vpop.f32.mrb[0].mxu0
    %488 = vmatprep.mubr.f32.mxu0 0.0
    %489 = vmatmul.mubr.f32.gmra.mrb[0].mxu0 %v183
    %v490 = vpop.f32.mrb[0].mxu0
    %v491 = vadd.f32 %v393, %v490
    %v492 = vpop.f32.mrb[0].mxu0
    %493 = vmatprep.mubr.f32.mxu0 0.0
    %494 = vmatmul.mubr.f32.gmra.mrb[0].mxu0 %v186
    %v495 = vpop.f32.mrb[0].mxu0
    %v496 = vadd.f32 %v393, %v495
    %v497 = vpop.f32.mrb[0].mxu0
    %498 = vdwg.mxu0
    %v499 = vmul.f32 %v461, %v161
    %v500 = vmul.f32 %v466, %v162
    %v501 = vmul.f32 %v471, %v163
    %v502 = vmul.f32 %v476, %v164
    %v503 = vmul.f32 %v481, %v165
    %v504 = vmul.f32 %v486, %v166
    %v505 = vmul.f32 %v491, %v167
    %v506 = vmul.f32 %v496, %v168
    %v508 = vsel %vm181, %v255, 0
    %v511 = vsel %vm181, %v260, 0
    %v514 = vsel %vm181, %v377, 0
    %v517 = vsel %vm181, %v378, 0
    %v520 = vsel %vm181, %v379, 0
    %v523 = vsel %vm181, %v380, 0
    %v526 = vsel %vm181, %v381, 0
    %v529 = vsel %vm181, %v382, 0
    %v532 = vsel %vm181, %v383, 0
    %v535 = vsel %vm181, %v384, 0
    %537 = vmatprep.subr.mxu0 0.0
    %538 = vmatpush1.xpose.msra.mxu0 %v514
    %539 = vmatprep.subr.mxu0 0.0
    %540 = vmatpush1.xpose.msra.mxu0 %v517
    %541 = vmatprep.subr.mxu0 0.0
    %542 = vmatpush1.xpose.msra.mxu0 %v520
    %543 = vmatprep.subr.mxu0 0.0
    %544 = vmatpush1.xpose.msra.mxu0 %v523
    %545 = vmatprep.subr.mxu0 0.0
    %546 = vmatpush1.xpose.msra.mxu0 %v526
    %547 = vmatprep.subr.mxu0 0.0
    %548 = vmatpush1.xpose.msra.mxu0 %v529
    %549 = vmatprep.subr.mxu0 0.0
    %550 = vmatpush1.xpose.msra.mxu0 %v532
    %551 = vmatprep.subr.mxu0 0.0
    %552 = vmatpush1.xpose.msra.mxu0 %v535
    %553 = vmatprep.subr.mxu0 0.0
    %554 = vmatpush1.xpose.msra.mxu0 0.0
    %555 = vmatprep.subr.mxu0 0.0
    %556 = vmatpush1.xpose.msra.mxu0 0.0
    %557 = vmatprep.subr.mxu0 0.0
    %558 = vmatpush1.xpose.msra.mxu0 0.0
    %559 = vmatprep.subr.mxu0 0.0
    %560 = vmatpush1.xpose.msra.mxu0 0.0
    %561 = vmatprep.subr.mxu0 0.0
    %562 = vmatpush1.xpose.msra.mxu0 0.0
    %563 = vmatprep.subr.mxu0 0.0
    %564 = vmatpush1.xpose.msra.mxu0 0.0
    %565 = vmatprep.subr.mxu0 0.0
    %566 = vmatpush1.xpose.msra.mxu0 0.0
    %567 = vmatprep.subr.mxu0 0.0
    %568 = vmatpush1.xpose.msra.mxu0 0.0
    %569 = vmatprep.subr.mxu0 0.0
    %570 = vmatpush1.xpose.msra.mxu0 0.0
    %571 = vmatprep.subr.mxu0 0.0
    %572 = vmatpush1.xpose.msra.mxu0 0.0
    %573 = vmatprep.subr.mxu0 0.0
    %574 = vmatpush1.xpose.msra.mxu0 0.0
    %575 = vmatprep.subr.mxu0 0.0
    %576 = vmatpush1.xpose.msra.mxu0 0.0
    %577 = vmatprep.subr.mxu0 0.0
    %578 = vmatpush1.xpose.msra.mxu0 0.0
    %579 = vmatprep.subr.mxu0 0.0
    %580 = vmatpush1.xpose.msra.mxu0 0.0
    %581 = vmatprep.subr.mxu0 0.0
    %582 = vmatpush1.xpose.msra.mxu0 0.0
    %583 = vmatprep.subr.mxu0 0.0
    %584 = vmatpush1.xpose.msra.mxu0 0.0
    %585 = vmatprep.subr.mxu0 0.0
    %586 = vmatpush1.xpose.msra.mxu0 0.0
    %587 = vmatprep.subr.mxu0 0.0
    %588 = vmatpush1.xpose.msra.mxu0 0.0
    %589 = vmatprep.subr.mxu0 0.0
    %590 = vmatpush1.xpose.msra.mxu0 0.0
    %591 = vmatprep.subr.mxu0 0.0
    %592 = vmatpush1.xpose.msra.mxu0 0.0
    %593 = vmatprep.subr.mxu0 0.0
    %594 = vmatpush1.xpose.msra.mxu0 0.0
    %595 = vmatprep.subr.mxu0 0.0
    %596 = vmatpush1.xpose.msra.mxu0 0.0
    %597 = vmatprep.subr.mxu0 0.0
    %598 = vmatpush1.xpose.msra.mxu0 0.0
    %599 = vmatprep.subr.mxu0 0.0
    %600 = vmatpush1.xpose.msra.mxu0 0.0
    %601 = vmatprep.mubr.f32.mxu0 0.0
    %602 = vmatmul.mubr.f32.gmra.mrb[0].mxu0 %v508
    %v603 = vpop.f32.mrb[0].mxu0
    %v604 = vadd.f32 %v169, %v603
    %v605 = vpop.f32.mrb[0].mxu0
    %606 = vmatprep.mubr.f32.mxu0 0.0
    %607 = vmatmul.mubr.f32.gmra.mrb[0].mxu0 %v511
    %v608 = vpop.f32.mrb[0].mxu0
    %v609 = vadd.f32 %v170, %v608
    %v610 = vpop.f32.mrb[0].mxu0
    %611 = vdwg.mxu0
    %v612 = vsel %vm79, %v604, -inf
    %613 = vmax.xlane.f32.xlu0 %v612
    %v614 = vpop.xlane.xlu0 %613
    %v615 = vsel %vm79, %v609, -inf
    %616 = vmax.xlane.f32.xlu0 %v615
    %v617 = vpop.xlane.xlu0 %616
    %v618 = vsub.f32 %v604, %v614
    %v619 = vsub.f32 %v609, %v617
    %v620 = vmul.f32 %v618, 1.442695
    %v621 = vpow.pop %v620
    %v622 = vmul.f32 %v619, 1.442695
    %v623 = vpow.pop %v622
    %v625 = vsel %vm79, %v621, 0
    %v628 = vsel %vm79, %v623, 0
    %630 = vmatprep.subr.mxu0 0.0
    %631 = vmatpush1.msra.mxu0 %v161
    %632 = vmatprep.subr.mxu0 0.0
    %633 = vmatpush1.msra.mxu0 %v162
    %634 = vmatprep.subr.mxu0 0.0
    %635 = vmatpush1.msra.mxu0 %v163
    %636 = vmatprep.subr.mxu0 0.0
    %637 = vmatpush1.msra.mxu0 %v164
    %638 = vmatprep.subr.mxu0 0.0
    %639 = vmatpush1.msra.mxu0 %v165
    %640 = vmatprep.subr.mxu0 0.0
    %641 = vmatpush1.msra.mxu0 %v166
    %642 = vmatprep.subr.mxu0 0.0
    %643 = vmatpush1.msra.mxu0 %v167
    %644 = vmatprep.subr.mxu0 0.0
    %645 = vmatpush1.msra.mxu0 %v168
    %646 = vmatprep.subr.mxu0 0.0
    %647 = vmatpush1.msra.mxu0 0.0
    %648 = vmatprep.subr.mxu0 0.0
    %649 = vmatpush1.msra.mxu0 0.0
    %650 = vmatprep.subr.mxu0 0.0
    %651 = vmatpush1.msra.mxu0 0.0
    %652 = vmatprep.subr.mxu0 0.0
    %653 = vmatpush1.msra.mxu0 0.0
    %654 = vmatprep.subr.mxu0 0.0
    %655 = vmatpush1.msra.mxu0 0.0
    %656 = vmatprep.subr.mxu0 0.0
    %657 = vmatpush1.msra.mxu0 0.0
    %658 = vmatprep.subr.mxu0 0.0
    %659 = vmatpush1.msra.mxu0 0.0
    %660 = vmatprep.subr.mxu0 0.0
    %661 = vmatpush1.msra.mxu0 0.0
    %662 = vmatprep.subr.mxu0 0.0
    %663 = vmatpush1.msra.mxu0 0.0
    %664 = vmatprep.subr.mxu0 0.0
    %665 = vmatpush1.msra.mxu0 0.0
    %666 = vmatprep.subr.mxu0 0.0
    %667 = vmatpush1.msra.mxu0 0.0
    %668 = vmatprep.subr.mxu0 0.0
    %669 = vmatpush1.msra.mxu0 0.0
    %670 = vmatprep.subr.mxu0 0.0
    %671 = vmatpush1.msra.mxu0 0.0
    %672 = vmatprep.subr.mxu0 0.0
    %673 = vmatpush1.msra.mxu0 0.0
    %674 = vmatprep.subr.mxu0 0.0
    %675 = vmatpush1.msra.mxu0 0.0
    %676 = vmatprep.subr.mxu0 0.0
    %677 = vmatpush1.msra.mxu0 0.0
    %678 = vmatprep.subr.mxu0 0.0
    %679 = vmatpush1.msra.mxu0 0.0
    %680 = vmatprep.subr.mxu0 0.0
    %681 = vmatpush1.msra.mxu0 0.0
    %682 = vmatprep.subr.mxu0 0.0
    %683 = vmatpush1.msra.mxu0 0.0
    %684 = vmatprep.subr.mxu0 0.0
    %685 = vmatpush1.msra.mxu0 0.0
    %686 = vmatprep.subr.mxu0 0.0
    %687 = vmatpush1.msra.mxu0 0.0
    %688 = vmatprep.subr.mxu0 0.0
    %689 = vmatpush1.msra.mxu0 0.0
    %690 = vmatprep.subr.mxu0 0.0
    %691 = vmatpush1.msra.mxu0 0.0
    %692 = vmatprep.subr.mxu0 0.0
    %693 = vmatpush1.msra.mxu0 0.0
    %694 = vmatprep.mubr.f32.mxu0 0.0
    %695 = vmatmul.mubr.f32.gmra.mrb[0].mxu0 %v625
    %v696 = vpop.f32.mrb[0].mxu0
    %v697 = vadd.f32 0.0, %v696
    %v698 = vpop.f32.mrb[0].mxu0
    %699 = vmatprep.mubr.f32.mxu0 0.0
    %700 = vmatmul.mubr.f32.gmra.mrb[0].mxu0 %v628
    %v701 = vpop.f32.mrb[0].mxu0
    %v702 = vadd.f32 0.0, %v701
    %v703 = vpop.f32.mrb[0].mxu0
    %704 = vdwg.mxu0
    %705 = vmatprep.subr.mxu0 0.0
    %706 = vmatpush1.msra.mxu0 %v499
    %707 = vmatprep.subr.mxu0 0.0
    %708 = vmatpush1.msra.mxu0 %v500
    %709 = vmatprep.subr.mxu0 0.0
    %710 = vmatpush1.msra.mxu0 %v501
    %711 = vmatprep.subr.mxu0 0.0
    %712 = vmatpush1.msra.mxu0 %v502
    %713 = vmatprep.subr.mxu0 0.0
    %714 = vmatpush1.msra.mxu0 %v503
    %715 = vmatprep.subr.mxu0 0.0
    %716 = vmatpush1.msra.mxu0 %v504
    %717 = vmatprep.subr.mxu0 0.0
    %718 = vmatpush1.msra.mxu0 %v505
    %719 = vmatprep.subr.mxu0 0.0
    %720 = vmatpush1.msra.mxu0 %v506
    %721 = vmatprep.subr.mxu0 0.0
    %722 = vmatpush1.msra.mxu0 0.0
    %723 = vmatprep.subr.mxu0 0.0
    %724 = vmatpush1.msra.mxu0 0.0
    %725 = vmatprep.subr.mxu0 0.0
    %726 = vmatpush1.msra.mxu0 0.0
    %727 = vmatprep.subr.mxu0 0.0
    %728 = vmatpush1.msra.mxu0 0.0
    %729 = vmatprep.subr.mxu0 0.0
    %730 = vmatpush1.msra.mxu0 0.0
    %731 = vmatprep.subr.mxu0 0.0
    %732 = vmatpush1.msra.mxu0 0.0
    %733 = vmatprep.subr.mxu0 0.0
    %734 = vmatpush1.msra.mxu0 0.0
    %735 = vmatprep.subr.mxu0 0.0
    %736 = vmatpush1.msra.mxu0 0.0
    %737 = vmatprep.subr.mxu0 0.0
    %738 = vmatpush1.msra.mxu0 0.0
    %739 = vmatprep.subr.mxu0 0.0
    %740 = vmatpush1.msra.mxu0 0.0
    %741 = vmatprep.subr.mxu0 0.0
    %742 = vmatpush1.msra.mxu0 0.0
    %743 = vmatprep.subr.mxu0 0.0
    %744 = vmatpush1.msra.mxu0 0.0
    %745 = vmatprep.subr.mxu0 0.0
    %746 = vmatpush1.msra.mxu0 0.0
    %747 = vmatprep.subr.mxu0 0.0
    %748 = vmatpush1.msra.mxu0 0.0
    %749 = vmatprep.subr.mxu0 0.0
    %750 = vmatpush1.msra.mxu0 0.0
    %751 = vmatprep.subr.mxu0 0.0
    %752 = vmatpush1.msra.mxu0 0.0
    %753 = vmatprep.subr.mxu0 0.0
    %754 = vmatpush1.msra.mxu0 0.0
    %755 = vmatprep.subr.mxu0 0.0
    %756 = vmatpush1.msra.mxu0 0.0
    %757 = vmatprep.subr.mxu0 0.0
    %758 = vmatpush1.msra.mxu0 0.0
    %759 = vmatprep.subr.mxu0 0.0
    %760 = vmatpush1.msra.mxu0 0.0
    %761 = vmatprep.subr.mxu0 0.0
    %762 = vmatpush1.msra.mxu0 0.0
    %763 = vmatprep.subr.mxu0 0.0
    %764 = vmatpush1.msra.mxu0 0.0
    %765 = vmatprep.subr.mxu0 0.0
    %766 = vmatpush1.msra.mxu0 0.0
    %767 = vmatprep.subr.mxu0 0.0
    %768 = vmatpush1.msra.mxu0 0.0
    %769 = vmatprep.mubr.f32.mxu0 0.0
    %770 = vmatmul.mubr.f32.gmra.mrb[0].mxu0 %v625
    %v771 = vpop.f32.mrb[0].mxu0
    %v772 = vadd.f32 0.0, %v771
    %v773 = vpop.f32.mrb[0].mxu0
    %774 = vmatprep.mubr.f32.mxu0 0.0
    %775 = vmatmul.mubr.f32.gmra.mrb[0].mxu0 %v628
    %v776 = vpop.f32.mrb[0].mxu0
    %v777 = vadd.f32 0.0, %v776
    %v778 = vpop.f32.mrb[0].mxu0
    %779 = vdwg.mxu0
    %v780 = vrcp.pop %v697
    %v781 = vmul.f32 %v772, %v780
    %v782 = vrcp.pop %v702
    %v783 = vmul.f32 %v777, %v782
    %s784 = scalar_lea.vmem %s7, 96
    %v785 = vld [vmem:[%s784] sm:$0xff]
    %v786 = vld [vmem:[%s784 + $0x8] sm:$0xff]
    %v787 = vld [vmem:[%s784 + $0x10] sm:$0xff]
    %v788 = vld [vmem:[%s784 + $0x18] sm:$0xff]
    %v789 = vlaneseq
    %v790 = vshrl.u32 %v789, 7
    %v791 = vsub.s32 3, %v790
    %v792 = vrot.slane %v171, %v791
    %v794 = vsel %vm181, %v781, 0
    %v797 = vsel %vm181, %v783, 0
    %799 = vmatprep.subr.mxu0 0.0
    %800 = vmatpush1.msra.mxu0 %v785
    %801 = vmatprep.subr.mxu0 0.0
    %802 = vmatpush1.msra.mxu0 %v786
    %803 = vmatprep.subr.mxu0 0.0
    %804 = vmatpush1.msra.mxu0 %v787
    %805 = vmatprep.subr.mxu0 0.0
    %806 = vmatpush1.msra.mxu0 %v788
    %807 = vmatprep.subr.mxu0 0.0
    %808 = vmatpush1.msra.mxu0 0.0
    %809 = vmatprep.subr.mxu0 0.0
    %810 = vmatpush1.msra.mxu0 0.0
    %811 = vmatprep.subr.mxu0 0.0
    %812 = vmatpush1.msra.mxu0 0.0
    %813 = vmatprep.subr.mxu0 0.0
    %814 = vmatpush1.msra.mxu0 0.0
    %815 = vmatprep.subr.mxu0 0.0
    %816 = vmatpush1.msra.mxu0 0.0
    %817 = vmatprep.subr.mxu0 0.0
    %818 = vmatpush1.msra.mxu0 0.0
    %819 = vmatprep.subr.mxu0 0.0
    %820 = vmatpush1.msra.mxu0 0.0
    %821 = vmatprep.subr.mxu0 0.0
    %822 = vmatpush1.msra.mxu0 0.0
    %823 = vmatprep.subr.mxu0 0.0
    %824 = vmatpush1.msra.mxu0 0.0
    %825 = vmatprep.subr.mxu0 0.0
    %826 = vmatpush1.msra.mxu0 0.0
    %827 = vmatprep.subr.mxu0 0.0
    %828 = vmatpush1.msra.mxu0 0.0
    %829 = vmatprep.subr.mxu0 0.0
    %830 = vmatpush1.msra.mxu0 0.0
    %831 = vmatprep.subr.mxu0 0.0
    %832 = vmatpush1.msra.mxu0 0.0
    %833 = vmatprep.subr.mxu0 0.0
    %834 = vmatpush1.msra.mxu0 0.0
    %835 = vmatprep.subr.mxu0 0.0
    %836 = vmatpush1.msra.mxu0 0.0
    %837 = vmatprep.subr.mxu0 0.0
    %838 = vmatpush1.msra.mxu0 0.0
    %839 = vmatprep.subr.mxu0 0.0
    %840 = vmatpush1.msra.mxu0 0.0
    %841 = vmatprep.subr.mxu0 0.0
    %842 = vmatpush1.msra.mxu0 0.0
    %843 = vmatprep.subr.mxu0 0.0
    %844 = vmatpush1.msra.mxu0 0.0
    %845 = vmatprep.subr.mxu0 0.0
    %846 = vmatpush1.msra.mxu0 0.0
    %847 = vmatprep.subr.mxu0 0.0
    %848 = vmatpush1.msra.mxu0 0.0
    %849 = vmatprep.subr.mxu0 0.0
    %850 = vmatpush1.msra.mxu0 0.0
    %851 = vmatprep.subr.mxu0 0.0
    %852 = vmatpush1.msra.mxu0 0.0
    %853 = vmatprep.subr.mxu0 0.0
    %854 = vmatpush1.msra.mxu0 0.0
    %855 = vmatprep.subr.mxu0 0.0
    %856 = vmatpush1.msra.mxu0 0.0
    %857 = vmatprep.subr.mxu0 0.0
    %858 = vmatpush1.msra.mxu0 0.0
    %859 = vmatprep.subr.mxu0 0.0
    %860 = vmatpush1.msra.mxu0 0.0
    %861 = vmatprep.subr.mxu0 0.0
    %862 = vmatpush1.msra.mxu0 0.0
    %863 = vmatprep.mubr.f32.mxu0 0.0
    %864 = vmatmul.mubr.f32.gmra.mrb[0].mxu0 %v794
    %v865 = vpop.f32.mrb[0].mxu0
    %v866 = vadd.f32 %v792, %v865
    %v867 = vpop.f32.mrb[0].mxu0
    %868 = vmatprep.mubr.f32.mxu0 0.0
    %869 = vmatmul.mubr.f32.gmra.mrb[0].mxu0 %v797
    %v870 = vpop.f32.mrb[0].mxu0
    %v871 = vadd.f32 %v792, %v870
    %v872 = vpop.f32.mrb[0].mxu0
    %873 = vdwg.mxu0
    %v874 = vadd.f32 %v153, %v866
    %v875 = vadd.f32 %v158, %v871
    %v876 = vsel %vm181, %v874, 0.0
    %877 = vadd.xlane.f32.xlu0 %v876
    %v878 = vpop.xlane.xlu0 %877
    %v879 = vsel %vm181, %v875, 0.0
    %880 = vadd.xlane.f32.xlu0 %v879
    %v881 = vpop.xlane.xlu0 %880
    %v882 = vrcp.pop 32.0
    %v883 = vmul.f32 %v878, %v882
    %v884 = vmul.f32 %v881, %v882
    %v885 = vsub.f32 %v874, %v883
    %v886 = vsub.f32 %v875, %v884
    %v887 = vmul.f32 %v885, %v885
    %v888 = vmul.f32 %v886, %v886
    %v889 = vsel %vm181, %v887, 0.0
    %890 = vadd.xlane.f32.xlu0 %v889
    %v891 = vpop.xlane.xlu0 %890
    %v892 = vsel %vm181, %v888, 0.0
    %893 = vadd.xlane.f32.xlu0 %v892
    %v894 = vpop.xlane.xlu0 %893
    %v895 = vmul.f32 %v891, %v882
    %v896 = vmul.f32 %v894, %v882
    %v897 = vadd.f32 %v895, 1e-05
    %v898 = vadd.f32 %v896, 1e-05
    %v899 = vrsqrt.pop %v897
    %v900 = vrsqrt.pop %v898
    %v901 = vmul.f32 %v885, %v899
    %v902 = vmul.f32 %v886, %v900
    %v903 = vlaneseq
    %v904 = vshrl.u32 %v903, 7
    %v905 = vsub.s32 5, %v904
    %v906 = vrot.slane %v171, %v905
    %v907 = vmul.f32 %v901, %v906
    %v908 = vmul.f32 %v902, %v906
    %v909 = vlaneseq
    %v910 = vshrl.u32 %v909, 7
    %v911 = vsub.s32 6, %v910
    %v912 = vrot.slane %v171, %v911
    %v913 = vadd.f32 %v907, %v912
    %v914 = vadd.f32 %v908, %v912
    %v915 = vlaneseq
    %v916 = vshrl.u32 %v915, 7
    %v917 = vsub.s32 4, %v916
    %v918 = vrot.slane %v171, %v917
    %v919 = vadd.f32 %v913, %v918
    %v920 = vadd.f32 %v914, %v918
    %v921 = vsel %vm181, %v919, 0.0
    %922 = vadd.xlane.f32.xlu0 %v921
    %v923 = vpop.xlane.xlu0 %922
    %v924 = vsel %vm181, %v920, 0.0
    %925 = vadd.xlane.f32.xlu0 %v924
    %v926 = vpop.xlane.xlu0 %925
    %v927 = vmul.f32 %v923, %v882
    %v928 = vmul.f32 %v926, %v882
    %v929 = vsub.f32 %v919, %v927
    %v930 = vsub.f32 %v920, %v928
    %v931 = vmul.f32 %v929, %v929
    %v932 = vmul.f32 %v930, %v930
    %v933 = vsel %vm181, %v931, 0.0
    %934 = vadd.xlane.f32.xlu0 %v933
    %v935 = vpop.xlane.xlu0 %934
    %v936 = vsel %vm181, %v932, 0.0
    %937 = vadd.xlane.f32.xlu0 %v936
    %v938 = vpop.xlane.xlu0 %937
    %v939 = vmul.f32 %v935, %v882
    %v940 = vmul.f32 %v938, %v882
    %v941 = vadd.f32 %v939, 1e-05
    %v942 = vadd.f32 %v940, 1e-05
    %v943 = vrsqrt.pop %v941
    %v944 = vrsqrt.pop %v942
    %v945 = vmul.f32 %v929, %v943
    %v946 = vmul.f32 %v930, %v944
    %v947 = vlaneseq
    %v948 = vshrl.u32 %v947, 7
    %v949 = vsub.s32 7, %v948
    %v950 = vrot.slane %v171, %v949
    %v951 = vmul.f32 %v945, %v950
    %v952 = vmul.f32 %v946, %v950
    %v953 = vlaneseq
    %v954 = vshrl.u32 %v953, 7
    %v955 = vsub.s32 0, %v954
    %v956 = vrot.slane %v172, %v955
    %v957 = vadd.f32 %v951, %v956
    %v958 = vadd.f32 %v952, %v956
    %v959 = vpack.c.bf16 %v958, %v957
    %v960 = vld [vmem:[#allocation2] sm:$0xff]
    %v961 = vld [vmem:[#allocation2 + $0x8] sm:$0xff]
    %v962 = vld [vmem:[#allocation2 + $0x10] sm:$0xff]
    %v963 = vld [vmem:[#allocation2 + $0x18] sm:$0xff]
    %v964 = vld [vmem:[#allocation2 + $0x20] sm:$0xff]
    %v965 = vld [vmem:[#allocation2 + $0x28] sm:$0xff]
    %v966 = vld [vmem:[#allocation2 + $0x30] sm:$0xff]
    %v967 = vld [vmem:[#allocation2 + $0x38] sm:$0xff]
    %v968 = vld [vmem:[#allocation2 + $0x40] sm:$0xff]
    %v969 = vld [vmem:[#allocation2 + $0x48] sm:$0xff]
    %v970 = vld [vmem:[#allocation2 + $0x50] sm:$0xff]
    %v971 = vld [vmem:[#allocation2 + $0x58] sm:$0xff]
    %v972 = vld [vmem:[#allocation2 + $0x60] sm:$0xff]
    %v973 = vld [vmem:[#allocation2 + $0x68] sm:$0xff]
    %v974 = vld [vmem:[#allocation2 + $0x70] sm:$0xff]
    %v975 = vld [vmem:[#allocation2 + $0x78] sm:$0xff]
    %v976 = vld [vmem:[#allocation2 + $0x80] sm:$0xff]
    %v977 = vld [vmem:[#allocation2 + $0x88] sm:$0xff]
    %v978 = vld [vmem:[#allocation2 + $0x90] sm:$0xff]
    %v979 = vld [vmem:[#allocation2 + $0x98] sm:$0xff]
    %v980 = vld [vmem:[#allocation2 + $0xa0] sm:$0xff]
    %v981 = vld [vmem:[#allocation2 + $0xa8] sm:$0xff]
    %v982 = vld [vmem:[#allocation2 + $0xb0] sm:$0xff]
    %v983 = vld [vmem:[#allocation2 + $0xb8] sm:$0xff]
    %v984 = vld [vmem:[#allocation2 + $0xc0] sm:$0xff]
    %v985 = vld [vmem:[#allocation2 + $0xc8] sm:$0xff]
    %v986 = vld [vmem:[#allocation2 + $0xd0] sm:$0xff]
    %v987 = vld [vmem:[#allocation2 + $0xd8] sm:$0xff]
    %v988 = vld [vmem:[#allocation2 + $0xe0] sm:$0xff]
    %v989 = vld [vmem:[#allocation2 + $0xe8] sm:$0xff]
    %v990 = vld [vmem:[#allocation2 + $0xf0] sm:$0xff]
    %v991 = vld [vmem:[#allocation2 + $0xf8] sm:$0xff]
    %v992 = vld [vmem:[%s9] sm:$0xff]
    %v993 = vld [vmem:[%s9 + $0x8] sm:$0xff]
    %v996 = vlaneseq
    %v997 = vshrl.u32 %v996, 7
    %v998 = vsub.s32 0, %v997
    %v999 = vrot.slane %v992, %v998
    %v1000 = vlaneseq
    %v1001 = vshrl.u32 %v1000, 7
    %v1002 = vsub.s32 1, %v1001
    %v1003 = vrot.slane %v992, %v1002
    %v1004 = vlaneseq
    %v1005 = vshrl.u32 %v1004, 7
    %v1006 = vsub.s32 2, %v1005
    %v1007 = vrot.slane %v992, %v1006
    %v1008 = vlaneseq
    %v1009 = vshrl.u32 %v1008, 7
    %v1010 = vsub.s32 3, %v1009
    %v1011 = vrot.slane %v992, %v1010
    %v1012 = vlaneseq
    %v1013 = vshrl.u32 %v1012, 7
    %v1014 = vsub.s32 4, %v1013
    %v1015 = vrot.slane %v992, %v1014
    %v1016 = vlaneseq
    %v1017 = vshrl.u32 %v1016, 7
    %v1018 = vsub.s32 5, %v1017
    %v1019 = vrot.slane %v992, %v1018
    %v1020 = vlaneseq
    %v1021 = vshrl.u32 %v1020, 7
    %v1022 = vsub.s32 6, %v1021
    %v1023 = vrot.slane %v992, %v1022
    %v1024 = vlaneseq
    %v1025 = vshrl.u32 %v1024, 7
    %v1026 = vsub.s32 7, %v1025
    %v1027 = vrot.slane %v992, %v1026
    %v1028 = vlaneseq
    %v1029 = vshrl.u32 %v1028, 7
    %v1030 = vsub.s32 0, %v1029
    %v1031 = vrot.slane %v993, %v1030
    %v1032 = vlaneseq
    %v1033 = vshrl.u32 %v1032, 7
    %v1034 = vsub.s32 1, %v1033
    %v1035 = vrot.slane %v993, %v1034
    %v1036 = vlaneseq
    %v1037 = vshrl.u32 %v1036, 7
    %v1038 = vsub.s32 2, %v1037
    %v1039 = vrot.slane %v993, %v1038
    %v1040 = vlaneseq
    %v1041 = vshrl.u32 %v1040, 7
    %v1042 = vsub.s32 3, %v1041
    %v1043 = vrot.slane %v993, %v1042
    %v1044 = vlaneseq
    %v1045 = vshrl.u32 %v1044, 7
    %v1046 = vsub.s32 4, %v1045
    %v1047 = vrot.slane %v993, %v1046
    %v1048 = vlaneseq
    %v1049 = vshrl.u32 %v1048, 7
    %v1050 = vsub.s32 5, %v1049
    %v1051 = vrot.slane %v993, %v1050
    %v1052 = vlaneseq
    %v1053 = vshrl.u32 %v1052, 7
    %v1054 = vsub.s32 6, %v1053
    %v1055 = vrot.slane %v993, %v1054
    %v1056 = vlaneseq
    %v1057 = vshrl.u32 %v1056, 7
    %v1058 = vsub.s32 7, %v1057
    %v1059 = vrot.slane %v993, %v1058
    %v1108 = vunpack.c.l.b16 %v960
    %v1109 = vunpack.c.h.b16 %v960
    %v1110 = vunpack.c.l.b16 %v961
    %v1111 = vunpack.c.h.b16 %v961
    %v1112 = vunpack.c.l.b16 %v962
    %v1113 = vunpack.c.h.b16 %v962
    %v1114 = vunpack.c.l.b16 %v963
    %v1115 = vunpack.c.h.b16 %v963
    %v1116 = vunpack.c.l.b16 %v964
    %v1117 = vunpack.c.h.b16 %v964
    %v1118 = vunpack.c.l.b16 %v965
    %v1119 = vunpack.c.h.b16 %v965
    %v1120 = vunpack.c.l.b16 %v966
    %v1121 = vunpack.c.h.b16 %v966
    %v1122 = vunpack.c.l.b16 %v967
    %v1123 = vunpack.c.h.b16 %v967
    %v1124 = vunpack.c.l.b16 %v968
    %v1125 = vunpack.c.h.b16 %v968
    %v1126 = vunpack.c.l.b16 %v969
    %v1127 = vunpack.c.h.b16 %v969
    %v1128 = vunpack.c.l.b16 %v970
    %v1129 = vunpack.c.h.b16 %v970
    %v1130 = vunpack.c.l.b16 %v971
    %v1131 = vunpack.c.h.b16 %v971
    %v1132 = vunpack.c.l.b16 %v972
    %v1133 = vunpack.c.h.b16 %v972
    %v1134 = vunpack.c.l.b16 %v973
    %v1135 = vunpack.c.h.b16 %v973
    %v1136 = vunpack.c.l.b16 %v974
    %v1137 = vunpack.c.h.b16 %v974
    %v1138 = vunpack.c.l.b16 %v975
    %v1139 = vunpack.c.h.b16 %v975
    %v1140 = vunpack.c.l.b16 %v976
    %v1141 = vunpack.c.h.b16 %v976
    %v1142 = vunpack.c.l.b16 %v977
    %v1143 = vunpack.c.h.b16 %v977
    %v1144 = vunpack.c.l.b16 %v978
    %v1145 = vunpack.c.h.b16 %v978
    %v1146 = vunpack.c.l.b16 %v979
    %v1147 = vunpack.c.h.b16 %v979
    %v1148 = vunpack.c.l.b16 %v980
    %v1149 = vunpack.c.h.b16 %v980
    %v1150 = vunpack.c.l.b16 %v981
    %v1151 = vunpack.c.h.b16 %v981
    %v1152 = vunpack.c.l.b16 %v982
    %v1153 = vunpack.c.h.b16 %v982
    %v1154 = vunpack.c.l.b16 %v983
    %v1155 = vunpack.c.h.b16 %v983
    %v1156 = vunpack.c.l.b16 %v984
    %v1157 = vunpack.c.h.b16 %v984
    %v1158 = vunpack.c.l.b16 %v985
    %v1159 = vunpack.c.h.b16 %v985
    %v1160 = vunpack.c.l.b16 %v986
    %v1161 = vunpack.c.h.b16 %v986
    %v1162 = vunpack.c.l.b16 %v987
    %v1163 = vunpack.c.h.b16 %v987
    %v1164 = vunpack.c.l.b16 %v988
    %v1165 = vunpack.c.h.b16 %v988
    %v1166 = vunpack.c.l.b16 %v989
    %v1167 = vunpack.c.h.b16 %v989
    %v1168 = vunpack.c.l.b16 %v990
    %v1169 = vunpack.c.h.b16 %v990
    %v1170 = vunpack.c.l.b16 %v991
    %v1171 = vunpack.c.h.b16 %v991
    %v1172 = vpack.c.b16 %v1124, %v1108
    %v1173 = vpack.c.b16 %v1125, %v1109
    %v1174 = vpack.c.b16 %v1126, %v1110
    %v1175 = vpack.c.b16 %v1127, %v1111
    %v1176 = vpack.c.b16 %v1128, %v1112
    %v1177 = vpack.c.b16 %v1129, %v1113
    %v1178 = vpack.c.b16 %v1130, %v1114
    %v1179 = vpack.c.b16 %v1131, %v1115
    %v1180 = vpack.c.b16 %v1132, %v1116
    %v1181 = vpack.c.b16 %v1133, %v1117
    %v1182 = vpack.c.b16 %v1134, %v1118
    %v1183 = vpack.c.b16 %v1135, %v1119
    %v1184 = vpack.c.b16 %v1136, %v1120
    %v1185 = vpack.c.b16 %v1137, %v1121
    %v1186 = vpack.c.b16 %v1138, %v1122
    %v1187 = vpack.c.b16 %v1139, %v1123
    %v1188 = vpack.c.b16 %v1156, %v1140
    %v1189 = vpack.c.b16 %v1157, %v1141
    %v1190 = vpack.c.b16 %v1158, %v1142
    %v1191 = vpack.c.b16 %v1159, %v1143
    %v1192 = vpack.c.b16 %v1160, %v1144
    %v1193 = vpack.c.b16 %v1161, %v1145
    %v1194 = vpack.c.b16 %v1162, %v1146
    %v1195 = vpack.c.b16 %v1163, %v1147
    %v1196 = vpack.c.b16 %v1164, %v1148
    %v1197 = vpack.c.b16 %v1165, %v1149
    %v1198 = vpack.c.b16 %v1166, %v1150
    %v1199 = vpack.c.b16 %v1167, %v1151
    %v1200 = vpack.c.b16 %v1168, %v1152
    %v1201 = vpack.c.b16 %v1169, %v1153
    %v1202 = vpack.c.b16 %v1170, %v1154
    %v1203 = vpack.c.b16 %v1171, %v1155
    %v1237 = vsel %vm181, %v959, 0
    %1239 = vmatprep.subr.bf16.mxu0 %v1173
    %1240 = vmatpush1.bf16.msra.mxu0 %v1172
    %1241 = vmatprep.subr.bf16.mxu0 %v1189
    %1242 = vmatpush1.bf16.msra.mxu0 %v1188
    %1243 = vmatprep.subr.bf16.mxu0 0
    %1244 = vmatpush1.bf16.msra.mxu0 0
    %1245 = vmatprep.subr.bf16.mxu0 0
    %1246 = vmatpush1.bf16.msra.mxu0 0
    %1247 = vmatprep.subr.bf16.mxu0 0
    %1248 = vmatpush1.bf16.msra.mxu0 0
    %1249 = vmatprep.subr.bf16.mxu0 0
    %1250 = vmatpush1.bf16.msra.mxu0 0
    %1251 = vmatprep.subr.bf16.mxu0 0
    %1252 = vmatpush1.bf16.msra.mxu0 0
    %1253 = vmatprep.subr.bf16.mxu0 0
    %1254 = vmatpush1.bf16.msra.mxu0 0
    %1255 = vmatprep.subr.bf16.mxu0 0
    %1256 = vmatpush1.bf16.msra.mxu0 0
    %1257 = vmatprep.subr.bf16.mxu0 0
    %1258 = vmatpush1.bf16.msra.mxu0 0
    %1259 = vmatprep.subr.bf16.mxu0 0
    %1260 = vmatpush1.bf16.msra.mxu0 0
    %1261 = vmatprep.subr.bf16.mxu0 0
    %1262 = vmatpush1.bf16.msra.mxu0 0
    %1263 = vmatprep.subr.bf16.mxu0 0
    %1264 = vmatpush1.bf16.msra.mxu0 0
    %1265 = vmatprep.subr.bf16.mxu0 0
    %1266 = vmatpush1.bf16.msra.mxu0 0
    %1267 = vmatprep.subr.bf16.mxu0 0
    %1268 = vmatpush1.bf16.msra.mxu0 0
    %1269 = vmatprep.subr.bf16.mxu0 0
    %1270 = vmatpush1.bf16.msra.mxu0 0
    %1271 = vmatprep.mubr.bf16.mxu0 0
    %1272 = vmatmul.mubr.bf16.gmra.mrb[0].mxu0 %v1237
    %v1273 = vpop.f32.mrb[0].mxu0
    %v1274 = vadd.f32 %v999, %v1273
    %v1275 = vpop.f32.mrb[0].mxu0
    %v1276 = vadd.f32 %v1003, %v1275
    %v1277 = vpop.f32.mrb[0].mxu0
    %v1278 = vadd.f32 %v999, %v1277
    %v1279 = vpop.f32.mrb[0].mxu0
    %v1280 = vadd.f32 %v1003, %v1279
    %1281 = vdwg.mxu0
    %1282 = vmatprep.subr.bf16.mxu0 %v1175
    %1283 = vmatpush1.bf16.msra.mxu0 %v1174
    %1284 = vmatprep.subr.bf16.mxu0 %v1191
    %1285 = vmatpush1.bf16.msra.mxu0 %v1190
    %1286 = vmatprep.subr.bf16.mxu0 0
    %1287 = vmatpush1.bf16.msra.mxu0 0
    %1288 = vmatprep.subr.bf16.mxu0 0
    %1289 = vmatpush1.bf16.msra.mxu0 0
    %1290 = vmatprep.subr.bf16.mxu0 0
    %1291 = vmatpush1.bf16.msra.mxu0 0
    %1292 = vmatprep.subr.bf16.mxu0 0
    %1293 = vmatpush1.bf16.msra.mxu0 0
    %1294 = vmatprep.subr.bf16.mxu0 0
    %1295 = vmatpush1.bf16.msra.mxu0 0
    %1296 = vmatprep.subr.bf16.mxu0 0
    %1297 = vmatpush1.bf16.msra.mxu0 0
    %1298 = vmatprep.subr.bf16.mxu0 0
    %1299 = vmatpush1.bf16.msra.mxu0 0
    %1300 = vmatprep.subr.bf16.mxu0 0
    %1301 = vmatpush1.bf16.msra.mxu0 0
    %1302 = vmatprep.subr.bf16.mxu0 0
    %1303 = vmatpush1.bf16.msra.mxu0 0
    %1304 = vmatprep.subr.bf16.mxu0 0
    %1305 = vmatpush1.bf16.msra.mxu0 0
    %1306 = vmatprep.subr.bf16.mxu0 0
    %1307 = vmatpush1.bf16.msra.mxu0 0
    %1308 = vmatprep.subr.bf16.mxu0 0
    %1309 = vmatpush1.bf16.msra.mxu0 0
    %1310 = vmatprep.subr.bf16.mxu0 0
    %1311 = vmatpush1.bf16.msra.mxu0 0
    %1312 = vmatprep.subr.bf16.mxu0 0
    %1313 = vmatpush1.bf16.msra.mxu0 0
    %1314 = vmatprep.mubr.bf16.mxu0 0
    %1315 = vmatmul.mubr.bf16.gmra.mrb[0].mxu0 %v1237
    %v1316 = vpop.f32.mrb[0].mxu0
    %v1317 = vadd.f32 %v1007, %v1316
    %v1318 = vpop.f32.mrb[0].mxu0
    %v1319 = vadd.f32 %v1011, %v1318
    %v1320 = vpop.f32.mrb[0].mxu0
    %v1321 = vadd.f32 %v1007, %v1320
    %v1322 = vpop.f32.mrb[0].mxu0
    %v1323 = vadd.f32 %v1011, %v1322
    %1324 = vdwg.mxu0
    %1325 = vmatprep.subr.bf16.mxu0 %v1177
    %1326 = vmatpush1.bf16.msra.mxu0 %v1176
    %1327 = vmatprep.subr.bf16.mxu0 %v1193
    %1328 = vmatpush1.bf16.msra.mxu0 %v1192
    %1329 = vmatprep.subr.bf16.mxu0 0
    %1330 = vmatpush1.bf16.msra.mxu0 0
    %1331 = vmatprep.subr.bf16.mxu0 0
    %1332 = vmatpush1.bf16.msra.mxu0 0
    %1333 = vmatprep.subr.bf16.mxu0 0
    %1334 = vmatpush1.bf16.msra.mxu0 0
    %1335 = vmatprep.subr.bf16.mxu0 0
    %1336 = vmatpush1.bf16.msra.mxu0 0
    %1337 = vmatprep.subr.bf16.mxu0 0
    %1338 = vmatpush1.bf16.msra.mxu0 0
    %1339 = vmatprep.subr.bf16.mxu0 0
    %1340 = vmatpush1.bf16.msra.mxu0 0
    %1341 = vmatprep.subr.bf16.mxu0 0
    %1342 = vmatpush1.bf16.msra.mxu0 0
    %1343 = vmatprep.subr.bf16.mxu0 0
    %1344 = vmatpush1.bf16.msra.mxu0 0
    %1345 = vmatprep.subr.bf16.mxu0 0
    %1346 = vmatpush1.bf16.msra.mxu0 0
    %1347 = vmatprep.subr.bf16.mxu0 0
    %1348 = vmatpush1.bf16.msra.mxu0 0
    %1349 = vmatprep.subr.bf16.mxu0 0
    %1350 = vmatpush1.bf16.msra.mxu0 0
    %1351 = vmatprep.subr.bf16.mxu0 0
    %1352 = vmatpush1.bf16.msra.mxu0 0
    %1353 = vmatprep.subr.bf16.mxu0 0
    %1354 = vmatpush1.bf16.msra.mxu0 0
    %1355 = vmatprep.subr.bf16.mxu0 0
    %1356 = vmatpush1.bf16.msra.mxu0 0
    %1357 = vmatprep.mubr.bf16.mxu0 0
    %1358 = vmatmul.mubr.bf16.gmra.mrb[0].mxu0 %v1237
    %v1359 = vpop.f32.mrb[0].mxu0
    %v1360 = vadd.f32 %v1015, %v1359
    %v1361 = vpop.f32.mrb[0].mxu0
    %v1362 = vadd.f32 %v1019, %v1361
    %v1363 = vpop.f32.mrb[0].mxu0
    %v1364 = vadd.f32 %v1015, %v1363
    %v1365 = vpop.f32.mrb[0].mxu0
    %v1366 = vadd.f32 %v1019, %v1365
    %1367 = vdwg.mxu0
    %1368 = vmatprep.subr.bf16.mxu0 %v1179
    %1369 = vmatpush1.bf16.msra.mxu0 %v1178
    %1370 = vmatprep.subr.bf16.mxu0 %v1195
    %1371 = vmatpush1.bf16.msra.mxu0 %v1194
    %1372 = vmatprep.subr.bf16.mxu0 0
    %1373 = vmatpush1.bf16.msra.mxu0 0
    %1374 = vmatprep.subr.bf16.mxu0 0
    %1375 = vmatpush1.bf16.msra.mxu0 0
    %1376 = vmatprep.subr.bf16.mxu0 0
    %1377 = vmatpush1.bf16.msra.mxu0 0
    %1378 = vmatprep.subr.bf16.mxu0 0
    %1379 = vmatpush1.bf16.msra.mxu0 0
    %1380 = vmatprep.subr.bf16.mxu0 0
    %1381 = vmatpush1.bf16.msra.mxu0 0
    %1382 = vmatprep.subr.bf16.mxu0 0
    %1383 = vmatpush1.bf16.msra.mxu0 0
    %1384 = vmatprep.subr.bf16.mxu0 0
    %1385 = vmatpush1.bf16.msra.mxu0 0
    %1386 = vmatprep.subr.bf16.mxu0 0
    %1387 = vmatpush1.bf16.msra.mxu0 0
    %1388 = vmatprep.subr.bf16.mxu0 0
    %1389 = vmatpush1.bf16.msra.mxu0 0
    %1390 = vmatprep.subr.bf16.mxu0 0
    %1391 = vmatpush1.bf16.msra.mxu0 0
    %1392 = vmatprep.subr.bf16.mxu0 0
    %1393 = vmatpush1.bf16.msra.mxu0 0
    %1394 = vmatprep.subr.bf16.mxu0 0
    %1395 = vmatpush1.bf16.msra.mxu0 0
    %1396 = vmatprep.subr.bf16.mxu0 0
    %1397 = vmatpush1.bf16.msra.mxu0 0
    %1398 = vmatprep.subr.bf16.mxu0 0
    %1399 = vmatpush1.bf16.msra.mxu0 0
    %1400 = vmatprep.mubr.bf16.mxu0 0
    %1401 = vmatmul.mubr.bf16.gmra.mrb[0].mxu0 %v1237
    %v1402 = vpop.f32.mrb[0].mxu0
    %v1403 = vadd.f32 %v1023, %v1402
    %v1404 = vpop.f32.mrb[0].mxu0
    %v1405 = vadd.f32 %v1027, %v1404
    %v1406 = vpop.f32.mrb[0].mxu0
    %v1407 = vadd.f32 %v1023, %v1406
    %v1408 = vpop.f32.mrb[0].mxu0
    %v1409 = vadd.f32 %v1027, %v1408
    %1410 = vdwg.mxu0
    %1411 = vmatprep.subr.bf16.mxu0 %v1181
    %1412 = vmatpush1.bf16.msra.mxu0 %v1180
    %1413 = vmatprep.subr.bf16.mxu0 %v1197
    %1414 = vmatpush1.bf16.msra.mxu0 %v1196
    %1415 = vmatprep.subr.bf16.mxu0 0
    %1416 = vmatpush1.bf16.msra.mxu0 0
    %1417 = vmatprep.subr.bf16.mxu0 0
    %1418 = vmatpush1.bf16.msra.mxu0 0
    %1419 = vmatprep.subr.bf16.mxu0 0
    %1420 = vmatpush1.bf16.msra.mxu0 0
    %1421 = vmatprep.subr.bf16.mxu0 0
    %1422 = vmatpush1.bf16.msra.mxu0 0
    %1423 = vmatprep.subr.bf16.mxu0 0
    %1424 = vmatpush1.bf16.msra.mxu0 0
    %1425 = vmatprep.subr.bf16.mxu0 0
    %1426 = vmatpush1.bf16.msra.mxu0 0
    %1427 = vmatprep.subr.bf16.mxu0 0
    %1428 = vmatpush1.bf16.msra.mxu0 0
    %1429 = vmatprep.subr.bf16.mxu0 0
    %1430 = vmatpush1.bf16.msra.mxu0 0
    %1431 = vmatprep.subr.bf16.mxu0 0
    %1432 = vmatpush1.bf16.msra.mxu0 0
    %1433 = vmatprep.subr.bf16.mxu0 0
    %1434 = vmatpush1.bf16.msra.mxu0 0
    %1435 = vmatprep.subr.bf16.mxu0 0
    %1436 = vmatpush1.bf16.msra.mxu0 0
    %1437 = vmatprep.subr.bf16.mxu0 0
    %1438 = vmatpush1.bf16.msra.mxu0 0
    %1439 = vmatprep.subr.bf16.mxu0 0
    %1440 = vmatpush1.bf16.msra.mxu0 0
    %1441 = vmatprep.subr.bf16.mxu0 0
    %1442 = vmatpush1.bf16.msra.mxu0 0
    %1443 = vmatprep.mubr.bf16.mxu0 0
    %1444 = vmatmul.mubr.bf16.gmra.mrb[0].mxu0 %v1237
    %v1445 = vpop.f32.mrb[0].mxu0
    %v1446 = vadd.f32 %v1031, %v1445
    %v1447 = vpop.f32.mrb[0].mxu0
    %v1448 = vadd.f32 %v1035, %v1447
    %v1449 = vpop.f32.mrb[0].mxu0
    %v1450 = vadd.f32 %v1031, %v1449
    %v1451 = vpop.f32.mrb[0].mxu0
    %v1452 = vadd.f32 %v1035, %v1451
    %1453 = vdwg.mxu0
    %1454 = vmatprep.subr.bf16.mxu0 %v1183
    %1455 = vmatpush1.bf16.msra.mxu0 %v1182
    %1456 = vmatprep.subr.bf16.mxu0 %v1199
    %1457 = vmatpush1.bf16.msra.mxu0 %v1198
    %1458 = vmatprep.subr.bf16.mxu0 0
    %1459 = vmatpush1.bf16.msra.mxu0 0
    %1460 = vmatprep.subr.bf16.mxu0 0
    %1461 = vmatpush1.bf16.msra.mxu0 0
    %1462 = vmatprep.subr.bf16.mxu0 0
    %1463 = vmatpush1.bf16.msra.mxu0 0
    %1464 = vmatprep.subr.bf16.mxu0 0
    %1465 = vmatpush1.bf16.msra.mxu0 0
    %1466 = vmatprep.subr.bf16.mxu0 0
    %1467 = vmatpush1.bf16.msra.mxu0 0
    %1468 = vmatprep.subr.bf16.mxu0 0
    %1469 = vmatpush1.bf16.msra.mxu0 0
    %1470 = vmatprep.subr.bf16.mxu0 0
    %1471 = vmatpush1.bf16.msra.mxu0 0
    %1472 = vmatprep.subr.bf16.mxu0 0
    %1473 = vmatpush1.bf16.msra.mxu0 0
    %1474 = vmatprep.subr.bf16.mxu0 0
    %1475 = vmatpush1.bf16.msra.mxu0 0
    %1476 = vmatprep.subr.bf16.mxu0 0
    %1477 = vmatpush1.bf16.msra.mxu0 0
    %1478 = vmatprep.subr.bf16.mxu0 0
    %1479 = vmatpush1.bf16.msra.mxu0 0
    %1480 = vmatprep.subr.bf16.mxu0 0
    %1481 = vmatpush1.bf16.msra.mxu0 0
    %1482 = vmatprep.subr.bf16.mxu0 0
    %1483 = vmatpush1.bf16.msra.mxu0 0
    %1484 = vmatprep.subr.bf16.mxu0 0
    %1485 = vmatpush1.bf16.msra.mxu0 0
    %1486 = vmatprep.mubr.bf16.mxu0 0
    %1487 = vmatmul.mubr.bf16.gmra.mrb[0].mxu0 %v1237
    %v1488 = vpop.f32.mrb[0].mxu0
    %v1489 = vadd.f32 %v1039, %v1488
    %v1490 = vpop.f32.mrb[0].mxu0
    %v1491 = vadd.f32 %v1043, %v1490
    %v1492 = vpop.f32.mrb[0].mxu0
    %v1493 = vadd.f32 %v1039, %v1492
    %v1494 = vpop.f32.mrb[0].mxu0
    %v1495 = vadd.f32 %v1043, %v1494
    %1496 = vdwg.mxu0
    %1497 = vmatprep.subr.bf16.mxu0 %v1185
    %1498 = vmatpush1.bf16.msra.mxu0 %v1184
    %1499 = vmatprep.subr.bf16.mxu0 %v1201
    %1500 = vmatpush1.bf16.msra.mxu0 %v1200
    %1501 = vmatprep.subr.bf16.mxu0 0
    %1502 = vmatpush1.bf16.msra.mxu0 0
    %1503 = vmatprep.subr.bf16.mxu0 0
    %1504 = vmatpush1.bf16.msra.mxu0 0
    %1505 = vmatprep.subr.bf16.mxu0 0
    %1506 = vmatpush1.bf16.msra.mxu0 0
    %1507 = vmatprep.subr.bf16.mxu0 0
    %1508 = vmatpush1.bf16.msra.mxu0 0
    %1509 = vmatprep.subr.bf16.mxu0 0
    %1510 = vmatpush1.bf16.msra.mxu0 0
    %1511 = vmatprep.subr.bf16.mxu0 0
    %1512 = vmatpush1.bf16.msra.mxu0 0
    %1513 = vmatprep.subr.bf16.mxu0 0
    %1514 = vmatpush1.bf16.msra.mxu0 0
    %1515 = vmatprep.subr.bf16.mxu0 0
    %1516 = vmatpush1.bf16.msra.mxu0 0
    %1517 = vmatprep.subr.bf16.mxu0 0
    %1518 = vmatpush1.bf16.msra.mxu0 0
    %1519 = vmatprep.subr.bf16.mxu0 0
    %1520 = vmatpush1.bf16.msra.mxu0 0
    %1521 = vmatprep.subr.bf16.mxu0 0
    %1522 = vmatpush1.bf16.msra.mxu0 0
    %1523 = vmatprep.subr.bf16.mxu0 0
    %1524 = vmatpush1.bf16.msra.mxu0 0
    %1525 = vmatprep.subr.bf16.mxu0 0
    %1526 = vmatpush1.bf16.msra.mxu0 0
    %1527 = vmatprep.subr.bf16.mxu0 0
    %1528 = vmatpush1.bf16.msra.mxu0 0
    %1529 = vmatprep.mubr.bf16.mxu0 0
    %1530 = vmatmul.mubr.bf16.gmra.mrb[0].mxu0 %v1237
    %v1531 = vpop.f32.mrb[0].mxu0
    %v1532 = vadd.f32 %v1047, %v1531
    %v1533 = vpop.f32.mrb[0].mxu0
    %v1534 = vadd.f32 %v1051, %v1533
    %v1535 = vpop.f32.mrb[0].mxu0
    %v1536 = vadd.f32 %v1047, %v1535
    %v1537 = vpop.f32.mrb[0].mxu0
    %v1538 = vadd.f32 %v1051, %v1537
    %1539 = vdwg.mxu0
    %1540 = vmatprep.subr.bf16.mxu0 %v1187
    %1541 = vmatpush1.bf16.msra.mxu0 %v1186
    %1542 = vmatprep.subr.bf16.mxu0 %v1203
    %1543 = vmatpush1.bf16.msra.mxu0 %v1202
    %1544 = vmatprep.subr.bf16.mxu0 0
    %1545 = vmatpush1.bf16.msra.mxu0 0
    %1546 = vmatprep.subr.bf16.mxu0 0
    %1547 = vmatpush1.bf16.msra.mxu0 0
    %1548 = vmatprep.subr.bf16.mxu0 0
    %1549 = vmatpush1.bf16.msra.mxu0 0
    %1550 = vmatprep.subr.bf16.mxu0 0
    %1551 = vmatpush1.bf16.msra.mxu0 0
    %1552 = vmatprep.subr.bf16.mxu0 0
    %1553 = vmatpush1.bf16.msra.mxu0 0
    %1554 = vmatprep.subr.bf16.mxu0 0
    %1555 = vmatpush1.bf16.msra.mxu0 0
    %1556 = vmatprep.subr.bf16.mxu0 0
    %1557 = vmatpush1.bf16.msra.mxu0 0
    %1558 = vmatprep.subr.bf16.mxu0 0
    %1559 = vmatpush1.bf16.msra.mxu0 0
    %1560 = vmatprep.subr.bf16.mxu0 0
    %1561 = vmatpush1.bf16.msra.mxu0 0
    %1562 = vmatprep.subr.bf16.mxu0 0
    %1563 = vmatpush1.bf16.msra.mxu0 0
    %1564 = vmatprep.subr.bf16.mxu0 0
    %1565 = vmatpush1.bf16.msra.mxu0 0
    %1566 = vmatprep.subr.bf16.mxu0 0
    %1567 = vmatpush1.bf16.msra.mxu0 0
    %1568 = vmatprep.subr.bf16.mxu0 0
    %1569 = vmatpush1.bf16.msra.mxu0 0
    %1570 = vmatprep.subr.bf16.mxu0 0
    %1571 = vmatpush1.bf16.msra.mxu0 0
    %1572 = vmatprep.mubr.bf16.mxu0 0
    %1573 = vmatmul.mubr.bf16.gmra.mrb[0].mxu0 %v1237
    %v1574 = vpop.f32.mrb[0].mxu0
    %v1575 = vadd.f32 %v1055, %v1574
    %v1576 = vpop.f32.mrb[0].mxu0
    %v1577 = vadd.f32 %v1059, %v1576
    %v1578 = vpop.f32.mrb[0].mxu0
    %v1579 = vadd.f32 %v1055, %v1578
    %v1580 = vpop.f32.mrb[0].mxu0
    %v1581 = vadd.f32 %v1059, %v1580
    %1582 = vdwg.mxu0
    %v1583 = vmax.f32 %v1274, 0.0
    %v1584 = vmax.f32 %v1276, 0.0
    %v1585 = vmax.f32 %v1317, 0.0
    %v1586 = vmax.f32 %v1319, 0.0
    %v1587 = vmax.f32 %v1360, 0.0
    %v1588 = vmax.f32 %v1362, 0.0
    %v1589 = vmax.f32 %v1403, 0.0
    %v1590 = vmax.f32 %v1405, 0.0
    %v1591 = vmax.f32 %v1446, 0.0
    %v1592 = vmax.f32 %v1448, 0.0
    %v1593 = vmax.f32 %v1489, 0.0
    %v1594 = vmax.f32 %v1491, 0.0
    %v1595 = vmax.f32 %v1532, 0.0
    %v1596 = vmax.f32 %v1534, 0.0
    %v1597 = vmax.f32 %v1575, 0.0
    %v1598 = vmax.f32 %v1577, 0.0
    %v1599 = vmax.f32 %v1278, 0.0
    %v1600 = vmax.f32 %v1280, 0.0
    %v1601 = vmax.f32 %v1321, 0.0
    %v1602 = vmax.f32 %v1323, 0.0
    %v1603 = vmax.f32 %v1364, 0.0
    %v1604 = vmax.f32 %v1366, 0.0
    %v1605 = vmax.f32 %v1407, 0.0
    %v1606 = vmax.f32 %v1409, 0.0
    %v1607 = vmax.f32 %v1450, 0.0
    %v1608 = vmax.f32 %v1452, 0.0
    %v1609 = vmax.f32 %v1493, 0.0
    %v1610 = vmax.f32 %v1495, 0.0
    %v1611 = vmax.f32 %v1536, 0.0
    %v1612 = vmax.f32 %v1538, 0.0
    %v1613 = vmax.f32 %v1579, 0.0
    %v1614 = vmax.f32 %v1581, 0.0
    %v1615 = vpack.c.bf16 %v1599, %v1583
    %v1616 = vpack.c.bf16 %v1600, %v1584
    %v1617 = vpack.c.bf16 %v1601, %v1585
    %v1618 = vpack.c.bf16 %v1602, %v1586
    %v1619 = vpack.c.bf16 %v1603, %v1587
    %v1620 = vpack.c.bf16 %v1604, %v1588
    %v1621 = vpack.c.bf16 %v1605, %v1589
    %v1622 = vpack.c.bf16 %v1606, %v1590
    %v1623 = vpack.c.bf16 %v1607, %v1591
    %v1624 = vpack.c.bf16 %v1608, %v1592
    %v1625 = vpack.c.bf16 %v1609, %v1593
    %v1626 = vpack.c.bf16 %v1610, %v1594
    %v1627 = vpack.c.bf16 %v1611, %v1595
    %v1628 = vpack.c.bf16 %v1612, %v1596
    %v1629 = vpack.c.bf16 %v1613, %v1597
    %v1630 = vpack.c.bf16 %v1614, %v1598
    %s1631 = scalar_lea.vmem [#allocation2], 256
    %v1632 = vld [vmem:[%s1631] sm:$0xff]
    %v1633 = vld [vmem:[%s1631 + $0x8] sm:$0xff]
    %v1634 = vld [vmem:[%s1631 + $0x10] sm:$0xff]
    %v1635 = vld [vmem:[%s1631 + $0x18] sm:$0xff]
    %v1636 = vld [vmem:[%s1631 + $0x20] sm:$0xff]
    %v1637 = vld [vmem:[%s1631 + $0x28] sm:$0xff]
    %v1638 = vld [vmem:[%s1631 + $0x30] sm:$0xff]
    %v1639 = vld [vmem:[%s1631 + $0x38] sm:$0xff]
    %v1640 = vld [vmem:[%s1631 + $0x40] sm:$0xff]
    %v1641 = vld [vmem:[%s1631 + $0x48] sm:$0xff]
    %v1642 = vld [vmem:[%s1631 + $0x50] sm:$0xff]
    %v1643 = vld [vmem:[%s1631 + $0x58] sm:$0xff]
    %v1644 = vld [vmem:[%s1631 + $0x60] sm:$0xff]
    %v1645 = vld [vmem:[%s1631 + $0x68] sm:$0xff]
    %v1646 = vld [vmem:[%s1631 + $0x70] sm:$0xff]
    %v1647 = vld [vmem:[%s1631 + $0x78] sm:$0xff]
    %v1648 = vld [vmem:[%s1631 + $0x80] sm:$0xff]
    %v1649 = vld [vmem:[%s1631 + $0x88] sm:$0xff]
    %v1650 = vld [vmem:[%s1631 + $0x90] sm:$0xff]
    %v1651 = vld [vmem:[%s1631 + $0x98] sm:$0xff]
    %v1652 = vld [vmem:[%s1631 + $0xa0] sm:$0xff]
    %v1653 = vld [vmem:[%s1631 + $0xa8] sm:$0xff]
    %v1654 = vld [vmem:[%s1631 + $0xb0] sm:$0xff]
    %v1655 = vld [vmem:[%s1631 + $0xb8] sm:$0xff]
    %v1656 = vld [vmem:[%s1631 + $0xc0] sm:$0xff]
    %v1657 = vld [vmem:[%s1631 + $0xc8] sm:$0xff]
    %v1658 = vld [vmem:[%s1631 + $0xd0] sm:$0xff]
    %v1659 = vld [vmem:[%s1631 + $0xd8] sm:$0xff]
    %v1660 = vld [vmem:[%s1631 + $0xe0] sm:$0xff]
    %v1661 = vld [vmem:[%s1631 + $0xe8] sm:$0xff]
    %v1662 = vld [vmem:[%s1631 + $0xf0] sm:$0xff]
    %v1663 = vld [vmem:[%s1631 + $0xf8] sm:$0xff]
    %v1664 = vlaneseq
    %v1665 = vshrl.u32 %v1664, 7
    %v1666 = vsub.s32 3, %v1665
    %v1667 = vrot.slane %v172, %v1666
    %v1700 = vunpack.c.l.b16 %v1632
    %v1701 = vunpack.c.h.b16 %v1632
    %v1702 = vunpack.c.l.b16 %v1633
    %v1703 = vunpack.c.h.b16 %v1633
    %v1704 = vunpack.c.l.b16 %v1634
    %v1705 = vunpack.c.h.b16 %v1634
    %v1706 = vunpack.c.l.b16 %v1635
    %v1707 = vunpack.c.h.b16 %v1635
    %v1708 = vunpack.c.l.b16 %v1636
    %v1709 = vunpack.c.h.b16 %v1636
    %v1710 = vunpack.c.l.b16 %v1637
    %v1711 = vunpack.c.h.b16 %v1637
    %v1712 = vunpack.c.l.b16 %v1638
    %v1713 = vunpack.c.h.b16 %v1638
    %v1714 = vunpack.c.l.b16 %v1639
    %v1715 = vunpack.c.h.b16 %v1639
    %v1716 = vunpack.c.l.b16 %v1640
    %v1717 = vunpack.c.h.b16 %v1640
    %v1718 = vunpack.c.l.b16 %v1641
    %v1719 = vunpack.c.h.b16 %v1641
    %v1720 = vunpack.c.l.b16 %v1642
    %v1721 = vunpack.c.h.b16 %v1642
    %v1722 = vunpack.c.l.b16 %v1643
    %v1723 = vunpack.c.h.b16 %v1643
    %v1724 = vunpack.c.l.b16 %v1644
    %v1725 = vunpack.c.h.b16 %v1644
    %v1726 = vunpack.c.l.b16 %v1645
    %v1727 = vunpack.c.h.b16 %v1645
    %v1728 = vunpack.c.l.b16 %v1646
    %v1729 = vunpack.c.h.b16 %v1646
    %v1730 = vunpack.c.l.b16 %v1647
    %v1731 = vunpack.c.h.b16 %v1647
    %v1732 = vunpack.c.l.b16 %v1648
    %v1733 = vunpack.c.h.b16 %v1648
    %v1734 = vunpack.c.l.b16 %v1649
    %v1735 = vunpack.c.h.b16 %v1649
    %v1736 = vunpack.c.l.b16 %v1650
    %v1737 = vunpack.c.h.b16 %v1650
    %v1738 = vunpack.c.l.b16 %v1651
    %v1739 = vunpack.c.h.b16 %v1651
    %v1740 = vunpack.c.l.b16 %v1652
    %v1741 = vunpack.c.h.b16 %v1652
    %v1742 = vunpack.c.l.b16 %v1653
    %v1743 = vunpack.c.h.b16 %v1653
    %v1744 = vunpack.c.l.b16 %v1654
    %v1745 = vunpack.c.h.b16 %v1654
    %v1746 = vunpack.c.l.b16 %v1655
    %v1747 = vunpack.c.h.b16 %v1655
    %v1748 = vunpack.c.l.b16 %v1656
    %v1749 = vunpack.c.h.b16 %v1656
    %v1750 = vunpack.c.l.b16 %v1657
    %v1751 = vunpack.c.h.b16 %v1657
    %v1752 = vunpack.c.l.b16 %v1658
    %v1753 = vunpack.c.h.b16 %v1658
    %v1754 = vunpack.c.l.b16 %v1659
    %v1755 = vunpack.c.h.b16 %v1659
    %v1756 = vunpack.c.l.b16 %v1660
    %v1757 = vunpack.c.h.b16 %v1660
    %v1758 = vunpack.c.l.b16 %v1661
    %v1759 = vunpack.c.h.b16 %v1661
    %v1760 = vunpack.c.l.b16 %v1662
    %v1761 = vunpack.c.h.b16 %v1662
    %v1762 = vunpack.c.l.b16 %v1663
    %v1763 = vunpack.c.h.b16 %v1663
    %v1764 = vpack.c.b16 %v1716, %v1700
    %v1765 = vpack.c.b16 %v1717, %v1701
    %v1766 = vpack.c.b16 %v1718, %v1702
    %v1767 = vpack.c.b16 %v1719, %v1703
    %v1768 = vpack.c.b16 %v1720, %v1704
    %v1769 = vpack.c.b16 %v1721, %v1705
    %v1770 = vpack.c.b16 %v1722, %v1706
    %v1771 = vpack.c.b16 %v1723, %v1707
    %v1772 = vpack.c.b16 %v1724, %v1708
    %v1773 = vpack.c.b16 %v1725, %v1709
    %v1774 = vpack.c.b16 %v1726, %v1710
    %v1775 = vpack.c.b16 %v1727, %v1711
    %v1776 = vpack.c.b16 %v1728, %v1712
    %v1777 = vpack.c.b16 %v1729, %v1713
    %v1778 = vpack.c.b16 %v1730, %v1714
    %v1779 = vpack.c.b16 %v1731, %v1715
    %v1780 = vpack.c.b16 %v1748, %v1732
    %v1781 = vpack.c.b16 %v1749, %v1733
    %v1782 = vpack.c.b16 %v1750, %v1734
    %v1783 = vpack.c.b16 %v1751, %v1735
    %v1784 = vpack.c.b16 %v1752, %v1736
    %v1785 = vpack.c.b16 %v1753, %v1737
    %v1786 = vpack.c.b16 %v1754, %v1738
    %v1787 = vpack.c.b16 %v1755, %v1739
    %v1788 = vpack.c.b16 %v1756, %v1740
    %v1789 = vpack.c.b16 %v1757, %v1741
    %v1790 = vpack.c.b16 %v1758, %v1742
    %v1791 = vpack.c.b16 %v1759, %v1743
    %v1792 = vpack.c.b16 %v1760, %v1744
    %v1793 = vpack.c.b16 %v1761, %v1745
    %v1794 = vpack.c.b16 %v1762, %v1746
    %v1795 = vpack.c.b16 %v1763, %v1747
    %1828 = vmatprep.subr.bf16.mxu0 %v1765
    %1829 = vmatpush1.bf16.xpose.msra.mxu0 %v1764
    %1830 = vmatprep.subr.bf16.mxu0 %v1781
    %1831 = vmatpush1.bf16.xpose.msra.mxu0 %v1780
    %1832 = vmatprep.subr.bf16.mxu0 0
    %1833 = vmatpush1.bf16.xpose.msra.mxu0 0
    %1834 = vmatprep.subr.bf16.mxu0 0
    %1835 = vmatpush1.bf16.xpose.msra.mxu0 0
    %1836 = vmatprep.subr.bf16.mxu0 0
    %1837 = vmatpush1.bf16.xpose.msra.mxu0 0
    %1838 = vmatprep.subr.bf16.mxu0 0
    %1839 = vmatpush1.bf16.xpose.msra.mxu0 0
    %1840 = vmatprep.subr.bf16.mxu0 0
    %1841 = vmatpush1.bf16.xpose.msra.mxu0 0
    %1842 = vmatprep.subr.bf16.mxu0 0
    %1843 = vmatpush1.bf16.xpose.msra.mxu0 0
    %1844 = vmatprep.subr.bf16.mxu0 0
    %1845 = vmatpush1.bf16.xpose.msra.mxu0 0
    %1846 = vmatprep.subr.bf16.mxu0 0
    %1847 = vmatpush1.bf16.xpose.msra.mxu0 0
    %1848 = vmatprep.subr.bf16.mxu0 0
    %1849 = vmatpush1.bf16.xpose.msra.mxu0 0
    %1850 = vmatprep.subr.bf16.mxu0 0
    %1851 = vmatpush1.bf16.xpose.msra.mxu0 0
    %1852 = vmatprep.subr.bf16.mxu0 0
    %1853 = vmatpush1.bf16.xpose.msra.mxu0 0
    %1854 = vmatprep.subr.bf16.mxu0 0
    %1855 = vmatpush1.bf16.xpose.msra.mxu0 0
    %1856 = vmatprep.subr.bf16.mxu0 0
    %1857 = vmatpush1.bf16.xpose.msra.mxu0 0
    %1858 = vmatprep.subr.bf16.mxu0 0
    %1859 = vmatpush1.bf16.xpose.msra.mxu0 0
    %1860 = vmatprep.mubr.bf16.mxu0 %v1616
    %1861 = vmatmul.mubr.bf16.gmra.mrb[0].mxu0 %v1615
    %v1862 = vpop.f32.mrb[0].mxu0
    %v1863 = vadd.f32 %v1667, %v1862
    %v1864 = vpop.f32.mrb[0].mxu0
    %v1865 = vpop.f32.mrb[0].mxu0
    %v1866 = vadd.f32 %v1667, %v1865
    %v1867 = vpop.f32.mrb[0].mxu0
    %1868 = vdwg.mxu0
    %1869 = vmatprep.subr.bf16.mxu0 %v1767
    %1870 = vmatpush1.bf16.xpose.msra.mxu0 %v1766
    %1871 = vmatprep.subr.bf16.mxu0 %v1783
    %1872 = vmatpush1.bf16.xpose.msra.mxu0 %v1782
    %1873 = vmatprep.subr.bf16.mxu0 0
    %1874 = vmatpush1.bf16.xpose.msra.mxu0 0
    %1875 = vmatprep.subr.bf16.mxu0 0
    %1876 = vmatpush1.bf16.xpose.msra.mxu0 0
    %1877 = vmatprep.subr.bf16.mxu0 0
    %1878 = vmatpush1.bf16.xpose.msra.mxu0 0
    %1879 = vmatprep.subr.bf16.mxu0 0
    %1880 = vmatpush1.bf16.xpose.msra.mxu0 0
    %1881 = vmatprep.subr.bf16.mxu0 0
    %1882 = vmatpush1.bf16.xpose.msra.mxu0 0
    %1883 = vmatprep.subr.bf16.mxu0 0
    %1884 = vmatpush1.bf16.xpose.msra.mxu0 0
    %1885 = vmatprep.subr.bf16.mxu0 0
    %1886 = vmatpush1.bf16.xpose.msra.mxu0 0
    %1887 = vmatprep.subr.bf16.mxu0 0
    %1888 = vmatpush1.bf16.xpose.msra.mxu0 0
    %1889 = vmatprep.subr.bf16.mxu0 0
    %1890 = vmatpush1.bf16.xpose.msra.mxu0 0
    %1891 = vmatprep.subr.bf16.mxu0 0
    %1892 = vmatpush1.bf16.xpose.msra.mxu0 0
    %1893 = vmatprep.subr.bf16.mxu0 0
    %1894 = vmatpush1.bf16.xpose.msra.mxu0 0
    %1895 = vmatprep.subr.bf16.mxu0 0
    %1896 = vmatpush1.bf16.xpose.msra.mxu0 0
    %1897 = vmatprep.subr.bf16.mxu0 0
    %1898 = vmatpush1.bf16.xpose.msra.mxu0 0
    %1899 = vmatprep.subr.bf16.mxu0 0
    %1900 = vmatpush1.bf16.xpose.msra.mxu0 0
    %1901 = vmatprep.mubr.bf16.mxu0 %v1618
    %1902 = vmatmul.mubr.bf16.gmra.mrb[0].mxu0 %v1617
    %v1903 = vpop.f32.mrb[0].mxu0
    %v1904 = vadd.f32 %v1863, %v1903
    %v1905 = vpop.f32.mrb[0].mxu0
    %v1906 = vpop.f32.mrb[0].mxu0
    %v1907 = vadd.f32 %v1866, %v1906
    %v1908 = vpop.f32.mrb[0].mxu0
    %1909 = vdwg.mxu0
    %1910 = vmatprep.subr.bf16.mxu0 %v1769
    %1911 = vmatpush1.bf16.xpose.msra.mxu0 %v1768
    %1912 = vmatprep.subr.bf16.mxu0 %v1785
    %1913 = vmatpush1.bf16.xpose.msra.mxu0 %v1784
    %1914 = vmatprep.subr.bf16.mxu0 0
    %1915 = vmatpush1.bf16.xpose.msra.mxu0 0
    %1916 = vmatprep.subr.bf16.mxu0 0
    %1917 = vmatpush1.bf16.xpose.msra.mxu0 0
    %1918 = vmatprep.subr.bf16.mxu0 0
    %1919 = vmatpush1.bf16.xpose.msra.mxu0 0
    %1920 = vmatprep.subr.bf16.mxu0 0
    %1921 = vmatpush1.bf16.xpose.msra.mxu0 0
    %1922 = vmatprep.subr.bf16.mxu0 0
    %1923 = vmatpush1.bf16.xpose.msra.mxu0 0
    %1924 = vmatprep.subr.bf16.mxu0 0
    %1925 = vmatpush1.bf16.xpose.msra.mxu0 0
    %1926 = vmatprep.subr.bf16.mxu0 0
    %1927 = vmatpush1.bf16.xpose.msra.mxu0 0
    %1928 = vmatprep.subr.bf16.mxu0 0
    %1929 = vmatpush1.bf16.xpose.msra.mxu0 0
    %1930 = vmatprep.subr.bf16.mxu0 0
    %1931 = vmatpush1.bf16.xpose.msra.mxu0 0
    %1932 = vmatprep.subr.bf16.mxu0 0
    %1933 = vmatpush1.bf16.xpose.msra.mxu0 0
    %1934 = vmatprep.subr.bf16.mxu0 0
    %1935 = vmatpush1.bf16.xpose.msra.mxu0 0
    %1936 = vmatprep.subr.bf16.mxu0 0
    %1937 = vmatpush1.bf16.xpose.msra.mxu0 0
    %1938 = vmatprep.subr.bf16.mxu0 0
    %1939 = vmatpush1.bf16.xpose.msra.mxu0 0
    %1940 = vmatprep.subr.bf16.mxu0 0
    %1941 = vmatpush1.bf16.xpose.msra.mxu0 0
    %1942 = vmatprep.mubr.bf16.mxu0 %v1620
    %1943 = vmatmul.mubr.bf16.gmra.mrb[0].mxu0 %v1619
    %v1944 = vpop.f32.mrb[0].mxu0
    %v1945 = vadd.f32 %v1904, %v1944
    %v1946 = vpop.f32.mrb[0].mxu0
    %v1947 = vpop.f32.mrb[0].mxu0
    %v1948 = vadd.f32 %v1907, %v1947
    %v1949 = vpop.f32.mrb[0].mxu0
    %1950 = vdwg.mxu0
    %1951 = vmatprep.subr.bf16.mxu0 %v1771
    %1952 = vmatpush1.bf16.xpose.msra.mxu0 %v1770
    %1953 = vmatprep.subr.bf16.mxu0 %v1787
    %1954 = vmatpush1.bf16.xpose.msra.mxu0 %v1786
    %1955 = vmatprep.subr.bf16.mxu0 0
    %1956 = vmatpush1.bf16.xpose.msra.mxu0 0
    %1957 = vmatprep.subr.bf16.mxu0 0
    %1958 = vmatpush1.bf16.xpose.msra.mxu0 0
    %1959 = vmatprep.subr.bf16.mxu0 0
    %1960 = vmatpush1.bf16.xpose.msra.mxu0 0
    %1961 = vmatprep.subr.bf16.mxu0 0
    %1962 = vmatpush1.bf16.xpose.msra.mxu0 0
    %1963 = vmatprep.subr.bf16.mxu0 0
    %1964 = vmatpush1.bf16.xpose.msra.mxu0 0
    %1965 = vmatprep.subr.bf16.mxu0 0
    %1966 = vmatpush1.bf16.xpose.msra.mxu0 0
    %1967 = vmatprep.subr.bf16.mxu0 0
    %1968 = vmatpush1.bf16.xpose.msra.mxu0 0
    %1969 = vmatprep.subr.bf16.mxu0 0
    %1970 = vmatpush1.bf16.xpose.msra.mxu0 0
    %1971 = vmatprep.subr.bf16.mxu0 0
    %1972 = vmatpush1.bf16.xpose.msra.mxu0 0
    %1973 = vmatprep.subr.bf16.mxu0 0
    %1974 = vmatpush1.bf16.xpose.msra.mxu0 0
    %1975 = vmatprep.subr.bf16.mxu0 0
    %1976 = vmatpush1.bf16.xpose.msra.mxu0 0
    %1977 = vmatprep.subr.bf16.mxu0 0
    %1978 = vmatpush1.bf16.xpose.msra.mxu0 0
    %1979 = vmatprep.subr.bf16.mxu0 0
    %1980 = vmatpush1.bf16.xpose.msra.mxu0 0
    %1981 = vmatprep.subr.bf16.mxu0 0
    %1982 = vmatpush1.bf16.xpose.msra.mxu0 0
    %1983 = vmatprep.mubr.bf16.mxu0 %v1622
    %1984 = vmatmul.mubr.bf16.gmra.mrb[0].mxu0 %v1621
    %v1985 = vpop.f32.mrb[0].mxu0
    %v1986 = vadd.f32 %v1945, %v1985
    %v1987 = vpop.f32.mrb[0].mxu0
    %v1988 = vpop.f32.mrb[0].mxu0
    %v1989 = vadd.f32 %v1948, %v1988
    %v1990 = vpop.f32.mrb[0].mxu0
    %1991 = vdwg.mxu0
    %1992 = vmatprep.subr.bf16.mxu0 %v1773
    %1993 = vmatpush1.bf16.xpose.msra.mxu0 %v1772
    %1994 = vmatprep.subr.bf16.mxu0 %v1789
    %1995 = vmatpush1.bf16.xpose.msra.mxu0 %v1788
    %1996 = vmatprep.subr.bf16.mxu0 0
    %1997 = vmatpush1.bf16.xpose.msra.mxu0 0
    %1998 = vmatprep.subr.bf16.mxu0 0
    %1999 = vmatpush1.bf16.xpose.msra.mxu0 0
    %2000 = vmatprep.subr.bf16.mxu0 0
    %2001 = vmatpush1.bf16.xpose.msra.mxu0 0
    %2002 = vmatprep.subr.bf16.mxu0 0
    %2003 = vmatpush1.bf16.xpose.msra.mxu0 0
    %2004 = vmatprep.subr.bf16.mxu0 0
    %2005 = vmatpush1.bf16.xpose.msra.mxu0 0
    %2006 = vmatprep.subr.bf16.mxu0 0
    %2007 = vmatpush1.bf16.xpose.msra.mxu0 0
    %2008 = vmatprep.subr.bf16.mxu0 0
    %2009 = vmatpush1.bf16.xpose.msra.mxu0 0
    %2010 = vmatprep.subr.bf16.mxu0 0
    %2011 = vmatpush1.bf16.xpose.msra.mxu0 0
    %2012 = vmatprep.subr.bf16.mxu0 0
    %2013 = vmatpush1.bf16.xpose.msra.mxu0 0
    %2014 = vmatprep.subr.bf16.mxu0 0
    %2015 = vmatpush1.bf16.xpose.msra.mxu0 0
    %2016 = vmatprep.subr.bf16.mxu0 0
    %2017 = vmatpush1.bf16.xpose.msra.mxu0 0
    %2018 = vmatprep.subr.bf16.mxu0 0
    %2019 = vmatpush1.bf16.xpose.msra.mxu0 0
    %2020 = vmatprep.subr.bf16.mxu0 0
    %2021 = vmatpush1.bf16.xpose.msra.mxu0 0
    %2022 = vmatprep.subr.bf16.mxu0 0
    %2023 = vmatpush1.bf16.xpose.msra.mxu0 0
    %2024 = vmatprep.mubr.bf16.mxu0 %v1624
    %2025 = vmatmul.mubr.bf16.gmra.mrb[0].mxu0 %v1623
    %v2026 = vpop.f32.mrb[0].mxu0
    %v2027 = vadd.f32 %v1986, %v2026
    %v2028 = vpop.f32.mrb[0].mxu0
    %v2029 = vpop.f32.mrb[0].mxu0
    %v2030 = vadd.f32 %v1989, %v2029
    %v2031 = vpop.f32.mrb[0].mxu0
    %2032 = vdwg.mxu0
    %2033 = vmatprep.subr.bf16.mxu0 %v1775
    %2034 = vmatpush1.bf16.xpose.msra.mxu0 %v1774
    %2035 = vmatprep.subr.bf16.mxu0 %v1791
    %2036 = vmatpush1.bf16.xpose.msra.mxu0 %v1790
    %2037 = vmatprep.subr.bf16.mxu0 0
    %2038 = vmatpush1.bf16.xpose.msra.mxu0 0
    %2039 = vmatprep.subr.bf16.mxu0 0
    %2040 = vmatpush1.bf16.xpose.msra.mxu0 0
    %2041 = vmatprep.subr.bf16.mxu0 0
    %2042 = vmatpush1.bf16.xpose.msra.mxu0 0
    %2043 = vmatprep.subr.bf16.mxu0 0
    %2044 = vmatpush1.bf16.xpose.msra.mxu0 0
    %2045 = vmatprep.subr.bf16.mxu0 0
    %2046 = vmatpush1.bf16.xpose.msra.mxu0 0
    %2047 = vmatprep.subr.bf16.mxu0 0
    %2048 = vmatpush1.bf16.xpose.msra.mxu0 0
    %2049 = vmatprep.subr.bf16.mxu0 0
    %2050 = vmatpush1.bf16.xpose.msra.mxu0 0
    %2051 = vmatprep.subr.bf16.mxu0 0
    %2052 = vmatpush1.bf16.xpose.msra.mxu0 0
    %2053 = vmatprep.subr.bf16.mxu0 0
    %2054 = vmatpush1.bf16.xpose.msra.mxu0 0
    %2055 = vmatprep.subr.bf16.mxu0 0
    %2056 = vmatpush1.bf16.xpose.msra.mxu0 0
    %2057 = vmatprep.subr.bf16.mxu0 0
    %2058 = vmatpush1.bf16.xpose.msra.mxu0 0
    %2059 = vmatprep.subr.bf16.mxu0 0
    %2060 = vmatpush1.bf16.xpose.msra.mxu0 0
    %2061 = vmatprep.subr.bf16.mxu0 0
    %2062 = vmatpush1.bf16.xpose.msra.mxu0 0
    %2063 = vmatprep.subr.bf16.mxu0 0
    %2064 = vmatpush1.bf16.xpose.msra.mxu0 0
    %2065 = vmatprep.mubr.bf16.mxu0 %v1626
    %2066 = vmatmul.mubr.bf16.gmra.mrb[0].mxu0 %v1625
    %v2067 = vpop.f32.mrb[0].mxu0
    %v2068 = vadd.f32 %v2027, %v2067
    %v2069 = vpop.f32.mrb[0].mxu0
    %v2070 = vpop.f32.mrb[0].mxu0
    %v2071 = vadd.f32 %v2030, %v2070
    %v2072 = vpop.f32.mrb[0].mxu0
    %2073 = vdwg.mxu0
    %2074 = vmatprep.subr.bf16.mxu0 %v1777
    %2075 = vmatpush1.bf16.xpose.msra.mxu0 %v1776
    %2076 = vmatprep.subr.bf16.mxu0 %v1793
    %2077 = vmatpush1.bf16.xpose.msra.mxu0 %v1792
    %2078 = vmatprep.subr.bf16.mxu0 0
    %2079 = vmatpush1.bf16.xpose.msra.mxu0 0
    %2080 = vmatprep.subr.bf16.mxu0 0
    %2081 = vmatpush1.bf16.xpose.msra.mxu0 0
    %2082 = vmatprep.subr.bf16.mxu0 0
    %2083 = vmatpush1.bf16.xpose.msra.mxu0 0
    %2084 = vmatprep.subr.bf16.mxu0 0
    %2085 = vmatpush1.bf16.xpose.msra.mxu0 0
    %2086 = vmatprep.subr.bf16.mxu0 0
    %2087 = vmatpush1.bf16.xpose.msra.mxu0 0
    %2088 = vmatprep.subr.bf16.mxu0 0
    %2089 = vmatpush1.bf16.xpose.msra.mxu0 0
    %2090 = vmatprep.subr.bf16.mxu0 0
    %2091 = vmatpush1.bf16.xpose.msra.mxu0 0
    %2092 = vmatprep.subr.bf16.mxu0 0
    %2093 = vmatpush1.bf16.xpose.msra.mxu0 0
    %2094 = vmatprep.subr.bf16.mxu0 0
    %2095 = vmatpush1.bf16.xpose.msra.mxu0 0
    %2096 = vmatprep.subr.bf16.mxu0 0
    %2097 = vmatpush1.bf16.xpose.msra.mxu0 0
    %2098 = vmatprep.subr.bf16.mxu0 0
    %2099 = vmatpush1.bf16.xpose.msra.mxu0 0
    %2100 = vmatprep.subr.bf16.mxu0 0
    %2101 = vmatpush1.bf16.xpose.msra.mxu0 0
    %2102 = vmatprep.subr.bf16.mxu0 0
    %2103 = vmatpush1.bf16.xpose.msra.mxu0 0
    %2104 = vmatprep.subr.bf16.mxu0 0
    %2105 = vmatpush1.bf16.xpose.msra.mxu0 0
    %2106 = vmatprep.mubr.bf16.mxu0 %v1628
    %2107 = vmatmul.mubr.bf16.gmra.mrb[0].mxu0 %v1627
    %v2108 = vpop.f32.mrb[0].mxu0
    %v2109 = vadd.f32 %v2068, %v2108
    %v2110 = vpop.f32.mrb[0].mxu0
    %v2111 = vpop.f32.mrb[0].mxu0
    %v2112 = vadd.f32 %v2071, %v2111
    %v2113 = vpop.f32.mrb[0].mxu0
    %2114 = vdwg.mxu0
    %2115 = vmatprep.subr.bf16.mxu0 %v1779
    %2116 = vmatpush1.bf16.xpose.msra.mxu0 %v1778
    %2117 = vmatprep.subr.bf16.mxu0 %v1795
    %2118 = vmatpush1.bf16.xpose.msra.mxu0 %v1794
    %2119 = vmatprep.subr.bf16.mxu0 0
    %2120 = vmatpush1.bf16.xpose.msra.mxu0 0
    %2121 = vmatprep.subr.bf16.mxu0 0
    %2122 = vmatpush1.bf16.xpose.msra.mxu0 0
    %2123 = vmatprep.subr.bf16.mxu0 0
    %2124 = vmatpush1.bf16.xpose.msra.mxu0 0
    %2125 = vmatprep.subr.bf16.mxu0 0
    %2126 = vmatpush1.bf16.xpose.msra.mxu0 0
    %2127 = vmatprep.subr.bf16.mxu0 0
    %2128 = vmatpush1.bf16.xpose.msra.mxu0 0
    %2129 = vmatprep.subr.bf16.mxu0 0
    %2130 = vmatpush1.bf16.xpose.msra.mxu0 0
    %2131 = vmatprep.subr.bf16.mxu0 0
    %2132 = vmatpush1.bf16.xpose.msra.mxu0 0
    %2133 = vmatprep.subr.bf16.mxu0 0
    %2134 = vmatpush1.bf16.xpose.msra.mxu0 0
    %2135 = vmatprep.subr.bf16.mxu0 0
    %2136 = vmatpush1.bf16.xpose.msra.mxu0 0
    %2137 = vmatprep.subr.bf16.mxu0 0
    %2138 = vmatpush1.bf16.xpose.msra.mxu0 0
    %2139 = vmatprep.subr.bf16.mxu0 0
    %2140 = vmatpush1.bf16.xpose.msra.mxu0 0
    %2141 = vmatprep.subr.bf16.mxu0 0
    %2142 = vmatpush1.bf16.xpose.msra.mxu0 0
    %2143 = vmatprep.subr.bf16.mxu0 0
    %2144 = vmatpush1.bf16.xpose.msra.mxu0 0
    %2145 = vmatprep.subr.bf16.mxu0 0
    %2146 = vmatpush1.bf16.xpose.msra.mxu0 0
    %2147 = vmatprep.mubr.bf16.mxu0 %v1630
    %2148 = vmatmul.mubr.bf16.gmra.mrb[0].mxu0 %v1629
    %v2149 = vpop.f32.mrb[0].mxu0
    %v2150 = vadd.f32 %v2109, %v2149
    %v2151 = vpop.f32.mrb[0].mxu0
    %v2152 = vpop.f32.mrb[0].mxu0
    %v2153 = vadd.f32 %v2112, %v2152
    %v2154 = vpop.f32.mrb[0].mxu0
    %2155 = vdwg.mxu0
    %v2156 = vadd.f32 %v957, %v2150
    %v2157 = vadd.f32 %v958, %v2153
    %v2158 = vsel %vm181, %v2156, 0.0
    %2159 = vadd.xlane.f32.xlu0 %v2158
    %v2160 = vpop.xlane.xlu0 %2159
    %v2161 = vsel %vm181, %v2157, 0.0
    %2162 = vadd.xlane.f32.xlu0 %v2161
    %v2163 = vpop.xlane.xlu0 %2162
    %v2164 = vmul.f32 %v2160, %v882
    %v2165 = vmul.f32 %v2163, %v882
    %v2166 = vsub.f32 %v2156, %v2164
    %v2167 = vsub.f32 %v2157, %v2165
    %v2168 = vmul.f32 %v2166, %v2166
    %v2169 = vmul.f32 %v2167, %v2167
    %v2170 = vsel %vm181, %v2168, 0.0
    %2171 = vadd.xlane.f32.xlu0 %v2170
    %v2172 = vpop.xlane.xlu0 %2171
    %v2173 = vsel %vm181, %v2169, 0.0
    %2174 = vadd.xlane.f32.xlu0 %v2173
    %v2175 = vpop.xlane.xlu0 %2174
    %v2176 = vmul.f32 %v2172, %v882
    %v2177 = vmul.f32 %v2175, %v882
    %v2178 = vadd.f32 %v2176, 1e-05
    %v2179 = vadd.f32 %v2177, 1e-05
    %v2180 = vrsqrt.pop %v2178
    %v2181 = vrsqrt.pop %v2179
    %v2182 = vmul.f32 %v2166, %v2180
    %v2183 = vmul.f32 %v2167, %v2181
    %v2184 = vlaneseq
    %v2185 = vshrl.u32 %v2184, 7
    %v2186 = vsub.s32 1, %v2185
    %v2187 = vrot.slane %v172, %v2186
    %v2188 = vmul.f32 %v2182, %v2187
    %v2189 = vmul.f32 %v2183, %v2187
    %v2190 = vlaneseq
    %v2191 = vshrl.u32 %v2190, 7
    %v2192 = vsub.s32 2, %v2191
    %v2193 = vrot.slane %v172, %v2192
    %v2194 = vadd.f32 %v2188, %v2193
    %v2195 = vadd.f32 %v2189, %v2193
    %s2196 = scalar_lea.vmem %s10, 16
    %v2197 = vld [vmem:[%s2196] sm:$0xff]
    %v2198 = vld [vmem:[%s2196 + $0x8] sm:$0xf]
    %s2199 = scalar_lea.vmem %s7, 128
    %v2200 = vld [vmem:[%s2199] sm:$0xff]
    %v2201 = vld [vmem:[%s2199 + $0x8] sm:$0xff]
    %v2202 = vld [vmem:[%s2199 + $0x10] sm:$0xff]
    %v2203 = vld [vmem:[%s2199 + $0x18] sm:$0xff]
    %v2204 = vlaneseq
    %v2205 = vshrl.u32 %v2204, 7
    %v2206 = vsub.s32 0, %v2205
    %v2207 = vrot.slane %v2197, %v2206
    %v2209 = vsel %vm181, %v2194, 0
    %v2212 = vsel %vm181, %v2195, 0
    %2214 = vmatprep.subr.mxu0 0.0
    %2215 = vmatpush1.msra.mxu0 %v2200
    %2216 = vmatprep.subr.mxu0 0.0
    %2217 = vmatpush1.msra.mxu0 %v2201
    %2218 = vmatprep.subr.mxu0 0.0
    %2219 = vmatpush1.msra.mxu0 %v2202
    %2220 = vmatprep.subr.mxu0 0.0
    %2221 = vmatpush1.msra.mxu0 %v2203
    %2222 = vmatprep.subr.mxu0 0.0
    %2223 = vmatpush1.msra.mxu0 0.0
    %2224 = vmatprep.subr.mxu0 0.0
    %2225 = vmatpush1.msra.mxu0 0.0
    %2226 = vmatprep.subr.mxu0 0.0
    %2227 = vmatpush1.msra.mxu0 0.0
    %2228 = vmatprep.subr.mxu0 0.0
    %2229 = vmatpush1.msra.mxu0 0.0
    %2230 = vmatprep.subr.mxu0 0.0
    %2231 = vmatpush1.msra.mxu0 0.0
    %2232 = vmatprep.subr.mxu0 0.0
    %2233 = vmatpush1.msra.mxu0 0.0
    %2234 = vmatprep.subr.mxu0 0.0
    %2235 = vmatpush1.msra.mxu0 0.0
    %2236 = vmatprep.subr.mxu0 0.0
    %2237 = vmatpush1.msra.mxu0 0.0
    %2238 = vmatprep.subr.mxu0 0.0
    %2239 = vmatpush1.msra.mxu0 0.0
    %2240 = vmatprep.subr.mxu0 0.0
    %2241 = vmatpush1.msra.mxu0 0.0
    %2242 = vmatprep.subr.mxu0 0.0
    %2243 = vmatpush1.msra.mxu0 0.0
    %2244 = vmatprep.subr.mxu0 0.0
    %2245 = vmatpush1.msra.mxu0 0.0
    %2246 = vmatprep.subr.mxu0 0.0
    %2247 = vmatpush1.msra.mxu0 0.0
    %2248 = vmatprep.subr.mxu0 0.0
    %2249 = vmatpush1.msra.mxu0 0.0
    %2250 = vmatprep.subr.mxu0 0.0
    %2251 = vmatpush1.msra.mxu0 0.0
    %2252 = vmatprep.subr.mxu0 0.0
    %2253 = vmatpush1.msra.mxu0 0.0
    %2254 = vmatprep.subr.mxu0 0.0
    %2255 = vmatpush1.msra.mxu0 0.0
    %2256 = vmatprep.subr.mxu0 0.0
    %2257 = vmatpush1.msra.mxu0 0.0
    %2258 = vmatprep.subr.mxu0 0.0
    %2259 = vmatpush1.msra.mxu0 0.0
    %2260 = vmatprep.subr.mxu0 0.0
    %2261 = vmatpush1.msra.mxu0 0.0
    %2262 = vmatprep.subr.mxu0 0.0
    %2263 = vmatpush1.msra.mxu0 0.0
    %2264 = vmatprep.subr.mxu0 0.0
    %2265 = vmatpush1.msra.mxu0 0.0
    %2266 = vmatprep.subr.mxu0 0.0
    %2267 = vmatpush1.msra.mxu0 0.0
    %2268 = vmatprep.subr.mxu0 0.0
    %2269 = vmatpush1.msra.mxu0 0.0
    %2270 = vmatprep.subr.mxu0 0.0
    %2271 = vmatpush1.msra.mxu0 0.0
    %2272 = vmatprep.subr.mxu0 0.0
    %2273 = vmatpush1.msra.mxu0 0.0
    %2274 = vmatprep.subr.mxu0 0.0
    %2275 = vmatpush1.msra.mxu0 0.0
    %2276 = vmatprep.subr.mxu0 0.0
    %2277 = vmatpush1.msra.mxu0 0.0
    %2278 = vmatprep.mubr.f32.mxu0 0.0
    %2279 = vmatmul.mubr.f32.gmra.mrb[0].mxu0 %v2209
    %v2280 = vpop.f32.mrb[0].mxu0
    %v2281 = vadd.f32 %v2207, %v2280
    %v2282 = vpop.f32.mrb[0].mxu0
    %2283 = vmatprep.mubr.f32.mxu0 0.0
    %2284 = vmatmul.mubr.f32.gmra.mrb[0].mxu0 %v2212
    %v2285 = vpop.f32.mrb[0].mxu0
    %v2286 = vadd.f32 %v2207, %v2285
    %v2287 = vpop.f32.mrb[0].mxu0
    %2288 = vdwg.mxu0
    %s2289 = scalar_lea.vmem %s7, 160
    %v2290 = vld [vmem:[%s2289] sm:$0xff]
    %v2291 = vld [vmem:[%s2289 + $0x8] sm:$0xff]
    %v2292 = vld [vmem:[%s2289 + $0x10] sm:$0xff]
    %v2293 = vld [vmem:[%s2289 + $0x18] sm:$0xff]
    %v2294 = vlaneseq
    %v2295 = vshrl.u32 %v2294, 7
    %v2296 = vsub.s32 1, %v2295
    %v2297 = vrot.slane %v2197, %v2296
    %2298 = vmatprep.subr.mxu0 0.0
    %2299 = vmatpush1.msra.mxu0 %v2290
    %2300 = vmatprep.subr.mxu0 0.0
    %2301 = vmatpush1.msra.mxu0 %v2291
    %2302 = vmatprep.subr.mxu0 0.0
    %2303 = vmatpush1.msra.mxu0 %v2292
    %2304 = vmatprep.subr.mxu0 0.0
    %2305 = vmatpush1.msra.mxu0 %v2293
    %2306 = vmatprep.subr.mxu0 0.0
    %2307 = vmatpush1.msra.mxu0 0.0
    %2308 = vmatprep.subr.mxu0 0.0
    %2309 = vmatpush1.msra.mxu0 0.0
    %2310 = vmatprep.subr.mxu0 0.0
    %2311 = vmatpush1.msra.mxu0 0.0
    %2312 = vmatprep.subr.mxu0 0.0
    %2313 = vmatpush1.msra.mxu0 0.0
    %2314 = vmatprep.subr.mxu0 0.0
    %2315 = vmatpush1.msra.mxu0 0.0
    %2316 = vmatprep.subr.mxu0 0.0
    %2317 = vmatpush1.msra.mxu0 0.0
    %2318 = vmatprep.subr.mxu0 0.0
    %2319 = vmatpush1.msra.mxu0 0.0
    %2320 = vmatprep.subr.mxu0 0.0
    %2321 = vmatpush1.msra.mxu0 0.0
    %2322 = vmatprep.subr.mxu0 0.0
    %2323 = vmatpush1.msra.mxu0 0.0
    %2324 = vmatprep.subr.mxu0 0.0
    %2325 = vmatpush1.msra.mxu0 0.0
    %2326 = vmatprep.subr.mxu0 0.0
    %2327 = vmatpush1.msra.mxu0 0.0
    %2328 = vmatprep.subr.mxu0 0.0
    %2329 = vmatpush1.msra.mxu0 0.0
    %2330 = vmatprep.subr.mxu0 0.0
    %2331 = vmatpush1.msra.mxu0 0.0
    %2332 = vmatprep.subr.mxu0 0.0
    %2333 = vmatpush1.msra.mxu0 0.0
    %2334 = vmatprep.subr.mxu0 0.0
    %2335 = vmatpush1.msra.mxu0 0.0
    %2336 = vmatprep.subr.mxu0 0.0
    %2337 = vmatpush1.msra.mxu0 0.0
    %2338 = vmatprep.subr.mxu0 0.0
    %2339 = vmatpush1.msra.mxu0 0.0
    %2340 = vmatprep.subr.mxu0 0.0
    %2341 = vmatpush1.msra.mxu0 0.0
    %2342 = vmatprep.subr.mxu0 0.0
    %2343 = vmatpush1.msra.mxu0 0.0
    %2344 = vmatprep.subr.mxu0 0.0
    %2345 = vmatpush1.msra.mxu0 0.0
    %2346 = vmatprep.subr.mxu0 0.0
    %2347 = vmatpush1.msra.mxu0 0.0
    %2348 = vmatprep.subr.mxu0 0.0
    %2349 = vmatpush1.msra.mxu0 0.0
    %2350 = vmatprep.subr.mxu0 0.0
    %2351 = vmatpush1.msra.mxu0 0.0
    %2352 = vmatprep.subr.mxu0 0.0
    %2353 = vmatpush1.msra.mxu0 0.0
    %2354 = vmatprep.subr.mxu0 0.0
    %2355 = vmatpush1.msra.mxu0 0.0
    %2356 = vmatprep.subr.mxu0 0.0
    %2357 = vmatpush1.msra.mxu0 0.0
    %2358 = vmatprep.subr.mxu0 0.0
    %2359 = vmatpush1.msra.mxu0 0.0
    %2360 = vmatprep.subr.mxu0 0.0
    %2361 = vmatpush1.msra.mxu0 0.0
    %2362 = vmatprep.mubr.f32.mxu0 0.0
    %2363 = vmatmul.mubr.f32.gmra.mrb[0].mxu0 %v2209
    %v2364 = vpop.f32.mrb[0].mxu0
    %v2365 = vadd.f32 %v2297, %v2364
    %v2366 = vpop.f32.mrb[0].mxu0
    %2367 = vmatprep.mubr.f32.mxu0 0.0
    %2368 = vmatmul.mubr.f32.gmra.mrb[0].mxu0 %v2212
    %v2369 = vpop.f32.mrb[0].mxu0
    %v2370 = vadd.f32 %v2297, %v2369
    %v2371 = vpop.f32.mrb[0].mxu0
    %2372 = vmatprep.mubr.f32.mxu0 0.0
    %2373 = vmatmul.mubr.f32.gmra.mrb[0].mxu0 %v2209
    %v2374 = vpop.f32.mrb[0].mxu0
    %v2375 = vadd.f32 %v2297, %v2374
    %v2376 = vpop.f32.mrb[0].mxu0
    %2377 = vmatprep.mubr.f32.mxu0 0.0
    %2378 = vmatmul.mubr.f32.gmra.mrb[0].mxu0 %v2212
    %v2379 = vpop.f32.mrb[0].mxu0
    %v2380 = vadd.f32 %v2297, %v2379
    %v2381 = vpop.f32.mrb[0].mxu0
    %2382 = vmatprep.mubr.f32.mxu0 0.0
    %2383 = vmatmul.mubr.f32.gmra.mrb[0].mxu0 %v2209
    %v2384 = vpop.f32.mrb[0].mxu0
    %v2385 = vadd.f32 %v2297, %v2384
    %v2386 = vpop.f32.mrb[0].mxu0
    %2387 = vmatprep.mubr.f32.mxu0 0.0
    %2388 = vmatmul.mubr.f32.gmra.mrb[0].mxu0 %v2212
    %v2389 = vpop.f32.mrb[0].mxu0
    %v2390 = vadd.f32 %v2297, %v2389
    %v2391 = vpop.f32.mrb[0].mxu0
    %2392 = vmatprep.mubr.f32.mxu0 0.0
    %2393 = vmatmul.mubr.f32.gmra.mrb[0].mxu0 %v2209
    %v2394 = vpop.f32.mrb[0].mxu0
    %v2395 = vadd.f32 %v2297, %v2394
    %v2396 = vpop.f32.mrb[0].mxu0
    %2397 = vmatprep.mubr.f32.mxu0 0.0
    %2398 = vmatmul.mubr.f32.gmra.mrb[0].mxu0 %v2212
    %v2399 = vpop.f32.mrb[0].mxu0
    %v2400 = vadd.f32 %v2297, %v2399
    %v2401 = vpop.f32.mrb[0].mxu0
    %2402 = vdwg.mxu0
    %v2403 = vmul.f32 %v2365, %v161
    %v2404 = vmul.f32 %v2370, %v162
    %v2405 = vmul.f32 %v2375, %v163
    %v2406 = vmul.f32 %v2380, %v164
    %v2407 = vmul.f32 %v2385, %v165
    %v2408 = vmul.f32 %v2390, %v166
    %v2409 = vmul.f32 %v2395, %v167
    %v2410 = vmul.f32 %v2400, %v168
    %s2411 = scalar_lea.vmem %s7, 192
    %v2412 = vld [vmem:[%s2411] sm:$0xff]
    %v2413 = vld [vmem:[%s2411 + $0x8] sm:$0xff]
    %v2414 = vld [vmem:[%s2411 + $0x10] sm:$0xff]
    %v2415 = vld [vmem:[%s2411 + $0x18] sm:$0xff]
    %v2416 = vlaneseq
    %v2417 = vshrl.u32 %v2416, 7
    %v2418 = vsub.s32 2, %v2417
    %v2419 = vrot.slane %v2197, %v2418
    %2420 = vmatprep.subr.mxu0 0.0
    %2421 = vmatpush1.msra.mxu0 %v2412
    %2422 = vmatprep.subr.mxu0 0.0
    %2423 = vmatpush1.msra.mxu0 %v2413
    %2424 = vmatprep.subr.mxu0 0.0
    %2425 = vmatpush1.msra.mxu0 %v2414
    %2426 = vmatprep.subr.mxu0 0.0
    %2427 = vmatpush1.msra.mxu0 %v2415
    %2428 = vmatprep.subr.mxu0 0.0
    %2429 = vmatpush1.msra.mxu0 0.0
    %2430 = vmatprep.subr.mxu0 0.0
    %2431 = vmatpush1.msra.mxu0 0.0
    %2432 = vmatprep.subr.mxu0 0.0
    %2433 = vmatpush1.msra.mxu0 0.0
    %2434 = vmatprep.subr.mxu0 0.0
    %2435 = vmatpush1.msra.mxu0 0.0
    %2436 = vmatprep.subr.mxu0 0.0
    %2437 = vmatpush1.msra.mxu0 0.0
    %2438 = vmatprep.subr.mxu0 0.0
    %2439 = vmatpush1.msra.mxu0 0.0
    %2440 = vmatprep.subr.mxu0 0.0
    %2441 = vmatpush1.msra.mxu0 0.0
    %2442 = vmatprep.subr.mxu0 0.0
    %2443 = vmatpush1.msra.mxu0 0.0
    %2444 = vmatprep.subr.mxu0 0.0
    %2445 = vmatpush1.msra.mxu0 0.0
    %2446 = vmatprep.subr.mxu0 0.0
    %2447 = vmatpush1.msra.mxu0 0.0
    %2448 = vmatprep.subr.mxu0 0.0
    %2449 = vmatpush1.msra.mxu0 0.0
    %2450 = vmatprep.subr.mxu0 0.0
    %2451 = vmatpush1.msra.mxu0 0.0
    %2452 = vmatprep.subr.mxu0 0.0
    %2453 = vmatpush1.msra.mxu0 0.0
    %2454 = vmatprep.subr.mxu0 0.0
    %2455 = vmatpush1.msra.mxu0 0.0
    %2456 = vmatprep.subr.mxu0 0.0
    %2457 = vmatpush1.msra.mxu0 0.0
    %2458 = vmatprep.subr.mxu0 0.0
    %2459 = vmatpush1.msra.mxu0 0.0
    %2460 = vmatprep.subr.mxu0 0.0
    %2461 = vmatpush1.msra.mxu0 0.0
    %2462 = vmatprep.subr.mxu0 0.0
    %2463 = vmatpush1.msra.mxu0 0.0
    %2464 = vmatprep.subr.mxu0 0.0
    %2465 = vmatpush1.msra.mxu0 0.0
    %2466 = vmatprep.subr.mxu0 0.0
    %2467 = vmatpush1.msra.mxu0 0.0
    %2468 = vmatprep.subr.mxu0 0.0
    %2469 = vmatpush1.msra.mxu0 0.0
    %2470 = vmatprep.subr.mxu0 0.0
    %2471 = vmatpush1.msra.mxu0 0.0
    %2472 = vmatprep.subr.mxu0 0.0
    %2473 = vmatpush1.msra.mxu0 0.0
    %2474 = vmatprep.subr.mxu0 0.0
    %2475 = vmatpush1.msra.mxu0 0.0
    %2476 = vmatprep.subr.mxu0 0.0
    %2477 = vmatpush1.msra.mxu0 0.0
    %2478 = vmatprep.subr.mxu0 0.0
    %2479 = vmatpush1.msra.mxu0 0.0
    %2480 = vmatprep.subr.mxu0 0.0
    %2481 = vmatpush1.msra.mxu0 0.0
    %2482 = vmatprep.subr.mxu0 0.0
    %2483 = vmatpush1.msra.mxu0 0.0
    %2484 = vmatprep.mubr.f32.mxu0 0.0
    %2485 = vmatmul.mubr.f32.gmra.mrb[0].mxu0 %v2209
    %v2486 = vpop.f32.mrb[0].mxu0
    %v2487 = vadd.f32 %v2419, %v2486
    %v2488 = vpop.f32.mrb[0].mxu0
    %2489 = vmatprep.mubr.f32.mxu0 0.0
    %2490 = vmatmul.mubr.f32.gmra.mrb[0].mxu0 %v2212
    %v2491 = vpop.f32.mrb[0].mxu0
    %v2492 = vadd.f32 %v2419, %v2491
    %v2493 = vpop.f32.mrb[0].mxu0
    %2494 = vmatprep.mubr.f32.mxu0 0.0
    %2495 = vmatmul.mubr.f32.gmra.mrb[0].mxu0 %v2209
    %v2496 = vpop.f32.mrb[0].mxu0
    %v2497 = vadd.f32 %v2419, %v2496
    %v2498 = vpop.f32.mrb[0].mxu0
    %2499 = vmatprep.mubr.f32.mxu0 0.0
    %2500 = vmatmul.mubr.f32.gmra.mrb[0].mxu0 %v2212
    %v2501 = vpop.f32.mrb[0].mxu0
    %v2502 = vadd.f32 %v2419, %v2501
    %v2503 = vpop.f32.mrb[0].mxu0
    %2504 = vmatprep.mubr.f32.mxu0 0.0
    %2505 = vmatmul.mubr.f32.gmra.mrb[0].mxu0 %v2209
    %v2506 = vpop.f32.mrb[0].mxu0
    %v2507 = vadd.f32 %v2419, %v2506
    %v2508 = vpop.f32.mrb[0].mxu0
    %2509 = vmatprep.mubr.f32.mxu0 0.0
    %2510 = vmatmul.mubr.f32.gmra.mrb[0].mxu0 %v2212
    %v2511 = vpop.f32.mrb[0].mxu0
    %v2512 = vadd.f32 %v2419, %v2511
    %v2513 = vpop.f32.mrb[0].mxu0
    %2514 = vmatprep.mubr.f32.mxu0 0.0
    %2515 = vmatmul.mubr.f32.gmra.mrb[0].mxu0 %v2209
    %v2516 = vpop.f32.mrb[0].mxu0
    %v2517 = vadd.f32 %v2419, %v2516
    %v2518 = vpop.f32.mrb[0].mxu0
    %2519 = vmatprep.mubr.f32.mxu0 0.0
    %2520 = vmatmul.mubr.f32.gmra.mrb[0].mxu0 %v2212
    %v2521 = vpop.f32.mrb[0].mxu0
    %v2522 = vadd.f32 %v2419, %v2521
    %v2523 = vpop.f32.mrb[0].mxu0
    %2524 = vdwg.mxu0
    %v2525 = vmul.f32 %v2487, %v161
    %v2526 = vmul.f32 %v2492, %v162
    %v2527 = vmul.f32 %v2497, %v163
    %v2528 = vmul.f32 %v2502, %v164
    %v2529 = vmul.f32 %v2507, %v165
    %v2530 = vmul.f32 %v2512, %v166
    %v2531 = vmul.f32 %v2517, %v167
    %v2532 = vmul.f32 %v2522, %v168
    %v2534 = vsel %vm181, %v2281, 0
    %v2537 = vsel %vm181, %v2286, 0
    %v2540 = vsel %vm181, %v2403, 0
    %v2543 = vsel %vm181, %v2404, 0
    %v2546 = vsel %vm181, %v2405, 0
    %v2549 = vsel %vm181, %v2406, 0
    %v2552 = vsel %vm181, %v2407, 0
    %v2555 = vsel %vm181, %v2408, 0
    %v2558 = vsel %vm181, %v2409, 0
    %v2561 = vsel %vm181, %v2410, 0
    %2563 = vmatprep.subr.mxu0 0.0
    %2564 = vmatpush1.xpose.msra.mxu0 %v2540
    %2565 = vmatprep.subr.mxu0 0.0
    %2566 = vmatpush1.xpose.msra.mxu0 %v2543
    %2567 = vmatprep.subr.mxu0 0.0
    %2568 = vmatpush1.xpose.msra.mxu0 %v2546
    %2569 = vmatprep.subr.mxu0 0.0
    %2570 = vmatpush1.xpose.msra.mxu0 %v2549
    %2571 = vmatprep.subr.mxu0 0.0
    %2572 = vmatpush1.xpose.msra.mxu0 %v2552
    %2573 = vmatprep.subr.mxu0 0.0
    %2574 = vmatpush1.xpose.msra.mxu0 %v2555
    %2575 = vmatprep.subr.mxu0 0.0
    %2576 = vmatpush1.xpose.msra.mxu0 %v2558
    %2577 = vmatprep.subr.mxu0 0.0
    %2578 = vmatpush1.xpose.msra.mxu0 %v2561
    %2579 = vmatprep.subr.mxu0 0.0
    %2580 = vmatpush1.xpose.msra.mxu0 0.0
    %2581 = vmatprep.subr.mxu0 0.0
    %2582 = vmatpush1.xpose.msra.mxu0 0.0
    %2583 = vmatprep.subr.mxu0 0.0
    %2584 = vmatpush1.xpose.msra.mxu0 0.0
    %2585 = vmatprep.subr.mxu0 0.0
    %2586 = vmatpush1.xpose.msra.mxu0 0.0
    %2587 = vmatprep.subr.mxu0 0.0
    %2588 = vmatpush1.xpose.msra.mxu0 0.0
    %2589 = vmatprep.subr.mxu0 0.0
    %2590 = vmatpush1.xpose.msra.mxu0 0.0
    %2591 = vmatprep.subr.mxu0 0.0
    %2592 = vmatpush1.xpose.msra.mxu0 0.0
    %2593 = vmatprep.subr.mxu0 0.0
    %2594 = vmatpush1.xpose.msra.mxu0 0.0
    %2595 = vmatprep.subr.mxu0 0.0
    %2596 = vmatpush1.xpose.msra.mxu0 0.0
    %2597 = vmatprep.subr.mxu0 0.0
    %2598 = vmatpush1.xpose.msra.mxu0 0.0
    %2599 = vmatprep.subr.mxu0 0.0
    %2600 = vmatpush1.xpose.msra.mxu0 0.0
    %2601 = vmatprep.subr.mxu0 0.0
    %2602 = vmatpush1.xpose.msra.mxu0 0.0
    %2603 = vmatprep.subr.mxu0 0.0
    %2604 = vmatpush1.xpose.msra.mxu0 0.0
    %2605 = vmatprep.subr.mxu0 0.0
    %2606 = vmatpush1.xpose.msra.mxu0 0.0
    %2607 = vmatprep.subr.mxu0 0.0
    %2608 = vmatpush1.xpose.msra.mxu0 0.0
    %2609 = vmatprep.subr.mxu0 0.0
    %2610 = vmatpush1.xpose.msra.mxu0 0.0
    %2611 = vmatprep.subr.mxu0 0.0
    %2612 = vmatpush1.xpose.msra.mxu0 0.0
    %2613 = vmatprep.subr.mxu0 0.0
    %2614 = vmatpush1.xpose.msra.mxu0 0.0
    %2615 = vmatprep.subr.mxu0 0.0
    %2616 = vmatpush1.xpose.msra.mxu0 0.0
    %2617 = vmatprep.subr.mxu0 0.0
    %2618 = vmatpush1.xpose.msra.mxu0 0.0
    %2619 = vmatprep.subr.mxu0 0.0
    %2620 = vmatpush1.xpose.msra.mxu0 0.0
    %2621 = vmatprep.subr.mxu0 0.0
    %2622 = vmatpush1.xpose.msra.mxu0 0.0
    %2623 = vmatprep.subr.mxu0 0.0
    %2624 = vmatpush1.xpose.msra.mxu0 0.0
    %2625 = vmatprep.subr.mxu0 0.0
    %2626 = vmatpush1.xpose.msra.mxu0 0.0
    %2627 = vmatprep.mubr.f32.mxu0 0.0
    %2628 = vmatmul.mubr.f32.gmra.mrb[0].mxu0 %v2534
    %v2629 = vpop.f32.mrb[0].mxu0
    %v2630 = vadd.f32 %v169, %v2629
    %v2631 = vpop.f32.mrb[0].mxu0
    %2632 = vmatprep.mubr.f32.mxu0 0.0
    %2633 = vmatmul.mubr.f32.gmra.mrb[0].mxu0 %v2537
    %v2634 = vpop.f32.mrb[0].mxu0
    %v2635 = vadd.f32 %v170, %v2634
    %v2636 = vpop.f32.mrb[0].mxu0
    %2637 = vdwg.mxu0
    %v2638 = vsel %vm79, %v2630, -inf
    %2639 = vmax.xlane.f32.xlu0 %v2638
    %v2640 = vpop.xlane.xlu0 %2639
    %v2641 = vsel %vm79, %v2635, -inf
    %2642 = vmax.xlane.f32.xlu0 %v2641
    %v2643 = vpop.xlane.xlu0 %2642
    %v2644 = vsub.f32 %v2630, %v2640
    %v2645 = vsub.f32 %v2635, %v2643
    %v2646 = vmul.f32 %v2644, 1.442695
    %v2647 = vpow.pop %v2646
    %v2648 = vmul.f32 %v2645, 1.442695
    %v2649 = vpow.pop %v2648
    %v2651 = vsel %vm79, %v2647, 0
    %v2654 = vsel %vm79, %v2649, 0
    %2656 = vmatprep.subr.mxu0 0.0
    %2657 = vmatpush1.msra.mxu0 %v161
    %2658 = vmatprep.subr.mxu0 0.0
    %2659 = vmatpush1.msra.mxu0 %v162
    %2660 = vmatprep.subr.mxu0 0.0
    %2661 = vmatpush1.msra.mxu0 %v163
    %2662 = vmatprep.subr.mxu0 0.0
    %2663 = vmatpush1.msra.mxu0 %v164
    %2664 = vmatprep.subr.mxu0 0.0
    %2665 = vmatpush1.msra.mxu0 %v165
    %2666 = vmatprep.subr.mxu0 0.0
    %2667 = vmatpush1.msra.mxu0 %v166
    %2668 = vmatprep.subr.mxu0 0.0
    %2669 = vmatpush1.msra.mxu0 %v167
    %2670 = vmatprep.subr.mxu0 0.0
    %2671 = vmatpush1.msra.mxu0 %v168
    %2672 = vmatprep.subr.mxu0 0.0
    %2673 = vmatpush1.msra.mxu0 0.0
    %2674 = vmatprep.subr.mxu0 0.0
    %2675 = vmatpush1.msra.mxu0 0.0
    %2676 = vmatprep.subr.mxu0 0.0
    %2677 = vmatpush1.msra.mxu0 0.0
    %2678 = vmatprep.subr.mxu0 0.0
    %2679 = vmatpush1.msra.mxu0 0.0
    %2680 = vmatprep.subr.mxu0 0.0
    %2681 = vmatpush1.msra.mxu0 0.0
    %2682 = vmatprep.subr.mxu0 0.0
    %2683 = vmatpush1.msra.mxu0 0.0
    %2684 = vmatprep.subr.mxu0 0.0
    %2685 = vmatpush1.msra.mxu0 0.0
    %2686 = vmatprep.subr.mxu0 0.0
    %2687 = vmatpush1.msra.mxu0 0.0
    %2688 = vmatprep.subr.mxu0 0.0
    %2689 = vmatpush1.msra.mxu0 0.0
    %2690 = vmatprep.subr.mxu0 0.0
    %2691 = vmatpush1.msra.mxu0 0.0
    %2692 = vmatprep.subr.mxu0 0.0
    %2693 = vmatpush1.msra.mxu0 0.0
    %2694 = vmatprep.subr.mxu0 0.0
    %2695 = vmatpush1.msra.mxu0 0.0
    %2696 = vmatprep.subr.mxu0 0.0
    %2697 = vmatpush1.msra.mxu0 0.0
    %2698 = vmatprep.subr.mxu0 0.0
    %2699 = vmatpush1.msra.mxu0 0.0
    %2700 = vmatprep.subr.mxu0 0.0
    %2701 = vmatpush1.msra.mxu0 0.0
    %2702 = vmatprep.subr.mxu0 0.0
    %2703 = vmatpush1.msra.mxu0 0.0
    %2704 = vmatprep.subr.mxu0 0.0
    %2705 = vmatpush1.msra.mxu0 0.0
    %2706 = vmatprep.subr.mxu0 0.0
    %2707 = vmatpush1.msra.mxu0 0.0
    %2708 = vmatprep.subr.mxu0 0.0
    %2709 = vmatpush1.msra.mxu0 0.0
    %2710 = vmatprep.subr.mxu0 0.0
    %2711 = vmatpush1.msra.mxu0 0.0
    %2712 = vmatprep.subr.mxu0 0.0
    %2713 = vmatpush1.msra.mxu0 0.0
    %2714 = vmatprep.subr.mxu0 0.0
    %2715 = vmatpush1.msra.mxu0 0.0
    %2716 = vmatprep.subr.mxu0 0.0
    %2717 = vmatpush1.msra.mxu0 0.0
    %2718 = vmatprep.subr.mxu0 0.0
    %2719 = vmatpush1.msra.mxu0 0.0
    %2720 = vmatprep.mubr.f32.mxu0 0.0
    %2721 = vmatmul.mubr.f32.gmra.mrb[0].mxu0 %v2651
    %v2722 = vpop.f32.mrb[0].mxu0
    %v2723 = vadd.f32 0.0, %v2722
    %v2724 = vpop.f32.mrb[0].mxu0
    %2725 = vmatprep.mubr.f32.mxu0 0.0
    %2726 = vmatmul.mubr.f32.gmra.mrb[0].mxu0 %v2654
    %v2727 = vpop.f32.mrb[0].mxu0
    %v2728 = vadd.f32 0.0, %v2727
    %v2729 = vpop.f32.mrb[0].mxu0
    %2730 = vdwg.mxu0
    %2731 = vmatprep.subr.mxu0 0.0
    %2732 = vmatpush1.msra.mxu0 %v2525
    %2733 = vmatprep.subr.mxu0 0.0
    %2734 = vmatpush1.msra.mxu0 %v2526
    %2735 = vmatprep.subr.mxu0 0.0
    %2736 = vmatpush1.msra.mxu0 %v2527
    %2737 = vmatprep.subr.mxu0 0.0
    %2738 = vmatpush1.msra.mxu0 %v2528
    %2739 = vmatprep.subr.mxu0 0.0
    %2740 = vmatpush1.msra.mxu0 %v2529
    %2741 = vmatprep.subr.mxu0 0.0
    %2742 = vmatpush1.msra.mxu0 %v2530
    %2743 = vmatprep.subr.mxu0 0.0
    %2744 = vmatpush1.msra.mxu0 %v2531
    %2745 = vmatprep.subr.mxu0 0.0
    %2746 = vmatpush1.msra.mxu0 %v2532
    %2747 = vmatprep.subr.mxu0 0.0
    %2748 = vmatpush1.msra.mxu0 0.0
    %2749 = vmatprep.subr.mxu0 0.0
    %2750 = vmatpush1.msra.mxu0 0.0
    %2751 = vmatprep.subr.mxu0 0.0
    %2752 = vmatpush1.msra.mxu0 0.0
    %2753 = vmatprep.subr.mxu0 0.0
    %2754 = vmatpush1.msra.mxu0 0.0
    %2755 = vmatprep.subr.mxu0 0.0
    %2756 = vmatpush1.msra.mxu0 0.0
    %2757 = vmatprep.subr.mxu0 0.0
    %2758 = vmatpush1.msra.mxu0 0.0
    %2759 = vmatprep.subr.mxu0 0.0
    %2760 = vmatpush1.msra.mxu0 0.0
    %2761 = vmatprep.subr.mxu0 0.0
    %2762 = vmatpush1.msra.mxu0 0.0
    %2763 = vmatprep.subr.mxu0 0.0
    %2764 = vmatpush1.msra.mxu0 0.0
    %2765 = vmatprep.subr.mxu0 0.0
    %2766 = vmatpush1.msra.mxu0 0.0
    %2767 = vmatprep.subr.mxu0 0.0
    %2768 = vmatpush1.msra.mxu0 0.0
    %2769 = vmatprep.subr.mxu0 0.0
    %2770 = vmatpush1.msra.mxu0 0.0
    %2771 = vmatprep.subr.mxu0 0.0
    %2772 = vmatpush1.msra.mxu0 0.0
    %2773 = vmatprep.subr.mxu0 0.0
    %2774 = vmatpush1.msra.mxu0 0.0
    %2775 = vmatprep.subr.mxu0 0.0
    %2776 = vmatpush1.msra.mxu0 0.0
    %2777 = vmatprep.subr.mxu0 0.0
    %2778 = vmatpush1.msra.mxu0 0.0
    %2779 = vmatprep.subr.mxu0 0.0
    %2780 = vmatpush1.msra.mxu0 0.0
    %2781 = vmatprep.subr.mxu0 0.0
    %2782 = vmatpush1.msra.mxu0 0.0
    %2783 = vmatprep.subr.mxu0 0.0
    %2784 = vmatpush1.msra.mxu0 0.0
    %2785 = vmatprep.subr.mxu0 0.0
    %2786 = vmatpush1.msra.mxu0 0.0
    %2787 = vmatprep.subr.mxu0 0.0
    %2788 = vmatpush1.msra.mxu0 0.0
    %2789 = vmatprep.subr.mxu0 0.0
    %2790 = vmatpush1.msra.mxu0 0.0
    %2791 = vmatprep.subr.mxu0 0.0
    %2792 = vmatpush1.msra.mxu0 0.0
    %2793 = vmatprep.subr.mxu0 0.0
    %2794 = vmatpush1.msra.mxu0 0.0
    %2795 = vmatprep.mubr.f32.mxu0 0.0
    %2796 = vmatmul.mubr.f32.gmra.mrb[0].mxu0 %v2651
    %v2797 = vpop.f32.mrb[0].mxu0
    %v2798 = vadd.f32 0.0, %v2797
    %v2799 = vpop.f32.mrb[0].mxu0
    %2800 = vmatprep.mubr.f32.mxu0 0.0
    %2801 = vmatmul.mubr.f32.gmra.mrb[0].mxu0 %v2654
    %v2802 = vpop.f32.mrb[0].mxu0
    %v2803 = vadd.f32 0.0, %v2802
    %v2804 = vpop.f32.mrb[0].mxu0
    %2805 = vdwg.mxu0
    %v2806 = vrcp.pop %v2723
    %v2807 = vmul.f32 %v2798, %v2806
    %v2808 = vrcp.pop %v2728
    %v2809 = vmul.f32 %v2803, %v2808
    %s2810 = scalar_lea.vmem %s7, 224
    %v2811 = vld [vmem:[%s2810] sm:$0xff]
    %v2812 = vld [vmem:[%s2810 + $0x8] sm:$0xff]
    %v2813 = vld [vmem:[%s2810 + $0x10] sm:$0xff]
    %v2814 = vld [vmem:[%s2810 + $0x18] sm:$0xff]
    %v2815 = vlaneseq
    %v2816 = vshrl.u32 %v2815, 7
    %v2817 = vsub.s32 3, %v2816
    %v2818 = vrot.slane %v2197, %v2817
    %v2820 = vsel %vm181, %v2807, 0
    %v2823 = vsel %vm181, %v2809, 0
    %2825 = vmatprep.subr.mxu0 0.0
    %2826 = vmatpush1.msra.mxu0 %v2811
    %2827 = vmatprep.subr.mxu0 0.0
    %2828 = vmatpush1.msra.mxu0 %v2812
    %2829 = vmatprep.subr.mxu0 0.0
    %2830 = vmatpush1.msra.mxu0 %v2813
    %2831 = vmatprep.subr.mxu0 0.0
    %2832 = vmatpush1.msra.mxu0 %v2814
    %2833 = vmatprep.subr.mxu0 0.0
    %2834 = vmatpush1.msra.mxu0 0.0
    %2835 = vmatprep.subr.mxu0 0.0
    %2836 = vmatpush1.msra.mxu0 0.0
    %2837 = vmatprep.subr.mxu0 0.0
    %2838 = vmatpush1.msra.mxu0 0.0
    %2839 = vmatprep.subr.mxu0 0.0
    %2840 = vmatpush1.msra.mxu0 0.0
    %2841 = vmatprep.subr.mxu0 0.0
    %2842 = vmatpush1.msra.mxu0 0.0
    %2843 = vmatprep.subr.mxu0 0.0
    %2844 = vmatpush1.msra.mxu0 0.0
    %2845 = vmatprep.subr.mxu0 0.0
    %2846 = vmatpush1.msra.mxu0 0.0
    %2847 = vmatprep.subr.mxu0 0.0
    %2848 = vmatpush1.msra.mxu0 0.0
    %2849 = vmatprep.subr.mxu0 0.0
    %2850 = vmatpush1.msra.mxu0 0.0
    %2851 = vmatprep.subr.mxu0 0.0
    %2852 = vmatpush1.msra.mxu0 0.0
    %2853 = vmatprep.subr.mxu0 0.0
    %2854 = vmatpush1.msra.mxu0 0.0
    %2855 = vmatprep.subr.mxu0 0.0
    %2856 = vmatpush1.msra.mxu0 0.0
    %2857 = vmatprep.subr.mxu0 0.0
    %2858 = vmatpush1.msra.mxu0 0.0
    %2859 = vmatprep.subr.mxu0 0.0
    %2860 = vmatpush1.msra.mxu0 0.0
    %2861 = vmatprep.subr.mxu0 0.0
    %2862 = vmatpush1.msra.mxu0 0.0
    %2863 = vmatprep.subr.mxu0 0.0
    %2864 = vmatpush1.msra.mxu0 0.0
    %2865 = vmatprep.subr.mxu0 0.0
    %2866 = vmatpush1.msra.mxu0 0.0
    %2867 = vmatprep.subr.mxu0 0.0
    %2868 = vmatpush1.msra.mxu0 0.0
    %2869 = vmatprep.subr.mxu0 0.0
    %2870 = vmatpush1.msra.mxu0 0.0
    %2871 = vmatprep.subr.mxu0 0.0
    %2872 = vmatpush1.msra.mxu0 0.0
    %2873 = vmatprep.subr.mxu0 0.0
    %2874 = vmatpush1.msra.mxu0 0.0
    %2875 = vmatprep.subr.mxu0 0.0
    %2876 = vmatpush1.msra.mxu0 0.0
    %2877 = vmatprep.subr.mxu0 0.0
    %2878 = vmatpush1.msra.mxu0 0.0
    %2879 = vmatprep.subr.mxu0 0.0
    %2880 = vmatpush1.msra.mxu0 0.0
    %2881 = vmatprep.subr.mxu0 0.0
    %2882 = vmatpush1.msra.mxu0 0.0
    %2883 = vmatprep.subr.mxu0 0.0
    %2884 = vmatpush1.msra.mxu0 0.0
    %2885 = vmatprep.subr.mxu0 0.0
    %2886 = vmatpush1.msra.mxu0 0.0
    %2887 = vmatprep.subr.mxu0 0.0
    %2888 = vmatpush1.msra.mxu0 0.0
    %2889 = vmatprep.mubr.f32.mxu0 0.0
    %2890 = vmatmul.mubr.f32.gmra.mrb[0].mxu0 %v2820
    %v2891 = vpop.f32.mrb[0].mxu0
    %v2892 = vadd.f32 %v2818, %v2891
    %v2893 = vpop.f32.mrb[0].mxu0
    %2894 = vmatprep.mubr.f32.mxu0 0.0
    %2895 = vmatmul.mubr.f32.gmra.mrb[0].mxu0 %v2823
    %v2896 = vpop.f32.mrb[0].mxu0
    %v2897 = vadd.f32 %v2818, %v2896
    %v2898 = vpop.f32.mrb[0].mxu0
    %2899 = vdwg.mxu0
    %v2900 = vadd.f32 %v2194, %v2892
    %v2901 = vadd.f32 %v2195, %v2897
    %v2902 = vsel %vm181, %v2900, 0.0
    %2903 = vadd.xlane.f32.xlu0 %v2902
    %v2904 = vpop.xlane.xlu0 %2903
    %v2905 = vsel %vm181, %v2901, 0.0
    %2906 = vadd.xlane.f32.xlu0 %v2905
    %v2907 = vpop.xlane.xlu0 %2906
    %v2908 = vmul.f32 %v2904, %v882
    %v2909 = vmul.f32 %v2907, %v882
    %v2910 = vsub.f32 %v2900, %v2908
    %v2911 = vsub.f32 %v2901, %v2909
    %v2912 = vmul.f32 %v2910, %v2910
    %v2913 = vmul.f32 %v2911, %v2911
    %v2914 = vsel %vm181, %v2912, 0.0
    %2915 = vadd.xlane.f32.xlu0 %v2914
    %v2916 = vpop.xlane.xlu0 %2915
    %v2917 = vsel %vm181, %v2913, 0.0
    %2918 = vadd.xlane.f32.xlu0 %v2917
    %v2919 = vpop.xlane.xlu0 %2918
    %v2920 = vmul.f32 %v2916, %v882
    %v2921 = vmul.f32 %v2919, %v882
    %v2922 = vadd.f32 %v2920, 1e-05
    %v2923 = vadd.f32 %v2921, 1e-05
    %v2924 = vrsqrt.pop %v2922
    %v2925 = vrsqrt.pop %v2923
    %v2926 = vmul.f32 %v2910, %v2924
    %v2927 = vmul.f32 %v2911, %v2925
    %v2928 = vlaneseq
    %v2929 = vshrl.u32 %v2928, 7
    %v2930 = vsub.s32 5, %v2929
    %v2931 = vrot.slane %v2197, %v2930
    %v2932 = vmul.f32 %v2926, %v2931
    %v2933 = vmul.f32 %v2927, %v2931
    %v2934 = vlaneseq
    %v2935 = vshrl.u32 %v2934, 7
    %v2936 = vsub.s32 6, %v2935
    %v2937 = vrot.slane %v2197, %v2936
    %v2938 = vadd.f32 %v2932, %v2937
    %v2939 = vadd.f32 %v2933, %v2937
    %v2940 = vlaneseq
    %v2941 = vshrl.u32 %v2940, 7
    %v2942 = vsub.s32 4, %v2941
    %v2943 = vrot.slane %v2197, %v2942
    %v2944 = vadd.f32 %v2938, %v2943
    %v2945 = vadd.f32 %v2939, %v2943
    %v2946 = vsel %vm181, %v2944, 0.0
    %2947 = vadd.xlane.f32.xlu0 %v2946
    %v2948 = vpop.xlane.xlu0 %2947
    %v2949 = vsel %vm181, %v2945, 0.0
    %2950 = vadd.xlane.f32.xlu0 %v2949
    %v2951 = vpop.xlane.xlu0 %2950
    %v2952 = vmul.f32 %v2948, %v882
    %v2953 = vmul.f32 %v2951, %v882
    %v2954 = vsub.f32 %v2944, %v2952
    %v2955 = vsub.f32 %v2945, %v2953
    %v2956 = vmul.f32 %v2954, %v2954
    %v2957 = vmul.f32 %v2955, %v2955
    %v2958 = vsel %vm181, %v2956, 0.0
    %2959 = vadd.xlane.f32.xlu0 %v2958
    %v2960 = vpop.xlane.xlu0 %2959
    %v2961 = vsel %vm181, %v2957, 0.0
    %2962 = vadd.xlane.f32.xlu0 %v2961
    %v2963 = vpop.xlane.xlu0 %2962
    %v2964 = vmul.f32 %v2960, %v882
    %v2965 = vmul.f32 %v2963, %v882
    %v2966 = vadd.f32 %v2964, 1e-05
    %v2967 = vadd.f32 %v2965, 1e-05
    %v2968 = vrsqrt.pop %v2966
    %v2969 = vrsqrt.pop %v2967
    %v2970 = vmul.f32 %v2954, %v2968
    %v2971 = vmul.f32 %v2955, %v2969
    %v2972 = vlaneseq
    %v2973 = vshrl.u32 %v2972, 7
    %v2974 = vsub.s32 7, %v2973
    %v2975 = vrot.slane %v2197, %v2974
    %v2976 = vmul.f32 %v2970, %v2975
    %v2977 = vmul.f32 %v2971, %v2975
    %v2978 = vlaneseq
    %v2979 = vshrl.u32 %v2978, 7
    %v2980 = vsub.s32 0, %v2979
    %v2981 = vrot.slane %v2198, %v2980
    %v2982 = vadd.f32 %v2976, %v2981
    %v2983 = vadd.f32 %v2977, %v2981
    %v2984 = vpack.c.bf16 %v2983, %v2982
    %s2985 = scalar_lea.vmem [#allocation2], 512
    %v2986 = vld [vmem:[%s2985] sm:$0xff]
    %v2987 = vld [vmem:[%s2985 + $0x8] sm:$0xff]
    %v2988 = vld [vmem:[%s2985 + $0x10] sm:$0xff]
    %v2989 = vld [vmem:[%s2985 + $0x18] sm:$0xff]
    %v2990 = vld [vmem:[%s2985 + $0x20] sm:$0xff]
    %v2991 = vld [vmem:[%s2985 + $0x28] sm:$0xff]
    %v2992 = vld [vmem:[%s2985 + $0x30] sm:$0xff]
    %v2993 = vld [vmem:[%s2985 + $0x38] sm:$0xff]
    %v2994 = vld [vmem:[%s2985 + $0x40] sm:$0xff]
    %v2995 = vld [vmem:[%s2985 + $0x48] sm:$0xff]
    %v2996 = vld [vmem:[%s2985 + $0x50] sm:$0xff]
    %v2997 = vld [vmem:[%s2985 + $0x58] sm:$0xff]
    %v2998 = vld [vmem:[%s2985 + $0x60] sm:$0xff]
    %v2999 = vld [vmem:[%s2985 + $0x68] sm:$0xff]
    %v3000 = vld [vmem:[%s2985 + $0x70] sm:$0xff]
    %v3001 = vld [vmem:[%s2985 + $0x78] sm:$0xff]
    %v3002 = vld [vmem:[%s2985 + $0x80] sm:$0xff]
    %v3003 = vld [vmem:[%s2985 + $0x88] sm:$0xff]
    %v3004 = vld [vmem:[%s2985 + $0x90] sm:$0xff]
    %v3005 = vld [vmem:[%s2985 + $0x98] sm:$0xff]
    %v3006 = vld [vmem:[%s2985 + $0xa0] sm:$0xff]
    %v3007 = vld [vmem:[%s2985 + $0xa8] sm:$0xff]
    %v3008 = vld [vmem:[%s2985 + $0xb0] sm:$0xff]
    %v3009 = vld [vmem:[%s2985 + $0xb8] sm:$0xff]
    %v3010 = vld [vmem:[%s2985 + $0xc0] sm:$0xff]
    %v3011 = vld [vmem:[%s2985 + $0xc8] sm:$0xff]
    %v3012 = vld [vmem:[%s2985 + $0xd0] sm:$0xff]
    %v3013 = vld [vmem:[%s2985 + $0xd8] sm:$0xff]
    %v3014 = vld [vmem:[%s2985 + $0xe0] sm:$0xff]
    %v3015 = vld [vmem:[%s2985 + $0xe8] sm:$0xff]
    %v3016 = vld [vmem:[%s2985 + $0xf0] sm:$0xff]
    %v3017 = vld [vmem:[%s2985 + $0xf8] sm:$0xff]
    %s3018 = scalar_lea.vmem %s9, 16
    %v3019 = vld [vmem:[%s3018] sm:$0xff]
    %v3020 = vld [vmem:[%s3018 + $0x8] sm:$0xff]
    %v3023 = vlaneseq
    %v3024 = vshrl.u32 %v3023, 7
    %v3025 = vsub.s32 0, %v3024
    %v3026 = vrot.slane %v3019, %v3025
    %v3027 = vlaneseq
    %v3028 = vshrl.u32 %v3027, 7
    %v3029 = vsub.s32 1, %v3028
    %v3030 = vrot.slane %v3019, %v3029
    %v3031 = vlaneseq
    %v3032 = vshrl.u32 %v3031, 7
    %v3033 = vsub.s32 2, %v3032
    %v3034 = vrot.slane %v3019, %v3033
    %v3035 = vlaneseq
    %v3036 = vshrl.u32 %v3035, 7
    %v3037 = vsub.s32 3, %v3036
    %v3038 = vrot.slane %v3019, %v3037
    %v3039 = vlaneseq
    %v3040 = vshrl.u32 %v3039, 7
    %v3041 = vsub.s32 4, %v3040
    %v3042 = vrot.slane %v3019, %v3041
    %v3043 = vlaneseq
    %v3044 = vshrl.u32 %v3043, 7
    %v3045 = vsub.s32 5, %v3044
    %v3046 = vrot.slane %v3019, %v3045
    %v3047 = vlaneseq
    %v3048 = vshrl.u32 %v3047, 7
    %v3049 = vsub.s32 6, %v3048
    %v3050 = vrot.slane %v3019, %v3049
    %v3051 = vlaneseq
    %v3052 = vshrl.u32 %v3051, 7
    %v3053 = vsub.s32 7, %v3052
    %v3054 = vrot.slane %v3019, %v3053
    %v3055 = vlaneseq
    %v3056 = vshrl.u32 %v3055, 7
    %v3057 = vsub.s32 0, %v3056
    %v3058 = vrot.slane %v3020, %v3057
    %v3059 = vlaneseq
    %v3060 = vshrl.u32 %v3059, 7
    %v3061 = vsub.s32 1, %v3060
    %v3062 = vrot.slane %v3020, %v3061
    %v3063 = vlaneseq
    %v3064 = vshrl.u32 %v3063, 7
    %v3065 = vsub.s32 2, %v3064
    %v3066 = vrot.slane %v3020, %v3065
    %v3067 = vlaneseq
    %v3068 = vshrl.u32 %v3067, 7
    %v3069 = vsub.s32 3, %v3068
    %v3070 = vrot.slane %v3020, %v3069
    %v3071 = vlaneseq
    %v3072 = vshrl.u32 %v3071, 7
    %v3073 = vsub.s32 4, %v3072
    %v3074 = vrot.slane %v3020, %v3073
    %v3075 = vlaneseq
    %v3076 = vshrl.u32 %v3075, 7
    %v3077 = vsub.s32 5, %v3076
    %v3078 = vrot.slane %v3020, %v3077
    %v3079 = vlaneseq
    %v3080 = vshrl.u32 %v3079, 7
    %v3081 = vsub.s32 6, %v3080
    %v3082 = vrot.slane %v3020, %v3081
    %v3083 = vlaneseq
    %v3084 = vshrl.u32 %v3083, 7
    %v3085 = vsub.s32 7, %v3084
    %v3086 = vrot.slane %v3020, %v3085
    %v3135 = vunpack.c.l.b16 %v2986
    %v3136 = vunpack.c.h.b16 %v2986
    %v3137 = vunpack.c.l.b16 %v2987
    %v3138 = vunpack.c.h.b16 %v2987
    %v3139 = vunpack.c.l.b16 %v2988
    %v3140 = vunpack.c.h.b16 %v2988
    %v3141 = vunpack.c.l.b16 %v2989
    %v3142 = vunpack.c.h.b16 %v2989
    %v3143 = vunpack.c.l.b16 %v2990
    %v3144 = vunpack.c.h.b16 %v2990
    %v3145 = vunpack.c.l.b16 %v2991
    %v3146 = vunpack.c.h.b16 %v2991
    %v3147 = vunpack.c.l.b16 %v2992
    %v3148 = vunpack.c.h.b16 %v2992
    %v3149 = vunpack.c.l.b16 %v2993
    %v3150 = vunpack.c.h.b16 %v2993
    %v3151 = vunpack.c.l.b16 %v2994
    %v3152 = vunpack.c.h.b16 %v2994
    %v3153 = vunpack.c.l.b16 %v2995
    %v3154 = vunpack.c.h.b16 %v2995
    %v3155 = vunpack.c.l.b16 %v2996
    %v3156 = vunpack.c.h.b16 %v2996
    %v3157 = vunpack.c.l.b16 %v2997
    %v3158 = vunpack.c.h.b16 %v2997
    %v3159 = vunpack.c.l.b16 %v2998
    %v3160 = vunpack.c.h.b16 %v2998
    %v3161 = vunpack.c.l.b16 %v2999
    %v3162 = vunpack.c.h.b16 %v2999
    %v3163 = vunpack.c.l.b16 %v3000
    %v3164 = vunpack.c.h.b16 %v3000
    %v3165 = vunpack.c.l.b16 %v3001
    %v3166 = vunpack.c.h.b16 %v3001
    %v3167 = vunpack.c.l.b16 %v3002
    %v3168 = vunpack.c.h.b16 %v3002
    %v3169 = vunpack.c.l.b16 %v3003
    %v3170 = vunpack.c.h.b16 %v3003
    %v3171 = vunpack.c.l.b16 %v3004
    %v3172 = vunpack.c.h.b16 %v3004
    %v3173 = vunpack.c.l.b16 %v3005
    %v3174 = vunpack.c.h.b16 %v3005
    %v3175 = vunpack.c.l.b16 %v3006
    %v3176 = vunpack.c.h.b16 %v3006
    %v3177 = vunpack.c.l.b16 %v3007
    %v3178 = vunpack.c.h.b16 %v3007
    %v3179 = vunpack.c.l.b16 %v3008
    %v3180 = vunpack.c.h.b16 %v3008
    %v3181 = vunpack.c.l.b16 %v3009
    %v3182 = vunpack.c.h.b16 %v3009
    %v3183 = vunpack.c.l.b16 %v3010
    %v3184 = vunpack.c.h.b16 %v3010
    %v3185 = vunpack.c.l.b16 %v3011
    %v3186 = vunpack.c.h.b16 %v3011
    %v3187 = vunpack.c.l.b16 %v3012
    %v3188 = vunpack.c.h.b16 %v3012
    %v3189 = vunpack.c.l.b16 %v3013
    %v3190 = vunpack.c.h.b16 %v3013
    %v3191 = vunpack.c.l.b16 %v3014
    %v3192 = vunpack.c.h.b16 %v3014
    %v3193 = vunpack.c.l.b16 %v3015
    %v3194 = vunpack.c.h.b16 %v3015
    %v3195 = vunpack.c.l.b16 %v3016
    %v3196 = vunpack.c.h.b16 %v3016
    %v3197 = vunpack.c.l.b16 %v3017
    %v3198 = vunpack.c.h.b16 %v3017
    %v3199 = vpack.c.b16 %v3151, %v3135
    %v3200 = vpack.c.b16 %v3152, %v3136
    %v3201 = vpack.c.b16 %v3153, %v3137
    %v3202 = vpack.c.b16 %v3154, %v3138
    %v3203 = vpack.c.b16 %v3155, %v3139
    %v3204 = vpack.c.b16 %v3156, %v3140
    %v3205 = vpack.c.b16 %v3157, %v3141
    %v3206 = vpack.c.b16 %v3158, %v3142
    %v3207 = vpack.c.b16 %v3159, %v3143
    %v3208 = vpack.c.b16 %v3160, %v3144
    %v3209 = vpack.c.b16 %v3161, %v3145
    %v3210 = vpack.c.b16 %v3162, %v3146
    %v3211 = vpack.c.b16 %v3163, %v3147
    %v3212 = vpack.c.b16 %v3164, %v3148
    %v3213 = vpack.c.b16 %v3165, %v3149
    %v3214 = vpack.c.b16 %v3166, %v3150
    %v3215 = vpack.c.b16 %v3183, %v3167
    %v3216 = vpack.c.b16 %v3184, %v3168
    %v3217 = vpack.c.b16 %v3185, %v3169
    %v3218 = vpack.c.b16 %v3186, %v3170
    %v3219 = vpack.c.b16 %v3187, %v3171
    %v3220 = vpack.c.b16 %v3188, %v3172
    %v3221 = vpack.c.b16 %v3189, %v3173
    %v3222 = vpack.c.b16 %v3190, %v3174
    %v3223 = vpack.c.b16 %v3191, %v3175
    %v3224 = vpack.c.b16 %v3192, %v3176
    %v3225 = vpack.c.b16 %v3193, %v3177
    %v3226 = vpack.c.b16 %v3194, %v3178
    %v3227 = vpack.c.b16 %v3195, %v3179
    %v3228 = vpack.c.b16 %v3196, %v3180
    %v3229 = vpack.c.b16 %v3197, %v3181
    %v3230 = vpack.c.b16 %v3198, %v3182
    %v3264 = vsel %vm181, %v2984, 0
    %3266 = vmatprep.subr.bf16.mxu0 %v3200
    %3267 = vmatpush1.bf16.msra.mxu0 %v3199
    %3268 = vmatprep.subr.bf16.mxu0 %v3216
    %3269 = vmatpush1.bf16.msra.mxu0 %v3215
    %3270 = vmatprep.subr.bf16.mxu0 0
    %3271 = vmatpush1.bf16.msra.mxu0 0
    %3272 = vmatprep.subr.bf16.mxu0 0
    %3273 = vmatpush1.bf16.msra.mxu0 0
    %3274 = vmatprep.subr.bf16.mxu0 0
    %3275 = vmatpush1.bf16.msra.mxu0 0
    %3276 = vmatprep.subr.bf16.mxu0 0
    %3277 = vmatpush1.bf16.msra.mxu0 0
    %3278 = vmatprep.subr.bf16.mxu0 0
    %3279 = vmatpush1.bf16.msra.mxu0 0
    %3280 = vmatprep.subr.bf16.mxu0 0
    %3281 = vmatpush1.bf16.msra.mxu0 0
    %3282 = vmatprep.subr.bf16.mxu0 0
    %3283 = vmatpush1.bf16.msra.mxu0 0
    %3284 = vmatprep.subr.bf16.mxu0 0
    %3285 = vmatpush1.bf16.msra.mxu0 0
    %3286 = vmatprep.subr.bf16.mxu0 0
    %3287 = vmatpush1.bf16.msra.mxu0 0
    %3288 = vmatprep.subr.bf16.mxu0 0
    %3289 = vmatpush1.bf16.msra.mxu0 0
    %3290 = vmatprep.subr.bf16.mxu0 0
    %3291 = vmatpush1.bf16.msra.mxu0 0
    %3292 = vmatprep.subr.bf16.mxu0 0
    %3293 = vmatpush1.bf16.msra.mxu0 0
    %3294 = vmatprep.subr.bf16.mxu0 0
    %3295 = vmatpush1.bf16.msra.mxu0 0
    %3296 = vmatprep.subr.bf16.mxu0 0
    %3297 = vmatpush1.bf16.msra.mxu0 0
    %3298 = vmatprep.mubr.bf16.mxu0 0
    %3299 = vmatmul.mubr.bf16.gmra.mrb[0].mxu0 %v3264
    %v3300 = vpop.f32.mrb[0].mxu0
    %v3301 = vadd.f32 %v3026, %v3300
    %v3302 = vpop.f32.mrb[0].mxu0
    %v3303 = vadd.f32 %v3030, %v3302
    %v3304 = vpop.f32.mrb[0].mxu0
    %v3305 = vadd.f32 %v3026, %v3304
    %v3306 = vpop.f32.mrb[0].mxu0
    %v3307 = vadd.f32 %v3030, %v3306
    %3308 = vdwg.mxu0
    %3309 = vmatprep.subr.bf16.mxu0 %v3202
    %3310 = vmatpush1.bf16.msra.mxu0 %v3201
    %3311 = vmatprep.subr.bf16.mxu0 %v3218
    %3312 = vmatpush1.bf16.msra.mxu0 %v3217
    %3313 = vmatprep.subr.bf16.mxu0 0
    %3314 = vmatpush1.bf16.msra.mxu0 0
    %3315 = vmatprep.subr.bf16.mxu0 0
    %3316 = vmatpush1.bf16.msra.mxu0 0
    %3317 = vmatprep.subr.bf16.mxu0 0
    %3318 = vmatpush1.bf16.msra.mxu0 0
    %3319 = vmatprep.subr.bf16.mxu0 0
    %3320 = vmatpush1.bf16.msra.mxu0 0
    %3321 = vmatprep.subr.bf16.mxu0 0
    %3322 = vmatpush1.bf16.msra.mxu0 0
    %3323 = vmatprep.subr.bf16.mxu0 0
    %3324 = vmatpush1.bf16.msra.mxu0 0
    %3325 = vmatprep.subr.bf16.mxu0 0
    %3326 = vmatpush1.bf16.msra.mxu0 0
    %3327 = vmatprep.subr.bf16.mxu0 0
    %3328 = vmatpush1.bf16.msra.mxu0 0
    %3329 = vmatprep.subr.bf16.mxu0 0
    %3330 = vmatpush1.bf16.msra.mxu0 0
    %3331 = vmatprep.subr.bf16.mxu0 0
    %3332 = vmatpush1.bf16.msra.mxu0 0
    %3333 = vmatprep.subr.bf16.mxu0 0
    %3334 = vmatpush1.bf16.msra.mxu0 0
    %3335 = vmatprep.subr.bf16.mxu0 0
    %3336 = vmatpush1.bf16.msra.mxu0 0
    %3337 = vmatprep.subr.bf16.mxu0 0
    %3338 = vmatpush1.bf16.msra.mxu0 0
    %3339 = vmatprep.subr.bf16.mxu0 0
    %3340 = vmatpush1.bf16.msra.mxu0 0
    %3341 = vmatprep.mubr.bf16.mxu0 0
    %3342 = vmatmul.mubr.bf16.gmra.mrb[0].mxu0 %v3264
    %v3343 = vpop.f32.mrb[0].mxu0
    %v3344 = vadd.f32 %v3034, %v3343
    %v3345 = vpop.f32.mrb[0].mxu0
    %v3346 = vadd.f32 %v3038, %v3345
    %v3347 = vpop.f32.mrb[0].mxu0
    %v3348 = vadd.f32 %v3034, %v3347
    %v3349 = vpop.f32.mrb[0].mxu0
    %v3350 = vadd.f32 %v3038, %v3349
    %3351 = vdwg.mxu0
    %3352 = vmatprep.subr.bf16.mxu0 %v3204
    %3353 = vmatpush1.bf16.msra.mxu0 %v3203
    %3354 = vmatprep.subr.bf16.mxu0 %v3220
    %3355 = vmatpush1.bf16.msra.mxu0 %v3219
    %3356 = vmatprep.subr.bf16.mxu0 0
    %3357 = vmatpush1.bf16.msra.mxu0 0
    %3358 = vmatprep.subr.bf16.mxu0 0
    %3359 = vmatpush1.bf16.msra.mxu0 0
    %3360 = vmatprep.subr.bf16.mxu0 0
    %3361 = vmatpush1.bf16.msra.mxu0 0
    %3362 = vmatprep.subr.bf16.mxu0 0
    %3363 = vmatpush1.bf16.msra.mxu0 0
    %3364 = vmatprep.subr.bf16.mxu0 0
    %3365 = vmatpush1.bf16.msra.mxu0 0
    %3366 = vmatprep.subr.bf16.mxu0 0
    %3367 = vmatpush1.bf16.msra.mxu0 0
    %3368 = vmatprep.subr.bf16.mxu0 0
    %3369 = vmatpush1.bf16.msra.mxu0 0
    %3370 = vmatprep.subr.bf16.mxu0 0
    %3371 = vmatpush1.bf16.msra.mxu0 0
    %3372 = vmatprep.subr.bf16.mxu0 0
    %3373 = vmatpush1.bf16.msra.mxu0 0
    %3374 = vmatprep.subr.bf16.mxu0 0
    %3375 = vmatpush1.bf16.msra.mxu0 0
    %3376 = vmatprep.subr.bf16.mxu0 0
    %3377 = vmatpush1.bf16.msra.mxu0 0
    %3378 = vmatprep.subr.bf16.mxu0 0
    %3379 = vmatpush1.bf16.msra.mxu0 0
    %3380 = vmatprep.subr.bf16.mxu0 0
    %3381 = vmatpush1.bf16.msra.mxu0 0
    %3382 = vmatprep.subr.bf16.mxu0 0
    %3383 = vmatpush1.bf16.msra.mxu0 0
    %3384 = vmatprep.mubr.bf16.mxu0 0
    %3385 = vmatmul.mubr.bf16.gmra.mrb[0].mxu0 %v3264
    %v3386 = vpop.f32.mrb[0].mxu0
    %v3387 = vadd.f32 %v3042, %v3386
    %v3388 = vpop.f32.mrb[0].mxu0
    %v3389 = vadd.f32 %v3046, %v3388
    %v3390 = vpop.f32.mrb[0].mxu0
    %v3391 = vadd.f32 %v3042, %v3390
    %v3392 = vpop.f32.mrb[0].mxu0
    %v3393 = vadd.f32 %v3046, %v3392
    %3394 = vdwg.mxu0
    %3395 = vmatprep.subr.bf16.mxu0 %v3206
    %3396 = vmatpush1.bf16.msra.mxu0 %v3205
    %3397 = vmatprep.subr.bf16.mxu0 %v3222
    %3398 = vmatpush1.bf16.msra.mxu0 %v3221
    %3399 = vmatprep.subr.bf16.mxu0 0
    %3400 = vmatpush1.bf16.msra.mxu0 0
    %3401 = vmatprep.subr.bf16.mxu0 0
    %3402 = vmatpush1.bf16.msra.mxu0 0
    %3403 = vmatprep.subr.bf16.mxu0 0
    %3404 = vmatpush1.bf16.msra.mxu0 0
    %3405 = vmatprep.subr.bf16.mxu0 0
    %3406 = vmatpush1.bf16.msra.mxu0 0
    %3407 = vmatprep.subr.bf16.mxu0 0
    %3408 = vmatpush1.bf16.msra.mxu0 0
    %3409 = vmatprep.subr.bf16.mxu0 0
    %3410 = vmatpush1.bf16.msra.mxu0 0
    %3411 = vmatprep.subr.bf16.mxu0 0
    %3412 = vmatpush1.bf16.msra.mxu0 0
    %3413 = vmatprep.subr.bf16.mxu0 0
    %3414 = vmatpush1.bf16.msra.mxu0 0
    %3415 = vmatprep.subr.bf16.mxu0 0
    %3416 = vmatpush1.bf16.msra.mxu0 0
    %3417 = vmatprep.subr.bf16.mxu0 0
    %3418 = vmatpush1.bf16.msra.mxu0 0
    %3419 = vmatprep.subr.bf16.mxu0 0
    %3420 = vmatpush1.bf16.msra.mxu0 0
    %3421 = vmatprep.subr.bf16.mxu0 0
    %3422 = vmatpush1.bf16.msra.mxu0 0
    %3423 = vmatprep.subr.bf16.mxu0 0
    %3424 = vmatpush1.bf16.msra.mxu0 0
    %3425 = vmatprep.subr.bf16.mxu0 0
    %3426 = vmatpush1.bf16.msra.mxu0 0
    %3427 = vmatprep.mubr.bf16.mxu0 0
    %3428 = vmatmul.mubr.bf16.gmra.mrb[0].mxu0 %v3264
    %v3429 = vpop.f32.mrb[0].mxu0
    %v3430 = vadd.f32 %v3050, %v3429
    %v3431 = vpop.f32.mrb[0].mxu0
    %v3432 = vadd.f32 %v3054, %v3431
    %v3433 = vpop.f32.mrb[0].mxu0
    %v3434 = vadd.f32 %v3050, %v3433
    %v3435 = vpop.f32.mrb[0].mxu0
    %v3436 = vadd.f32 %v3054, %v3435
    %3437 = vdwg.mxu0
    %3438 = vmatprep.subr.bf16.mxu0 %v3208
    %3439 = vmatpush1.bf16.msra.mxu0 %v3207
    %3440 = vmatprep.subr.bf16.mxu0 %v3224
    %3441 = vmatpush1.bf16.msra.mxu0 %v3223
    %3442 = vmatprep.subr.bf16.mxu0 0
    %3443 = vmatpush1.bf16.msra.mxu0 0
    %3444 = vmatprep.subr.bf16.mxu0 0
    %3445 = vmatpush1.bf16.msra.mxu0 0
    %3446 = vmatprep.subr.bf16.mxu0 0
    %3447 = vmatpush1.bf16.msra.mxu0 0
    %3448 = vmatprep.subr.bf16.mxu0 0
    %3449 = vmatpush1.bf16.msra.mxu0 0
    %3450 = vmatprep.subr.bf16.mxu0 0
    %3451 = vmatpush1.bf16.msra.mxu0 0
    %3452 = vmatprep.subr.bf16.mxu0 0
    %3453 = vmatpush1.bf16.msra.mxu0 0
    %3454 = vmatprep.subr.bf16.mxu0 0
    %3455 = vmatpush1.bf16.msra.mxu0 0
    %3456 = vmatprep.subr.bf16.mxu0 0
    %3457 = vmatpush1.bf16.msra.mxu0 0
    %3458 = vmatprep.subr.bf16.mxu0 0
    %3459 = vmatpush1.bf16.msra.mxu0 0
    %3460 = vmatprep.subr.bf16.mxu0 0
    %3461 = vmatpush1.bf16.msra.mxu0 0
    %3462 = vmatprep.subr.bf16.mxu0 0
    %3463 = vmatpush1.bf16.msra.mxu0 0
    %3464 = vmatprep.subr.bf16.mxu0 0
    %3465 = vmatpush1.bf16.msra.mxu0 0
    %3466 = vmatprep.subr.bf16.mxu0 0
    %3467 = vmatpush1.bf16.msra.mxu0 0
    %3468 = vmatprep.subr.bf16.mxu0 0
    %3469 = vmatpush1.bf16.msra.mxu0 0
    %3470 = vmatprep.mubr.bf16.mxu0 0
    %3471 = vmatmul.mubr.bf16.gmra.mrb[0].mxu0 %v3264
    %v3472 = vpop.f32.mrb[0].mxu0
    %v3473 = vadd.f32 %v3058, %v3472
    %v3474 = vpop.f32.mrb[0].mxu0
    %v3475 = vadd.f32 %v3062, %v3474
    %v3476 = vpop.f32.mrb[0].mxu0
    %v3477 = vadd.f32 %v3058, %v3476
    %v3478 = vpop.f32.mrb[0].mxu0
    %v3479 = vadd.f32 %v3062, %v3478
    %3480 = vdwg.mxu0
    %3481 = vmatprep.subr.bf16.mxu0 %v3210
    %3482 = vmatpush1.bf16.msra.mxu0 %v3209
    %3483 = vmatprep.subr.bf16.mxu0 %v3226
    %3484 = vmatpush1.bf16.msra.mxu0 %v3225
    %3485 = vmatprep.subr.bf16.mxu0 0
    %3486 = vmatpush1.bf16.msra.mxu0 0
    %3487 = vmatprep.subr.bf16.mxu0 0
    %3488 = vmatpush1.bf16.msra.mxu0 0
    %3489 = vmatprep.subr.bf16.mxu0 0
    %3490 = vmatpush1.bf16.msra.mxu0 0
    %3491 = vmatprep.subr.bf16.mxu0 0
    %3492 = vmatpush1.bf16.msra.mxu0 0
    %3493 = vmatprep.subr.bf16.mxu0 0
    %3494 = vmatpush1.bf16.msra.mxu0 0
    %3495 = vmatprep.subr.bf16.mxu0 0
    %3496 = vmatpush1.bf16.msra.mxu0 0
    %3497 = vmatprep.subr.bf16.mxu0 0
    %3498 = vmatpush1.bf16.msra.mxu0 0
    %3499 = vmatprep.subr.bf16.mxu0 0
    %3500 = vmatpush1.bf16.msra.mxu0 0
    %3501 = vmatprep.subr.bf16.mxu0 0
    %3502 = vmatpush1.bf16.msra.mxu0 0
    %3503 = vmatprep.subr.bf16.mxu0 0
    %3504 = vmatpush1.bf16.msra.mxu0 0
    %3505 = vmatprep.subr.bf16.mxu0 0
    %3506 = vmatpush1.bf16.msra.mxu0 0
    %3507 = vmatprep.subr.bf16.mxu0 0
    %3508 = vmatpush1.bf16.msra.mxu0 0
    %3509 = vmatprep.subr.bf16.mxu0 0
    %3510 = vmatpush1.bf16.msra.mxu0 0
    %3511 = vmatprep.subr.bf16.mxu0 0
    %3512 = vmatpush1.bf16.msra.mxu0 0
    %3513 = vmatprep.mubr.bf16.mxu0 0
    %3514 = vmatmul.mubr.bf16.gmra.mrb[0].mxu0 %v3264
    %v3515 = vpop.f32.mrb[0].mxu0
    %v3516 = vadd.f32 %v3066, %v3515
    %v3517 = vpop.f32.mrb[0].mxu0
    %v3518 = vadd.f32 %v3070, %v3517
    %v3519 = vpop.f32.mrb[0].mxu0
    %v3520 = vadd.f32 %v3066, %v3519
    %v3521 = vpop.f32.mrb[0].mxu0
    %v3522 = vadd.f32 %v3070, %v3521
    %3523 = vdwg.mxu0
    %3524 = vmatprep.subr.bf16.mxu0 %v3212
    %3525 = vmatpush1.bf16.msra.mxu0 %v3211
    %3526 = vmatprep.subr.bf16.mxu0 %v3228
    %3527 = vmatpush1.bf16.msra.mxu0 %v3227
    %3528 = vmatprep.subr.bf16.mxu0 0
    %3529 = vmatpush1.bf16.msra.mxu0 0
    %3530 = vmatprep.subr.bf16.mxu0 0
    %3531 = vmatpush1.bf16.msra.mxu0 0
    %3532 = vmatprep.subr.bf16.mxu0 0
    %3533 = vmatpush1.bf16.msra.mxu0 0
    %3534 = vmatprep.subr.bf16.mxu0 0
    %3535 = vmatpush1.bf16.msra.mxu0 0
    %3536 = vmatprep.subr.bf16.mxu0 0
    %3537 = vmatpush1.bf16.msra.mxu0 0
    %3538 = vmatprep.subr.bf16.mxu0 0
    %3539 = vmatpush1.bf16.msra.mxu0 0
    %3540 = vmatprep.subr.bf16.mxu0 0
    %3541 = vmatpush1.bf16.msra.mxu0 0
    %3542 = vmatprep.subr.bf16.mxu0 0
    %3543 = vmatpush1.bf16.msra.mxu0 0
    %3544 = vmatprep.subr.bf16.mxu0 0
    %3545 = vmatpush1.bf16.msra.mxu0 0
    %3546 = vmatprep.subr.bf16.mxu0 0
    %3547 = vmatpush1.bf16.msra.mxu0 0
    %3548 = vmatprep.subr.bf16.mxu0 0
    %3549 = vmatpush1.bf16.msra.mxu0 0
    %3550 = vmatprep.subr.bf16.mxu0 0
    %3551 = vmatpush1.bf16.msra.mxu0 0
    %3552 = vmatprep.subr.bf16.mxu0 0
    %3553 = vmatpush1.bf16.msra.mxu0 0
    %3554 = vmatprep.subr.bf16.mxu0 0
    %3555 = vmatpush1.bf16.msra.mxu0 0
    %3556 = vmatprep.mubr.bf16.mxu0 0
    %3557 = vmatmul.mubr.bf16.gmra.mrb[0].mxu0 %v3264
    %v3558 = vpop.f32.mrb[0].mxu0
    %v3559 = vadd.f32 %v3074, %v3558
    %v3560 = vpop.f32.mrb[0].mxu0
    %v3561 = vadd.f32 %v3078, %v3560
    %v3562 = vpop.f32.mrb[0].mxu0
    %v3563 = vadd.f32 %v3074, %v3562
    %v3564 = vpop.f32.mrb[0].mxu0
    %v3565 = vadd.f32 %v3078, %v3564
    %3566 = vdwg.mxu0
    %3567 = vmatprep.subr.bf16.mxu0 %v3214
    %3568 = vmatpush1.bf16.msra.mxu0 %v3213
    %3569 = vmatprep.subr.bf16.mxu0 %v3230
    %3570 = vmatpush1.bf16.msra.mxu0 %v3229
    %3571 = vmatprep.subr.bf16.mxu0 0
    %3572 = vmatpush1.bf16.msra.mxu0 0
    %3573 = vmatprep.subr.bf16.mxu0 0
    %3574 = vmatpush1.bf16.msra.mxu0 0
    %3575 = vmatprep.subr.bf16.mxu0 0
    %3576 = vmatpush1.bf16.msra.mxu0 0
    %3577 = vmatprep.subr.bf16.mxu0 0
    %3578 = vmatpush1.bf16.msra.mxu0 0
    %3579 = vmatprep.subr.bf16.mxu0 0
    %3580 = vmatpush1.bf16.msra.mxu0 0
    %3581 = vmatprep.subr.bf16.mxu0 0
    %3582 = vmatpush1.bf16.msra.mxu0 0
    %3583 = vmatprep.subr.bf16.mxu0 0
    %3584 = vmatpush1.bf16.msra.mxu0 0
    %3585 = vmatprep.subr.bf16.mxu0 0
    %3586 = vmatpush1.bf16.msra.mxu0 0
    %3587 = vmatprep.subr.bf16.mxu0 0
    %3588 = vmatpush1.bf16.msra.mxu0 0
    %3589 = vmatprep.subr.bf16.mxu0 0
    %3590 = vmatpush1.bf16.msra.mxu0 0
    %3591 = vmatprep.subr.bf16.mxu0 0
    %3592 = vmatpush1.bf16.msra.mxu0 0
    %3593 = vmatprep.subr.bf16.mxu0 0
    %3594 = vmatpush1.bf16.msra.mxu0 0
    %3595 = vmatprep.subr.bf16.mxu0 0
    %3596 = vmatpush1.bf16.msra.mxu0 0
    %3597 = vmatprep.subr.bf16.mxu0 0
    %3598 = vmatpush1.bf16.msra.mxu0 0
    %3599 = vmatprep.mubr.bf16.mxu0 0
    %3600 = vmatmul.mubr.bf16.gmra.mrb[0].mxu0 %v3264
    %v3601 = vpop.f32.mrb[0].mxu0
    %v3602 = vadd.f32 %v3082, %v3601
    %v3603 = vpop.f32.mrb[0].mxu0
    %v3604 = vadd.f32 %v3086, %v3603
    %v3605 = vpop.f32.mrb[0].mxu0
    %v3606 = vadd.f32 %v3082, %v3605
    %v3607 = vpop.f32.mrb[0].mxu0
    %v3608 = vadd.f32 %v3086, %v3607
    %3609 = vdwg.mxu0
    %v3610 = vmax.f32 %v3301, 0.0
    %v3611 = vmax.f32 %v3303, 0.0
    %v3612 = vmax.f32 %v3344, 0.0
    %v3613 = vmax.f32 %v3346, 0.0
    %v3614 = vmax.f32 %v3387, 0.0
    %v3615 = vmax.f32 %v3389, 0.0
    %v3616 = vmax.f32 %v3430, 0.0
    %v3617 = vmax.f32 %v3432, 0.0
    %v3618 = vmax.f32 %v3473, 0.0
    %v3619 = vmax.f32 %v3475, 0.0
    %v3620 = vmax.f32 %v3516, 0.0
    %v3621 = vmax.f32 %v3518, 0.0
    %v3622 = vmax.f32 %v3559, 0.0
    %v3623 = vmax.f32 %v3561, 0.0
    %v3624 = vmax.f32 %v3602, 0.0
    %v3625 = vmax.f32 %v3604, 0.0
    %v3626 = vmax.f32 %v3305, 0.0
    %v3627 = vmax.f32 %v3307, 0.0
    %v3628 = vmax.f32 %v3348, 0.0
    %v3629 = vmax.f32 %v3350, 0.0
    %v3630 = vmax.f32 %v3391, 0.0
    %v3631 = vmax.f32 %v3393, 0.0
    %v3632 = vmax.f32 %v3434, 0.0
    %v3633 = vmax.f32 %v3436, 0.0
    %v3634 = vmax.f32 %v3477, 0.0
    %v3635 = vmax.f32 %v3479, 0.0
    %v3636 = vmax.f32 %v3520, 0.0
    %v3637 = vmax.f32 %v3522, 0.0
    %v3638 = vmax.f32 %v3563, 0.0
    %v3639 = vmax.f32 %v3565, 0.0
    %v3640 = vmax.f32 %v3606, 0.0
    %v3641 = vmax.f32 %v3608, 0.0
    %v3642 = vpack.c.bf16 %v3626, %v3610
    %v3643 = vpack.c.bf16 %v3627, %v3611
    %v3644 = vpack.c.bf16 %v3628, %v3612
    %v3645 = vpack.c.bf16 %v3629, %v3613
    %v3646 = vpack.c.bf16 %v3630, %v3614
    %v3647 = vpack.c.bf16 %v3631, %v3615
    %v3648 = vpack.c.bf16 %v3632, %v3616
    %v3649 = vpack.c.bf16 %v3633, %v3617
    %v3650 = vpack.c.bf16 %v3634, %v3618
    %v3651 = vpack.c.bf16 %v3635, %v3619
    %v3652 = vpack.c.bf16 %v3636, %v3620
    %v3653 = vpack.c.bf16 %v3637, %v3621
    %v3654 = vpack.c.bf16 %v3638, %v3622
    %v3655 = vpack.c.bf16 %v3639, %v3623
    %v3656 = vpack.c.bf16 %v3640, %v3624
    %v3657 = vpack.c.bf16 %v3641, %v3625
    %s3658 = scalar_lea.vmem [#allocation2], 768
    %v3659 = vld [vmem:[%s3658] sm:$0xff]
    %v3660 = vld [vmem:[%s3658 + $0x8] sm:$0xff]
    %v3661 = vld [vmem:[%s3658 + $0x10] sm:$0xff]
    %v3662 = vld [vmem:[%s3658 + $0x18] sm:$0xff]
    %v3663 = vld [vmem:[%s3658 + $0x20] sm:$0xff]
    %v3664 = vld [vmem:[%s3658 + $0x28] sm:$0xff]
    %v3665 = vld [vmem:[%s3658 + $0x30] sm:$0xff]
    %v3666 = vld [vmem:[%s3658 + $0x38] sm:$0xff]
    %v3667 = vld [vmem:[%s3658 + $0x40] sm:$0xff]
    %v3668 = vld [vmem:[%s3658 + $0x48] sm:$0xff]
    %v3669 = vld [vmem:[%s3658 + $0x50] sm:$0xff]
    %v3670 = vld [vmem:[%s3658 + $0x58] sm:$0xff]
    %v3671 = vld [vmem:[%s3658 + $0x60] sm:$0xff]
    %v3672 = vld [vmem:[%s3658 + $0x68] sm:$0xff]
    %v3673 = vld [vmem:[%s3658 + $0x70] sm:$0xff]
    %v3674 = vld [vmem:[%s3658 + $0x78] sm:$0xff]
    %v3675 = vld [vmem:[%s3658 + $0x80] sm:$0xff]
    %v3676 = vld [vmem:[%s3658 + $0x88] sm:$0xff]
    %v3677 = vld [vmem:[%s3658 + $0x90] sm:$0xff]
    %v3678 = vld [vmem:[%s3658 + $0x98] sm:$0xff]
    %v3679 = vld [vmem:[%s3658 + $0xa0] sm:$0xff]
    %v3680 = vld [vmem:[%s3658 + $0xa8] sm:$0xff]
    %v3681 = vld [vmem:[%s3658 + $0xb0] sm:$0xff]
    %v3682 = vld [vmem:[%s3658 + $0xb8] sm:$0xff]
    %v3683 = vld [vmem:[%s3658 + $0xc0] sm:$0xff]
    %v3684 = vld [vmem:[%s3658 + $0xc8] sm:$0xff]
    %v3685 = vld [vmem:[%s3658 + $0xd0] sm:$0xff]
    %v3686 = vld [vmem:[%s3658 + $0xd8] sm:$0xff]
    %v3687 = vld [vmem:[%s3658 + $0xe0] sm:$0xff]
    %v3688 = vld [vmem:[%s3658 + $0xe8] sm:$0xff]
    %v3689 = vld [vmem:[%s3658 + $0xf0] sm:$0xff]
    %v3690 = vld [vmem:[%s3658 + $0xf8] sm:$0xff]
    %v3691 = vlaneseq
    %v3692 = vshrl.u32 %v3691, 7
    %v3693 = vsub.s32 3, %v3692
    %v3694 = vrot.slane %v2198, %v3693
    %v3727 = vunpack.c.l.b16 %v3659
    %v3728 = vunpack.c.h.b16 %v3659
    %v3729 = vunpack.c.l.b16 %v3660
    %v3730 = vunpack.c.h.b16 %v3660
    %v3731 = vunpack.c.l.b16 %v3661
    %v3732 = vunpack.c.h.b16 %v3661
    %v3733 = vunpack.c.l.b16 %v3662
    %v3734 = vunpack.c.h.b16 %v3662
    %v3735 = vunpack.c.l.b16 %v3663
    %v3736 = vunpack.c.h.b16 %v3663
    %v3737 = vunpack.c.l.b16 %v3664
    %v3738 = vunpack.c.h.b16 %v3664
    %v3739 = vunpack.c.l.b16 %v3665
    %v3740 = vunpack.c.h.b16 %v3665
    %v3741 = vunpack.c.l.b16 %v3666
    %v3742 = vunpack.c.h.b16 %v3666
    %v3743 = vunpack.c.l.b16 %v3667
    %v3744 = vunpack.c.h.b16 %v3667
    %v3745 = vunpack.c.l.b16 %v3668
    %v3746 = vunpack.c.h.b16 %v3668
    %v3747 = vunpack.c.l.b16 %v3669
    %v3748 = vunpack.c.h.b16 %v3669
    %v3749 = vunpack.c.l.b16 %v3670
    %v3750 = vunpack.c.h.b16 %v3670
    %v3751 = vunpack.c.l.b16 %v3671
    %v3752 = vunpack.c.h.b16 %v3671
    %v3753 = vunpack.c.l.b16 %v3672
    %v3754 = vunpack.c.h.b16 %v3672
    %v3755 = vunpack.c.l.b16 %v3673
    %v3756 = vunpack.c.h.b16 %v3673
    %v3757 = vunpack.c.l.b16 %v3674
    %v3758 = vunpack.c.h.b16 %v3674
    %v3759 = vunpack.c.l.b16 %v3675
    %v3760 = vunpack.c.h.b16 %v3675
    %v3761 = vunpack.c.l.b16 %v3676
    %v3762 = vunpack.c.h.b16 %v3676
    %v3763 = vunpack.c.l.b16 %v3677
    %v3764 = vunpack.c.h.b16 %v3677
    %v3765 = vunpack.c.l.b16 %v3678
    %v3766 = vunpack.c.h.b16 %v3678
    %v3767 = vunpack.c.l.b16 %v3679
    %v3768 = vunpack.c.h.b16 %v3679
    %v3769 = vunpack.c.l.b16 %v3680
    %v3770 = vunpack.c.h.b16 %v3680
    %v3771 = vunpack.c.l.b16 %v3681
    %v3772 = vunpack.c.h.b16 %v3681
    %v3773 = vunpack.c.l.b16 %v3682
    %v3774 = vunpack.c.h.b16 %v3682
    %v3775 = vunpack.c.l.b16 %v3683
    %v3776 = vunpack.c.h.b16 %v3683
    %v3777 = vunpack.c.l.b16 %v3684
    %v3778 = vunpack.c.h.b16 %v3684
    %v3779 = vunpack.c.l.b16 %v3685
    %v3780 = vunpack.c.h.b16 %v3685
    %v3781 = vunpack.c.l.b16 %v3686
    %v3782 = vunpack.c.h.b16 %v3686
    %v3783 = vunpack.c.l.b16 %v3687
    %v3784 = vunpack.c.h.b16 %v3687
    %v3785 = vunpack.c.l.b16 %v3688
    %v3786 = vunpack.c.h.b16 %v3688
    %v3787 = vunpack.c.l.b16 %v3689
    %v3788 = vunpack.c.h.b16 %v3689
    %v3789 = vunpack.c.l.b16 %v3690
    %v3790 = vunpack.c.h.b16 %v3690
    %v3791 = vpack.c.b16 %v3743, %v3727
    %v3792 = vpack.c.b16 %v3744, %v3728
    %v3793 = vpack.c.b16 %v3745, %v3729
    %v3794 = vpack.c.b16 %v3746, %v3730
    %v3795 = vpack.c.b16 %v3747, %v3731
    %v3796 = vpack.c.b16 %v3748, %v3732
    %v3797 = vpack.c.b16 %v3749, %v3733
    %v3798 = vpack.c.b16 %v3750, %v3734
    %v3799 = vpack.c.b16 %v3751, %v3735
    %v3800 = vpack.c.b16 %v3752, %v3736
    %v3801 = vpack.c.b16 %v3753, %v3737
    %v3802 = vpack.c.b16 %v3754, %v3738
    %v3803 = vpack.c.b16 %v3755, %v3739
    %v3804 = vpack.c.b16 %v3756, %v3740
    %v3805 = vpack.c.b16 %v3757, %v3741
    %v3806 = vpack.c.b16 %v3758, %v3742
    %v3807 = vpack.c.b16 %v3775, %v3759
    %v3808 = vpack.c.b16 %v3776, %v3760
    %v3809 = vpack.c.b16 %v3777, %v3761
    %v3810 = vpack.c.b16 %v3778, %v3762
    %v3811 = vpack.c.b16 %v3779, %v3763
    %v3812 = vpack.c.b16 %v3780, %v3764
    %v3813 = vpack.c.b16 %v3781, %v3765
    %v3814 = vpack.c.b16 %v3782, %v3766
    %v3815 = vpack.c.b16 %v3783, %v3767
    %v3816 = vpack.c.b16 %v3784, %v3768
    %v3817 = vpack.c.b16 %v3785, %v3769
    %v3818 = vpack.c.b16 %v3786, %v3770
    %v3819 = vpack.c.b16 %v3787, %v3771
    %v3820 = vpack.c.b16 %v3788, %v3772
    %v3821 = vpack.c.b16 %v3789, %v3773
    %v3822 = vpack.c.b16 %v3790, %v3774
    %3855 = vmatprep.subr.bf16.mxu0 %v3792
    %3856 = vmatpush1.bf16.xpose.msra.mxu0 %v3791
    %3857 = vmatprep.subr.bf16.mxu0 %v3808
    %3858 = vmatpush1.bf16.xpose.msra.mxu0 %v3807
    %3859 = vmatprep.subr.bf16.mxu0 0
    %3860 = vmatpush1.bf16.xpose.msra.mxu0 0
    %3861 = vmatprep.subr.bf16.mxu0 0
    %3862 = vmatpush1.bf16.xpose.msra.mxu0 0
    %3863 = vmatprep.subr.bf16.mxu0 0
    %3864 = vmatpush1.bf16.xpose.msra.mxu0 0
    %3865 = vmatprep.subr.bf16.mxu0 0
    %3866 = vmatpush1.bf16.xpose.msra.mxu0 0
    %3867 = vmatprep.subr.bf16.mxu0 0
    %3868 = vmatpush1.bf16.xpose.msra.mxu0 0
    %3869 = vmatprep.subr.bf16.mxu0 0
    %3870 = vmatpush1.bf16.xpose.msra.mxu0 0
    %3871 = vmatprep.subr.bf16.mxu0 0
    %3872 = vmatpush1.bf16.xpose.msra.mxu0 0
    %3873 = vmatprep.subr.bf16.mxu0 0
    %3874 = vmatpush1.bf16.xpose.msra.mxu0 0
    %3875 = vmatprep.subr.bf16.mxu0 0
    %3876 = vmatpush1.bf16.xpose.msra.mxu0 0
    %3877 = vmatprep.subr.bf16.mxu0 0
    %3878 = vmatpush1.bf16.xpose.msra.mxu0 0
    %3879 = vmatprep.subr.bf16.mxu0 0
    %3880 = vmatpush1.bf16.xpose.msra.mxu0 0
    %3881 = vmatprep.subr.bf16.mxu0 0
    %3882 = vmatpush1.bf16.xpose.msra.mxu0 0
    %3883 = vmatprep.subr.bf16.mxu0 0
    %3884 = vmatpush1.bf16.xpose.msra.mxu0 0
    %3885 = vmatprep.subr.bf16.mxu0 0
    %3886 = vmatpush1.bf16.xpose.msra.mxu0 0
    %3887 = vmatprep.mubr.bf16.mxu0 %v3643
    %3888 = vmatmul.mubr.bf16.gmra.mrb[0].mxu0 %v3642
    %v3889 = vpop.f32.mrb[0].mxu0
    %v3890 = vadd.f32 %v3694, %v3889
    %v3891 = vpop.f32.mrb[0].mxu0
    %v3892 = vpop.f32.mrb[0].mxu0
    %v3893 = vadd.f32 %v3694, %v3892
    %v3894 = vpop.f32.mrb[0].mxu0
    %3895 = vdwg.mxu0
    %3896 = vmatprep.subr.bf16.mxu0 %v3794
    %3897 = vmatpush1.bf16.xpose.msra.mxu0 %v3793
    %3898 = vmatprep.subr.bf16.mxu0 %v3810
    %3899 = vmatpush1.bf16.xpose.msra.mxu0 %v3809
    %3900 = vmatprep.subr.bf16.mxu0 0
    %3901 = vmatpush1.bf16.xpose.msra.mxu0 0
    %3902 = vmatprep.subr.bf16.mxu0 0
    %3903 = vmatpush1.bf16.xpose.msra.mxu0 0
    %3904 = vmatprep.subr.bf16.mxu0 0
    %3905 = vmatpush1.bf16.xpose.msra.mxu0 0
    %3906 = vmatprep.subr.bf16.mxu0 0
    %3907 = vmatpush1.bf16.xpose.msra.mxu0 0
    %3908 = vmatprep.subr.bf16.mxu0 0
    %3909 = vmatpush1.bf16.xpose.msra.mxu0 0
    %3910 = vmatprep.subr.bf16.mxu0 0
    %3911 = vmatpush1.bf16.xpose.msra.mxu0 0
    %3912 = vmatprep.subr.bf16.mxu0 0
    %3913 = vmatpush1.bf16.xpose.msra.mxu0 0
    %3914 = vmatprep.subr.bf16.mxu0 0
    %3915 = vmatpush1.bf16.xpose.msra.mxu0 0
    %3916 = vmatprep.subr.bf16.mxu0 0
    %3917 = vmatpush1.bf16.xpose.msra.mxu0 0
    %3918 = vmatprep.subr.bf16.mxu0 0
    %3919 = vmatpush1.bf16.xpose.msra.mxu0 0
    %3920 = vmatprep.subr.bf16.mxu0 0
    %3921 = vmatpush1.bf16.xpose.msra.mxu0 0
    %3922 = vmatprep.subr.bf16.mxu0 0
    %3923 = vmatpush1.bf16.xpose.msra.mxu0 0
    %3924 = vmatprep.subr.bf16.mxu0 0
    %3925 = vmatpush1.bf16.xpose.msra.mxu0 0
    %3926 = vmatprep.subr.bf16.mxu0 0
    %3927 = vmatpush1.bf16.xpose.msra.mxu0 0
    %3928 = vmatprep.mubr.bf16.mxu0 %v3645
    %3929 = vmatmul.mubr.bf16.gmra.mrb[0].mxu0 %v3644
    %v3930 = vpop.f32.mrb[0].mxu0
    %v3931 = vadd.f32 %v3890, %v3930
    %v3932 = vpop.f32.mrb[0].mxu0
    %v3933 = vpop.f32.mrb[0].mxu0
    %v3934 = vadd.f32 %v3893, %v3933
    %v3935 = vpop.f32.mrb[0].mxu0
    %3936 = vdwg.mxu0
    %3937 = vmatprep.subr.bf16.mxu0 %v3796
    %3938 = vmatpush1.bf16.xpose.msra.mxu0 %v3795
    %3939 = vmatprep.subr.bf16.mxu0 %v3812
    %3940 = vmatpush1.bf16.xpose.msra.mxu0 %v3811
    %3941 = vmatprep.subr.bf16.mxu0 0
    %3942 = vmatpush1.bf16.xpose.msra.mxu0 0
    %3943 = vmatprep.subr.bf16.mxu0 0
    %3944 = vmatpush1.bf16.xpose.msra.mxu0 0
    %3945 = vmatprep.subr.bf16.mxu0 0
    %3946 = vmatpush1.bf16.xpose.msra.mxu0 0
    %3947 = vmatprep.subr.bf16.mxu0 0
    %3948 = vmatpush1.bf16.xpose.msra.mxu0 0
    %3949 = vmatprep.subr.bf16.mxu0 0
    %3950 = vmatpush1.bf16.xpose.msra.mxu0 0
    %3951 = vmatprep.subr.bf16.mxu0 0
    %3952 = vmatpush1.bf16.xpose.msra.mxu0 0
    %3953 = vmatprep.subr.bf16.mxu0 0
    %3954 = vmatpush1.bf16.xpose.msra.mxu0 0
    %3955 = vmatprep.subr.bf16.mxu0 0
    %3956 = vmatpush1.bf16.xpose.msra.mxu0 0
    %3957 = vmatprep.subr.bf16.mxu0 0
    %3958 = vmatpush1.bf16.xpose.msra.mxu0 0
    %3959 = vmatprep.subr.bf16.mxu0 0
    %3960 = vmatpush1.bf16.xpose.msra.mxu0 0
    %3961 = vmatprep.subr.bf16.mxu0 0
    %3962 = vmatpush1.bf16.xpose.msra.mxu0 0
    %3963 = vmatprep.subr.bf16.mxu0 0
    %3964 = vmatpush1.bf16.xpose.msra.mxu0 0
    %3965 = vmatprep.subr.bf16.mxu0 0
    %3966 = vmatpush1.bf16.xpose.msra.mxu0 0
    %3967 = vmatprep.subr.bf16.mxu0 0
    %3968 = vmatpush1.bf16.xpose.msra.mxu0 0
    %3969 = vmatprep.mubr.bf16.mxu0 %v3647
    %3970 = vmatmul.mubr.bf16.gmra.mrb[0].mxu0 %v3646
    %v3971 = vpop.f32.mrb[0].mxu0
    %v3972 = vadd.f32 %v3931, %v3971
    %v3973 = vpop.f32.mrb[0].mxu0
    %v3974 = vpop.f32.mrb[0].mxu0
    %v3975 = vadd.f32 %v3934, %v3974
    %v3976 = vpop.f32.mrb[0].mxu0
    %3977 = vdwg.mxu0
    %3978 = vmatprep.subr.bf16.mxu0 %v3798
    %3979 = vmatpush1.bf16.xpose.msra.mxu0 %v3797
    %3980 = vmatprep.subr.bf16.mxu0 %v3814
    %3981 = vmatpush1.bf16.xpose.msra.mxu0 %v3813
    %3982 = vmatprep.subr.bf16.mxu0 0
    %3983 = vmatpush1.bf16.xpose.msra.mxu0 0
    %3984 = vmatprep.subr.bf16.mxu0 0
    %3985 = vmatpush1.bf16.xpose.msra.mxu0 0
    %3986 = vmatprep.subr.bf16.mxu0 0
    %3987 = vmatpush1.bf16.xpose.msra.mxu0 0
    %3988 = vmatprep.subr.bf16.mxu0 0
    %3989 = vmatpush1.bf16.xpose.msra.mxu0 0
    %3990 = vmatprep.subr.bf16.mxu0 0
    %3991 = vmatpush1.bf16.xpose.msra.mxu0 0
    %3992 = vmatprep.subr.bf16.mxu0 0
    %3993 = vmatpush1.bf16.xpose.msra.mxu0 0
    %3994 = vmatprep.subr.bf16.mxu0 0
    %3995 = vmatpush1.bf16.xpose.msra.mxu0 0
    %3996 = vmatprep.subr.bf16.mxu0 0
    %3997 = vmatpush1.bf16.xpose.msra.mxu0 0
    %3998 = vmatprep.subr.bf16.mxu0 0
    %3999 = vmatpush1.bf16.xpose.msra.mxu0 0
    %4000 = vmatprep.subr.bf16.mxu0 0
    %4001 = vmatpush1.bf16.xpose.msra.mxu0 0
    %4002 = vmatprep.subr.bf16.mxu0 0
    %4003 = vmatpush1.bf16.xpose.msra.mxu0 0
    %4004 = vmatprep.subr.bf16.mxu0 0
    %4005 = vmatpush1.bf16.xpose.msra.mxu0 0
    %4006 = vmatprep.subr.bf16.mxu0 0
    %4007 = vmatpush1.bf16.xpose.msra.mxu0 0
    %4008 = vmatprep.subr.bf16.mxu0 0
    %4009 = vmatpush1.bf16.xpose.msra.mxu0 0
    %4010 = vmatprep.mubr.bf16.mxu0 %v3649
    %4011 = vmatmul.mubr.bf16.gmra.mrb[0].mxu0 %v3648
    %v4012 = vpop.f32.mrb[0].mxu0
    %v4013 = vadd.f32 %v3972, %v4012
    %v4014 = vpop.f32.mrb[0].mxu0
    %v4015 = vpop.f32.mrb[0].mxu0
    %v4016 = vadd.f32 %v3975, %v4015
    %v4017 = vpop.f32.mrb[0].mxu0
    %4018 = vdwg.mxu0
    %4019 = vmatprep.subr.bf16.mxu0 %v3800
    %4020 = vmatpush1.bf16.xpose.msra.mxu0 %v3799
    %4021 = vmatprep.subr.bf16.mxu0 %v3816
    %4022 = vmatpush1.bf16.xpose.msra.mxu0 %v3815
    %4023 = vmatprep.subr.bf16.mxu0 0
    %4024 = vmatpush1.bf16.xpose.msra.mxu0 0
    %4025 = vmatprep.subr.bf16.mxu0 0
    %4026 = vmatpush1.bf16.xpose.msra.mxu0 0
    %4027 = vmatprep.subr.bf16.mxu0 0
    %4028 = vmatpush1.bf16.xpose.msra.mxu0 0
    %4029 = vmatprep.subr.bf16.mxu0 0
    %4030 = vmatpush1.bf16.xpose.msra.mxu0 0
    %4031 = vmatprep.subr.bf16.mxu0 0
    %4032 = vmatpush1.bf16.xpose.msra.mxu0 0
    %4033 = vmatprep.subr.bf16.mxu0 0
    %4034 = vmatpush1.bf16.xpose.msra.mxu0 0
    %4035 = vmatprep.subr.bf16.mxu0 0
    %4036 = vmatpush1.bf16.xpose.msra.mxu0 0
    %4037 = vmatprep.subr.bf16.mxu0 0
    %4038 = vmatpush1.bf16.xpose.msra.mxu0 0
    %4039 = vmatprep.subr.bf16.mxu0 0
    %4040 = vmatpush1.bf16.xpose.msra.mxu0 0
    %4041 = vmatprep.subr.bf16.mxu0 0
    %4042 = vmatpush1.bf16.xpose.msra.mxu0 0
    %4043 = vmatprep.subr.bf16.mxu0 0
    %4044 = vmatpush1.bf16.xpose.msra.mxu0 0
    %4045 = vmatprep.subr.bf16.mxu0 0
    %4046 = vmatpush1.bf16.xpose.msra.mxu0 0
    %4047 = vmatprep.subr.bf16.mxu0 0
    %4048 = vmatpush1.bf16.xpose.msra.mxu0 0
    %4049 = vmatprep.subr.bf16.mxu0 0
    %4050 = vmatpush1.bf16.xpose.msra.mxu0 0
    %4051 = vmatprep.mubr.bf16.mxu0 %v3651
    %4052 = vmatmul.mubr.bf16.gmra.mrb[0].mxu0 %v3650
    %v4053 = vpop.f32.mrb[0].mxu0
    %v4054 = vadd.f32 %v4013, %v4053
    %v4055 = vpop.f32.mrb[0].mxu0
    %v4056 = vpop.f32.mrb[0].mxu0
    %v4057 = vadd.f32 %v4016, %v4056
    %v4058 = vpop.f32.mrb[0].mxu0
    %4059 = vdwg.mxu0
    %4060 = vmatprep.subr.bf16.mxu0 %v3802
    %4061 = vmatpush1.bf16.xpose.msra.mxu0 %v3801
    %4062 = vmatprep.subr.bf16.mxu0 %v3818
    %4063 = vmatpush1.bf16.xpose.msra.mxu0 %v3817
    %4064 = vmatprep.subr.bf16.mxu0 0
    %4065 = vmatpush1.bf16.xpose.msra.mxu0 0
    %4066 = vmatprep.subr.bf16.mxu0 0
    %4067 = vmatpush1.bf16.xpose.msra.mxu0 0
    %4068 = vmatprep.subr.bf16.mxu0 0
    %4069 = vmatpush1.bf16.xpose.msra.mxu0 0
    %4070 = vmatprep.subr.bf16.mxu0 0
    %4071 = vmatpush1.bf16.xpose.msra.mxu0 0
    %4072 = vmatprep.subr.bf16.mxu0 0
    %4073 = vmatpush1.bf16.xpose.msra.mxu0 0
    %4074 = vmatprep.subr.bf16.mxu0 0
    %4075 = vmatpush1.bf16.xpose.msra.mxu0 0
    %4076 = vmatprep.subr.bf16.mxu0 0
    %4077 = vmatpush1.bf16.xpose.msra.mxu0 0
    %4078 = vmatprep.subr.bf16.mxu0 0
    %4079 = vmatpush1.bf16.xpose.msra.mxu0 0
    %4080 = vmatprep.subr.bf16.mxu0 0
    %4081 = vmatpush1.bf16.xpose.msra.mxu0 0
    %4082 = vmatprep.subr.bf16.mxu0 0
    %4083 = vmatpush1.bf16.xpose.msra.mxu0 0
    %4084 = vmatprep.subr.bf16.mxu0 0
    %4085 = vmatpush1.bf16.xpose.msra.mxu0 0
    %4086 = vmatprep.subr.bf16.mxu0 0
    %4087 = vmatpush1.bf16.xpose.msra.mxu0 0
    %4088 = vmatprep.subr.bf16.mxu0 0
    %4089 = vmatpush1.bf16.xpose.msra.mxu0 0
    %4090 = vmatprep.subr.bf16.mxu0 0
    %4091 = vmatpush1.bf16.xpose.msra.mxu0 0
    %4092 = vmatprep.mubr.bf16.mxu0 %v3653
    %4093 = vmatmul.mubr.bf16.gmra.mrb[0].mxu0 %v3652
    %v4094 = vpop.f32.mrb[0].mxu0
    %v4095 = vadd.f32 %v4054, %v4094
    %v4096 = vpop.f32.mrb[0].mxu0
    %v4097 = vpop.f32.mrb[0].mxu0
    %v4098 = vadd.f32 %v4057, %v4097
    %v4099 = vpop.f32.mrb[0].mxu0
    %4100 = vdwg.mxu0
    %4101 = vmatprep.subr.bf16.mxu0 %v3804
    %4102 = vmatpush1.bf16.xpose.msra.mxu0 %v3803
    %4103 = vmatprep.subr.bf16.mxu0 %v3820
    %4104 = vmatpush1.bf16.xpose.msra.mxu0 %v3819
    %4105 = vmatprep.subr.bf16.mxu0 0
    %4106 = vmatpush1.bf16.xpose.msra.mxu0 0
    %4107 = vmatprep.subr.bf16.mxu0 0
    %4108 = vmatpush1.bf16.xpose.msra.mxu0 0
    %4109 = vmatprep.subr.bf16.mxu0 0
    %4110 = vmatpush1.bf16.xpose.msra.mxu0 0
    %4111 = vmatprep.subr.bf16.mxu0 0
    %4112 = vmatpush1.bf16.xpose.msra.mxu0 0
    %4113 = vmatprep.subr.bf16.mxu0 0
    %4114 = vmatpush1.bf16.xpose.msra.mxu0 0
    %4115 = vmatprep.subr.bf16.mxu0 0
    %4116 = vmatpush1.bf16.xpose.msra.mxu0 0
    %4117 = vmatprep.subr.bf16.mxu0 0
    %4118 = vmatpush1.bf16.xpose.msra.mxu0 0
    %4119 = vmatprep.subr.bf16.mxu0 0
    %4120 = vmatpush1.bf16.xpose.msra.mxu0 0
    %4121 = vmatprep.subr.bf16.mxu0 0
    %4122 = vmatpush1.bf16.xpose.msra.mxu0 0
    %4123 = vmatprep.subr.bf16.mxu0 0
    %4124 = vmatpush1.bf16.xpose.msra.mxu0 0
    %4125 = vmatprep.subr.bf16.mxu0 0
    %4126 = vmatpush1.bf16.xpose.msra.mxu0 0
    %4127 = vmatprep.subr.bf16.mxu0 0
    %4128 = vmatpush1.bf16.xpose.msra.mxu0 0
    %4129 = vmatprep.subr.bf16.mxu0 0
    %4130 = vmatpush1.bf16.xpose.msra.mxu0 0
    %4131 = vmatprep.subr.bf16.mxu0 0
    %4132 = vmatpush1.bf16.xpose.msra.mxu0 0
    %4133 = vmatprep.mubr.bf16.mxu0 %v3655
    %4134 = vmatmul.mubr.bf16.gmra.mrb[0].mxu0 %v3654
    %v4135 = vpop.f32.mrb[0].mxu0
    %v4136 = vadd.f32 %v4095, %v4135
    %v4137 = vpop.f32.mrb[0].mxu0
    %v4138 = vpop.f32.mrb[0].mxu0
    %v4139 = vadd.f32 %v4098, %v4138
    %v4140 = vpop.f32.mrb[0].mxu0
    %4141 = vdwg.mxu0
    %4142 = vmatprep.subr.bf16.mxu0 %v3806
    %4143 = vmatpush1.bf16.xpose.msra.mxu0 %v3805
    %4144 = vmatprep.subr.bf16.mxu0 %v3822
    %4145 = vmatpush1.bf16.xpose.msra.mxu0 %v3821
    %4146 = vmatprep.subr.bf16.mxu0 0
    %4147 = vmatpush1.bf16.xpose.msra.mxu0 0
    %4148 = vmatprep.subr.bf16.mxu0 0
    %4149 = vmatpush1.bf16.xpose.msra.mxu0 0
    %4150 = vmatprep.subr.bf16.mxu0 0
    %4151 = vmatpush1.bf16.xpose.msra.mxu0 0
    %4152 = vmatprep.subr.bf16.mxu0 0
    %4153 = vmatpush1.bf16.xpose.msra.mxu0 0
    %4154 = vmatprep.subr.bf16.mxu0 0
    %4155 = vmatpush1.bf16.xpose.msra.mxu0 0
    %4156 = vmatprep.subr.bf16.mxu0 0
    %4157 = vmatpush1.bf16.xpose.msra.mxu0 0
    %4158 = vmatprep.subr.bf16.mxu0 0
    %4159 = vmatpush1.bf16.xpose.msra.mxu0 0
    %4160 = vmatprep.subr.bf16.mxu0 0
    %4161 = vmatpush1.bf16.xpose.msra.mxu0 0
    %4162 = vmatprep.subr.bf16.mxu0 0
    %4163 = vmatpush1.bf16.xpose.msra.mxu0 0
    %4164 = vmatprep.subr.bf16.mxu0 0
    %4165 = vmatpush1.bf16.xpose.msra.mxu0 0
    %4166 = vmatprep.subr.bf16.mxu0 0
    %4167 = vmatpush1.bf16.xpose.msra.mxu0 0
    %4168 = vmatprep.subr.bf16.mxu0 0
    %4169 = vmatpush1.bf16.xpose.msra.mxu0 0
    %4170 = vmatprep.subr.bf16.mxu0 0
    %4171 = vmatpush1.bf16.xpose.msra.mxu0 0
    %4172 = vmatprep.subr.bf16.mxu0 0
    %4173 = vmatpush1.bf16.xpose.msra.mxu0 0
    %4174 = vmatprep.mubr.bf16.mxu0 %v3657
    %4175 = vmatmul.mubr.bf16.gmra.mrb[0].mxu0 %v3656
    %v4176 = vpop.f32.mrb[0].mxu0
    %v4177 = vadd.f32 %v4136, %v4176
    %v4178 = vpop.f32.mrb[0].mxu0
    %v4179 = vpop.f32.mrb[0].mxu0
    %v4180 = vadd.f32 %v4139, %v4179
    %v4181 = vpop.f32.mrb[0].mxu0
    %4182 = vdwg.mxu0
    %v4183 = vadd.f32 %v2982, %v4177
    %v4184 = vadd.f32 %v2983, %v4180
    %v4185 = vsel %vm181, %v4183, 0.0
    %4186 = vadd.xlane.f32.xlu0 %v4185
    %v4187 = vpop.xlane.xlu0 %4186
    %v4188 = vsel %vm181, %v4184, 0.0
    %4189 = vadd.xlane.f32.xlu0 %v4188
    %v4190 = vpop.xlane.xlu0 %4189
    %v4191 = vmul.f32 %v4187, %v882
    %v4192 = vmul.f32 %v4190, %v882
    %v4193 = vsub.f32 %v4183, %v4191
    %v4194 = vsub.f32 %v4184, %v4192
    %v4195 = vmul.f32 %v4193, %v4193
    %v4196 = vmul.f32 %v4194, %v4194
    %v4197 = vsel %vm181, %v4195, 0.0
    %4198 = vadd.xlane.f32.xlu0 %v4197
    %v4199 = vpop.xlane.xlu0 %4198
    %v4200 = vsel %vm181, %v4196, 0.0
    %4201 = vadd.xlane.f32.xlu0 %v4200
    %v4202 = vpop.xlane.xlu0 %4201
    %v4203 = vmul.f32 %v4199, %v882
    %v4204 = vmul.f32 %v4202, %v882
    %v4205 = vadd.f32 %v4203, 1e-05
    %v4206 = vadd.f32 %v4204, 1e-05
    %v4207 = vrsqrt.pop %v4205
    %v4208 = vrsqrt.pop %v4206
    %v4209 = vmul.f32 %v4193, %v4207
    %v4210 = vmul.f32 %v4194, %v4208
    %v4211 = vlaneseq
    %v4212 = vshrl.u32 %v4211, 7
    %v4213 = vsub.s32 1, %v4212
    %v4214 = vrot.slane %v2198, %v4213
    %v4215 = vmul.f32 %v4209, %v4214
    %v4216 = vmul.f32 %v4210, %v4214
    %v4217 = vlaneseq
    %v4218 = vshrl.u32 %v4217, 7
    %v4219 = vsub.s32 2, %v4218
    %v4220 = vrot.slane %v2198, %v4219
    %v4221 = vadd.f32 %v4215, %v4220
    %v4222 = vadd.f32 %v4216, %v4220
    %v4223 = vld [vmem:[%s3] sm:$0xff]
    %v4224 = vld [vmem:[%s3 + $0x8] sm:$0xff]
    %v4225 = vld [vmem:[%s3 + $0x10] sm:$0xff]
    %v4226 = vld [vmem:[%s3 + $0x18] sm:$0xff]
    %v4227 = vld [vmem:[%s4] sm:$0x1]
    %v4229 = vlaneseq
    %v4230 = vshrl.u32 %v4229, 7
    %v4231 = vsub.s32 0, %v4230
    %v4232 = vrot.slane %v4227, %v4231
    %v4235 = vsel %vm181, %v4221, 0
    %v4238 = vsel %vm181, %v4222, 0
    %4240 = vmatprep.subr.mxu0 0.0
    %4241 = vmatpush1.msra.mxu0 %v4223
    %4242 = vmatprep.subr.mxu0 0.0
    %4243 = vmatpush1.msra.mxu0 %v4224
    %4244 = vmatprep.subr.mxu0 0.0
    %4245 = vmatpush1.msra.mxu0 %v4225
    %4246 = vmatprep.subr.mxu0 0.0
    %4247 = vmatpush1.msra.mxu0 %v4226
    %4248 = vmatprep.subr.mxu0 0.0
    %4249 = vmatpush1.msra.mxu0 0.0
    %4250 = vmatprep.subr.mxu0 0.0
    %4251 = vmatpush1.msra.mxu0 0.0
    %4252 = vmatprep.subr.mxu0 0.0
    %4253 = vmatpush1.msra.mxu0 0.0
    %4254 = vmatprep.subr.mxu0 0.0
    %4255 = vmatpush1.msra.mxu0 0.0
    %4256 = vmatprep.subr.mxu0 0.0
    %4257 = vmatpush1.msra.mxu0 0.0
    %4258 = vmatprep.subr.mxu0 0.0
    %4259 = vmatpush1.msra.mxu0 0.0
    %4260 = vmatprep.subr.mxu0 0.0
    %4261 = vmatpush1.msra.mxu0 0.0
    %4262 = vmatprep.subr.mxu0 0.0
    %4263 = vmatpush1.msra.mxu0 0.0
    %4264 = vmatprep.subr.mxu0 0.0
    %4265 = vmatpush1.msra.mxu0 0.0
    %4266 = vmatprep.subr.mxu0 0.0
    %4267 = vmatpush1.msra.mxu0 0.0
    %4268 = vmatprep.subr.mxu0 0.0
    %4269 = vmatpush1.msra.mxu0 0.0
    %4270 = vmatprep.subr.mxu0 0.0
    %4271 = vmatpush1.msra.mxu0 0.0
    %4272 = vmatprep.subr.mxu0 0.0
    %4273 = vmatpush1.msra.mxu0 0.0
    %4274 = vmatprep.subr.mxu0 0.0
    %4275 = vmatpush1.msra.mxu0 0.0
    %4276 = vmatprep.subr.mxu0 0.0
    %4277 = vmatpush1.msra.mxu0 0.0
    %4278 = vmatprep.subr.mxu0 0.0
    %4279 = vmatpush1.msra.mxu0 0.0
    %4280 = vmatprep.subr.mxu0 0.0
    %4281 = vmatpush1.msra.mxu0 0.0
    %4282 = vmatprep.subr.mxu0 0.0
    %4283 = vmatpush1.msra.mxu0 0.0
    %4284 = vmatprep.subr.mxu0 0.0
    %4285 = vmatpush1.msra.mxu0 0.0
    %4286 = vmatprep.subr.mxu0 0.0
    %4287 = vmatpush1.msra.mxu0 0.0
    %4288 = vmatprep.subr.mxu0 0.0
    %4289 = vmatpush1.msra.mxu0 0.0
    %4290 = vmatprep.subr.mxu0 0.0
    %4291 = vmatpush1.msra.mxu0 0.0
    %4292 = vmatprep.subr.mxu0 0.0
    %4293 = vmatpush1.msra.mxu0 0.0
    %4294 = vmatprep.subr.mxu0 0.0
    %4295 = vmatpush1.msra.mxu0 0.0
    %4296 = vmatprep.subr.mxu0 0.0
    %4297 = vmatpush1.msra.mxu0 0.0
    %4298 = vmatprep.subr.mxu0 0.0
    %4299 = vmatpush1.msra.mxu0 0.0
    %4300 = vmatprep.subr.mxu0 0.0
    %4301 = vmatpush1.msra.mxu0 0.0
    %4302 = vmatprep.subr.mxu0 0.0
    %4303 = vmatpush1.msra.mxu0 0.0
    %4304 = vmatprep.mubr.f32.mxu0 0.0
    %4305 = vmatmul.mubr.f32.gmra.mrb[0].mxu0 %v4235
    %v4306 = vpop.f32.mrb[0].mxu0
    %v4307 = vadd.f32 %v4232, %v4306
    %v4308 = vpop.f32.mrb[0].mxu0
    %4309 = vmatprep.mubr.f32.mxu0 0.0
    %4310 = vmatmul.mubr.f32.gmra.mrb[0].mxu0 %v4238
    %v4311 = vpop.f32.mrb[0].mxu0
    %v4312 = vadd.f32 %v4232, %v4311
    %v4313 = vpop.f32.mrb[0].mxu0
    %4314 = vdwg.mxu0
    %4315 = vst.msk [vmem:[#allocation5] sm:$0xff] %vm79, %v4307
    %4316 = vst.msk [vmem:[#allocation5 + $0x8] sm:$0xff] %vm79, %v4312
    // Predicated region
    $region50: #{gpt_forward.1} parent=1 // pred_check
      _
    $region51: #{gpt_forward.1} parent=1 // pred_check_branch
      %4318 = sbr.rel (0) target = $region53
    $region52: #{gpt_forward.1} parent=1 // pred_region
      %s4320 = ssub.s32 256, 256
      %4321 = vsyncadd [#allocation4], %s4320
      %s4322 = sshll.u32 [#allocation5], 4
      %s4323 = int_to_ptr.vmem [resolvable:$true] %s4322
      %4328 = dma.vmem_to_hbm [thread:$0]  %s4323, 256, %s11, [#allocation4], 128, 128, 8
    $region53: #{gpt_forward.1} parent=1 // pred_fallthru
      _
    // Predicated region
    $region54: #{gpt_forward.1} parent=1 // pred_check
      _
    $region55: #{gpt_forward.1} parent=1 // pred_check_branch
      %4330 = sbr.rel (0) target = $region57
    $region56: #{gpt_forward.1} parent=1 // pred_region
      %4331 = dma.done [#allocation4], 256
    $region57: #{gpt_forward.1} parent=1 // pred_fallthru
      _
    %4332 = vsyncpa [#allocation3], 1
    %4333 = vsyncpa [#allocation4], 1

</llo_original>
